<compile_context>
chip_gen: v5e
topology: v5e:2x2
jax: 0.10.0
libtpu: 0.0.40
codegen_flags: <defaults>
</compile_context>

<pallas_src>
import math

import jax
import jax.numpy as jnp
from jax.experimental import pallas as pl
from jax.experimental.pallas import tpu as pltpu

# ---- config (cfg.transformer_in / transformer_n_heads / transformer_n_layers) ----
D_MODEL = 32          # cfg.transformer_in
N_HEADS = 4           # cfg.transformer_n_heads
N_LAYERS = 2          # cfg.transformer_n_layers
DIM_FF = 2048         # PyTorch TransformerEncoderLayer default
LN_EPS = 1e-5
SEQ = 8
BATCH = 2
HEAD_DIM = D_MODEL // N_HEADS
NEG_INF = -1e9

_HI = jax.lax.Precision.HIGHEST   # reference only


# ---------------------------------------------------------------------------
# fused kernel: all layers, whole batch, one invocation
# ---------------------------------------------------------------------------
def _layer_norm(x, g, b):
    mu = jnp.mean(x, axis=-1, keepdims=True)
    xc = x - mu
    var = jnp.mean(xc * xc, axis=-1, keepdims=True)
    return xc * jax.lax.rsqrt(var + LN_EPS) * g + b


def _fused_encoder_kernel(x_ref, bias_ref,
                          wqkv_ref, bqkv_ref, wo_ref,
                          w1_ref, b1_ref, w2_ref, small_ref,
                          o_ref):
    """All N_LAYERS encoder layers for the whole (flattened) batch.

    x_ref    : (M, E)  with M = N*S, rows ordered (batch, seq)
    bias_ref : (H*M, M) additive attention bias; 0 where query row may attend
               key column (same batch element, key not padded), -1e9 otherwise.
    weights  : stacked over layers, pre-transposed so the kernel does x @ W.
    """
    x = x_ref[...]                      # (M, E) float32
    attn_bias = bias_ref[...]           # (H*M, M)
    M, E = x.shape
    scale = 1.0 / math.sqrt(HEAD_DIM)

    # Per-head full-width lane masks (1, E); built once from an iota so they
    # cost no extra inputs/DMAs and no lane slicing later.
    lane = jax.lax.broadcasted_iota(jnp.int32, (1, E), 1)
    hmask = [((lane >= h * HEAD_DIM) & (lane < (h + 1) * HEAD_DIM))
             .astype(jnp.float32) for h in range(N_HEADS)]

    for layer in range(N_LAYERS):       # static unrolled loop over layers
        wqkv = wqkv_ref[layer]          # (E, 3E)
        bqkv = bqkv_ref[layer]          # (1, 3E)
        wo = wo_ref[layer]              # (E, E)
        w1 = w1_ref[layer]              # (E, FF)
        b1 = b1_ref[layer]              # (1, FF)
        w2 = w2_ref[layer]              # (FF, E)
        sm = small_ref[layer]           # (6, E): bo, b2, g1, be1, g2, be2
        bo, b2 = sm[0:1, :], sm[1:2, :]
        g1, be1 = sm[2:3, :], sm[3:4, :]
        g2, be2 = sm[4:5, :], sm[5:6, :]

        # ------------- multi-head self-attention (lane-mask trick) -------------
        qkv = jnp.dot(x, wqkv, preferred_element_type=jnp.float32) + bqkv  # (M, 3E)
        q = qkv[:, 0 * E:1 * E] * scale
        k = qkv[:, 1 * E:2 * E]
        v = qkv[:, 2 * E:3 * E]

        # Replicate queries per head with head-lane masks: rows ordered (h, n, s).
        qh = jnp.concatenate([q * hmask[h] for h in range(N_HEADS)], axis=0)  # (H*M, E)
        # scores[h*M+m, m'] = sum_{d in head h} q[m, d] * k[m', d]
        scores = jax.lax.dot_general(qh, k, (((1,), (1,)), ((), ())),
                                     preferred_element_type=jnp.float32)     # (H*M, M)
        scores = scores + attn_bias
        scores = scores - jnp.max(scores, axis=-1, keepdims=True)
        p = jnp.exp(scores)
        p = p * pl.reciprocal(jnp.sum(p, axis=-1, keepdims=True), approx=True)
        pv = jnp.dot(p, v, preferred_element_type=jnp.float32)               # (H*M, E)

        # Each head's correct output lives in its own lane group of its row block.
        attn = hmask[0] * pv[0:M, :]
        for h in range(1, N_HEADS):
            attn = attn + hmask[h] * pv[h * M:(h + 1) * M, :]
        attn = jnp.dot(attn, wo, preferred_element_type=jnp.float32) + bo

        # ------------- residual + layernorm 1 -------------
        y = _layer_norm(x + attn, g1, be1)

        # ------------- feed-forward (ReLU) -------------
        h1 = jnp.maximum(jnp.dot(y, w1, preferred_element_type=jnp.float32) + b1, 0.0)
        ff = jnp.dot(h1, w2, preferred_element_type=jnp.float32) + b2

        # ------------- residual + layernorm 2 -------------
        x = _layer_norm(y + ff, g2, be2)

    o_ref[...] = x.astype(o_ref.dtype)


# ---------------------------------------------------------------------------
# wrapper
# ---------------------------------------------------------------------------
def _full_spec(shape):
    nd = len(shape)

    def idx(i):
        return (0,) * nd

    return pl.BlockSpec(shape, idx)


def _pack_params(layer_params):
    """Stack per-layer params into a few large arrays (fewer, bigger DMAs)."""
    wqkv = jnp.stack([p["wqkv"].T for p in layer_params])            # (L, E, 3E)
    bqkv = jnp.stack([p["bqkv"][None, :] for p in layer_params])     # (L, 1, 3E)
    wo = jnp.stack([p["wo"].T for p in layer_params])                # (L, E, E)
    w1 = jnp.stack([p["w1"].T for p in layer_params])                # (L, E, FF)
    b1 = jnp.stack([p["b1"][None, :] for p in layer_params])         # (L, 1, FF)
    w2 = jnp.stack([p["w2"].T for p in layer_params])                # (L, FF, E)
    small = jnp.stack([jnp.stack([p["bo"], p["b2"], p["g1"], p["be1"],
                                  p["g2"], p["be2"]]) for p in layer_params])  # (L, 6, E)
    return wqkv, bqkv, wo, w1, b1, w2, small


def _attention_bias(mask_bool):
    """Additive bias (H*N*S, N*S): 0 where attention is allowed, -1e9 otherwise.

    Encodes both the key-padding mask and the block-diagonal (no cross-batch
    attention) structure of the batch-folded score matrix.
    """
    N, S = mask_bool.shape
    batch_id = jnp.repeat(jnp.arange(N), S)                   # (N*S,)
    same_batch = batch_id[:, None] == batch_id[None, :]       # (N*S, N*S)
    not_padded = jnp.logical_not(mask_bool.reshape(N * S))    # (N*S,)
    allowed = same_batch & not_padded[None, :]
    bias = jnp.where(allowed, 0.0, NEG_INF).astype(jnp.float32)
    return jnp.tile(bias, (N_HEADS, 1))                       # (H*N*S, N*S)


@jax.jit
def transformer_block_forward(x_sne, mask_bool, layer_params):
    """Mirrors TransformerBlock.forward(x, mask).  x: (S, N, E), mask: (N, S) bool."""
    S, N, E = x_sne.shape
    M = N * S
    x = jnp.transpose(x_sne, (1, 0, 2)).reshape(M, E).astype(jnp.float32)
    attn_bias = _attention_bias(mask_bool)
    packed = _pack_params(layer_params)

    in_specs = [_full_spec(tuple(x.shape)), _full_spec(tuple(attn_bias.shape))]
    in_specs += [_full_spec(tuple(a.shape)) for a in packed]

    out = pl.pallas_call(
        _fused_encoder_kernel,
        out_shape=jax.ShapeDtypeStruct((M, E), jnp.float32),
        grid_spec=pltpu.PrefetchScalarGridSpec(
            num_scalar_prefetch=0,
            grid=(1,),
            in_specs=in_specs,
            out_specs=_full_spec((M, E)),
        ),
        compiler_params=pltpu.CompilerParams(
            dimension_semantics=("arbitrary",),
            vmem_limit_bytes=16 << 20,   # footprint ~5 MiB; safe on v5e/v6e/v7x
        ),
    )(x, attn_bias, *packed)

    return jnp.transpose(out.reshape(N, S, E), (1, 0, 2))     # back to (S, N, E)


# ---------------------------------------------------------------------------
# parameters (deterministic synthetic init, PyTorch weight shapes)
# ---------------------------------------------------------------------------
def _init_layer(key):
    ks = jax.random.split(key, 12)
    s = 0.05
    return dict(
        wqkv=jax.random.normal(ks[0], (3 * D_MODEL, D_MODEL), jnp.float32) * s,
        bqkv=jax.random.normal(ks[1], (3 * D_MODEL,), jnp.float32) * s,
        wo=jax.random.normal(ks[2], (D_MODEL, D_MODEL), jnp.float32) * s,
        bo=jax.random.normal(ks[3], (D_MODEL,), jnp.float32) * s,
        w1=jax.random.normal(ks[4], (DIM_FF, D_MODEL), jnp.float32) * s,
        b1=jax.random.normal(ks[5], (DIM_FF,), jnp.float32) * s,
        w2=jax.random.normal(ks[6], (D_MODEL, DIM_FF), jnp.float32) * s,
        b2=jax.random.normal(ks[7], (D_MODEL,), jnp.float32) * s,
        g1=1.0 + jax.random.normal(ks[8], (D_MODEL,), jnp.float32) * 0.01,
        be1=jax.random.normal(ks[9], (D_MODEL,), jnp.float32) * 0.01,
        g2=1.0 + jax.random.normal(ks[10], (D_MODEL,), jnp.float32) * 0.01,
        be2=jax.random.normal(ks[11], (D_MODEL,), jnp.float32) * 0.01,
    )


# ---------------------------------------------------------------------------
# pure-JAX reference (eval-mode PyTorch TransformerEncoderLayer semantics)
# ---------------------------------------------------------------------------
def _layernorm_ref(x, g, b):
    mu = jnp.mean(x, axis=-1, keepdims=True)
    var = jnp.mean((x - mu) ** 2, axis=-1, keepdims=True)
    return (x - mu) * jax.lax.rsqrt(var + LN_EPS) * g + b


def _ref_layer(x, mask_bool, p):
    N, S, E = x.shape
    qkv = jnp.einsum("nse,fe->nsf", x, p["wqkv"], precision=_HI) + p["bqkv"]
    q, k, v = jnp.split(qkv, 3, axis=-1)

    def heads(t):
        return t.reshape(N, S, N_HEADS, HEAD_DIM).transpose(0, 2, 1, 3)

    q, k, v = heads(q), heads(k), heads(v)
    scores = jnp.einsum("nhqd,nhkd->nhqk", q, k, precision=_HI) / math.sqrt(HEAD_DIM)
    scores = scores + jnp.where(mask_bool, NEG_INF, 0.0)[:, None, None, :]
    pa = jax.nn.softmax(scores, axis=-1)
    o = jnp.einsum("nhqk,nhkd->nhqd", pa, v, precision=_HI)
    o = o.transpose(0, 2, 1, 3).reshape(N, S, E)
    o = jnp.einsum("nse,fe->nsf", o, p["wo"], precision=_HI) + p["bo"]

    y = _layernorm_ref(x + o, p["g1"], p["be1"])
    h = jax.nn.relu(jnp.einsum("nse,fe->nsf", y, p["w1"], precision=_HI) + p["b1"])
    ff = jnp.einsum("nsf,ef->nse", h, p["w2"], precision=_HI) + p["b2"]
    return _layernorm_ref(y + ff, p["g2"], p["be2"])


def transformer_block_ref(x_sne, mask_bool, layer_params):
    x = jnp.transpose(x_sne, (1, 0, 2)).astype(jnp.float32)
    for p in layer_params:
        x = _ref_layer(x, mask_bool, p)
    return jnp.transpose(x, (1, 0, 2))


# ---------------------------------------------------------------------------
if __name__ == "__main__":
    key = jax.random.PRNGKey(0)
    key_x, key_p = jax.random.split(key)

    # PyTorch convention: x is (S, N, E), key-padding mask is (N, S) bool.
    x = jax.random.normal(key_x, (SEQ, BATCH, D_MODEL), jnp.float32)
    mask = jnp.zeros((BATCH, SEQ), jnp.bool_)
    mask = mask.at[1, SEQ - 2:].set(True)     # pad last 2 positions of batch 1

    layer_params = [_init_layer(k) for k in jax.random.split(key_p, N_LAYERS)]

    out = jax.block_until_ready(transformer_block_forward(x, mask, layer_params))
    ref = jax.block_until_ready(transformer_block_ref(x, mask, layer_params))

    assert out.shape == x.shape, (out.shape, x.shape)
    # Kernel matmuls use default MXU precision (single-pass bf16 products,
    # f32 accumulate) per the perf review; reference uses HIGHEST f32, so a
    # slightly looser tolerance than pure-f32-vs-f32 is appropriate.
    max_err = float(jnp.max(jnp.abs(out - ref)))
    assert max_err < 2e-2, f"max abs error too large: {max_err}"

    print("KERNEL_OK")
</pallas_src>

<mosaic_0001>
module attributes {stable_mosaic.version = 11 : i64} {
  func.func @_fused_encoder_kernel(%arg0: i32, %arg1: memref<16x32xf32, #tpu.memory_space<vmem>>, %arg2: memref<64x16xf32, #tpu.memory_space<vmem>>, %arg3: memref<2x32x96xf32, #tpu.memory_space<vmem>>, %arg4: memref<2x1x96xf32, #tpu.memory_space<vmem>>, %arg5: memref<2x32x32xf32, #tpu.memory_space<vmem>>, %arg6: memref<2x32x2048xf32, #tpu.memory_space<vmem>>, %arg7: memref<2x1x2048xf32, #tpu.memory_space<vmem>>, %arg8: memref<2x2048x32xf32, #tpu.memory_space<vmem>>, %arg9: memref<2x6x32xf32, #tpu.memory_space<vmem>>, %arg10: memref<16x32xf32, #tpu.memory_space<vmem>>) attributes {dimension_semantics = [#tpu.dimension_semantics<arbitrary>], iteration_bounds = array<i64: 1>, scalar_prefetch = 0 : i64, scratch_operands = 0 : i64, tpu.core_type = #tpu.core_type<tc>, window_params = [{pipeline_mode = #tpu.pipeline_mode<synchronous>, transform_indices = @transform_0, window_bounds = array<i64: 16, 32>}, {pipeline_mode = #tpu.pipeline_mode<synchronous>, transform_indices = @transform_1, window_bounds = array<i64: 64, 16>}, {pipeline_mode = #tpu.pipeline_mode<synchronous>, transform_indices = @transform_2, window_bounds = array<i64: 2, 32, 96>}, {pipeline_mode = #tpu.pipeline_mode<synchronous>, transform_indices = @transform_3, window_bounds = array<i64: 2, 1, 96>}, {pipeline_mode = #tpu.pipeline_mode<synchronous>, transform_indices = @transform_4, window_bounds = array<i64: 2, 32, 32>}, {pipeline_mode = #tpu.pipeline_mode<synchronous>, transform_indices = @transform_5, window_bounds = array<i64: 2, 32, 2048>}, {pipeline_mode = #tpu.pipeline_mode<synchronous>, transform_indices = @transform_6, window_bounds = array<i64: 2, 1, 2048>}, {pipeline_mode = #tpu.pipeline_mode<synchronous>, transform_indices = @transform_7, window_bounds = array<i64: 2, 2048, 32>}, {pipeline_mode = #tpu.pipeline_mode<synchronous>, transform_indices = @transform_8, window_bounds = array<i64: 2, 6, 32>}, {pipeline_mode = #tpu.pipeline_mode<synchronous>, transform_indices = @transform_9, window_bounds = array<i64: 16, 32>}]} {
    %c0 = arith.constant 0 : index
    %c0_0 = arith.constant 0 : index
    %0 = vector.load %arg1[%c0, %c0_0] : memref<16x32xf32, #tpu.memory_space<vmem>>, vector<16x32xf32>
    %c0_1 = arith.constant 0 : index
    %c0_2 = arith.constant 0 : index
    %1 = vector.load %arg2[%c0_1, %c0_2] : memref<64x16xf32, #tpu.memory_space<vmem>>, vector<64x16xf32>
    %2 = tpu.iota {dimensions = array<i32: 1>} : vector<1x32xi32>
    %c0_i32 = arith.constant 0 : i32
    %3 = vector.broadcast %c0_i32 : i32 to vector<1x32xi32>
    %4 = arith.cmpi sge, %2, %3 : vector<1x32xi32>
    %c8_i32 = arith.constant 8 : i32
    %5 = vector.broadcast %c8_i32 : i32 to vector<1x32xi32>
    %6 = arith.cmpi slt, %2, %5 : vector<1x32xi32>
    %7 = arith.andi %4, %6 : vector<1x32xi1>
    %8 = arith.extui %7 : vector<1x32xi1> to vector<1x32xi32>
    %9 = arith.sitofp %8 : vector<1x32xi32> to vector<1x32xf32>
    %c8_i32_3 = arith.constant 8 : i32
    %10 = vector.broadcast %c8_i32_3 : i32 to vector<1x32xi32>
    %11 = arith.cmpi sge, %2, %10 : vector<1x32xi32>
    %c16_i32 = arith.constant 16 : i32
    %12 = vector.broadcast %c16_i32 : i32 to vector<1x32xi32>
    %13 = arith.cmpi slt, %2, %12 : vector<1x32xi32>
    %14 = arith.andi %11, %13 : vector<1x32xi1>
    %15 = arith.extui %14 : vector<1x32xi1> to vector<1x32xi32>
    %16 = arith.sitofp %15 : vector<1x32xi32> to vector<1x32xf32>
    %c16_i32_4 = arith.constant 16 : i32
    %17 = vector.broadcast %c16_i32_4 : i32 to vector<1x32xi32>
    %18 = arith.cmpi sge, %2, %17 : vector<1x32xi32>
    %c24_i32 = arith.constant 24 : i32
    %19 = vector.broadcast %c24_i32 : i32 to vector<1x32xi32>
    %20 = arith.cmpi slt, %2, %19 : vector<1x32xi32>
    %21 = arith.andi %18, %20 : vector<1x32xi1>
    %22 = arith.extui %21 : vector<1x32xi1> to vector<1x32xi32>
    %23 = arith.sitofp %22 : vector<1x32xi32> to vector<1x32xf32>
    %c24_i32_5 = arith.constant 24 : i32
    %24 = vector.broadcast %c24_i32_5 : i32 to vector<1x32xi32>
    %25 = arith.cmpi sge, %2, %24 : vector<1x32xi32>
    %c32_i32 = arith.constant 32 : i32
    %26 = vector.broadcast %c32_i32 : i32 to vector<1x32xi32>
    %27 = arith.cmpi slt, %2, %26 : vector<1x32xi32>
    %28 = arith.andi %25, %27 : vector<1x32xi1>
    %29 = arith.extui %28 : vector<1x32xi1> to vector<1x32xi32>
    %30 = arith.sitofp %29 : vector<1x32xi32> to vector<1x32xf32>
    %c0_6 = arith.constant 0 : index
    %c0_7 = arith.constant 0 : index
    %c0_8 = arith.constant 0 : index
    %31 = vector.load %arg3[%c0_6, %c0_7, %c0_8] : memref<2x32x96xf32, #tpu.memory_space<vmem>>, vector<1x32x96xf32>
    %32 = vector.shape_cast %31 : vector<1x32x96xf32> to vector<32x96xf32>
    %c0_9 = arith.constant 0 : index
    %c0_10 = arith.constant 0 : index
    %c0_11 = arith.constant 0 : index
    %33 = vector.load %arg4[%c0_9, %c0_10, %c0_11] : memref<2x1x96xf32, #tpu.memory_space<vmem>>, vector<1x1x96xf32>
    %34 = vector.shape_cast %33 : vector<1x1x96xf32> to vector<1x96xf32>
    %c0_12 = arith.constant 0 : index
    %c0_13 = arith.constant 0 : index
    %c0_14 = arith.constant 0 : index
    %35 = vector.load %arg5[%c0_12, %c0_13, %c0_14] : memref<2x32x32xf32, #tpu.memory_space<vmem>>, vector<1x32x32xf32>
    %36 = vector.shape_cast %35 : vector<1x32x32xf32> to vector<32x32xf32>
    %c0_15 = arith.constant 0 : index
    %c0_16 = arith.constant 0 : index
    %c0_17 = arith.constant 0 : index
    %37 = vector.load %arg6[%c0_15, %c0_16, %c0_17] : memref<2x32x2048xf32, #tpu.memory_space<vmem>>, vector<1x32x2048xf32>
    %38 = vector.shape_cast %37 : vector<1x32x2048xf32> to vector<32x2048xf32>
    %c0_18 = arith.constant 0 : index
    %c0_19 = arith.constant 0 : index
    %c0_20 = arith.constant 0 : index
    %39 = vector.load %arg7[%c0_18, %c0_19, %c0_20] : memref<2x1x2048xf32, #tpu.memory_space<vmem>>, vector<1x1x2048xf32>
    %40 = vector.shape_cast %39 : vector<1x1x2048xf32> to vector<1x2048xf32>
    %c0_21 = arith.constant 0 : index
    %c0_22 = arith.constant 0 : index
    %c0_23 = arith.constant 0 : index
    %41 = vector.load %arg8[%c0_21, %c0_22, %c0_23] : memref<2x2048x32xf32, #tpu.memory_space<vmem>>, vector<1x2048x32xf32>
    %42 = vector.shape_cast %41 : vector<1x2048x32xf32> to vector<2048x32xf32>
    %c0_24 = arith.constant 0 : index
    %c0_25 = arith.constant 0 : index
    %c0_26 = arith.constant 0 : index
    %43 = vector.load %arg9[%c0_24, %c0_25, %c0_26] : memref<2x6x32xf32, #tpu.memory_space<vmem>>, vector<1x6x32xf32>
    %44 = vector.shape_cast %43 : vector<1x6x32xf32> to vector<6x32xf32>
    %45 = vector.extract_strided_slice %44 {offsets = [0, 0], sizes = [1, 32], strides = [1, 1]} : vector<6x32xf32> to vector<1x32xf32>
    %46 = vector.extract_strided_slice %44 {offsets = [1, 0], sizes = [1, 32], strides = [1, 1]} : vector<6x32xf32> to vector<1x32xf32>
    %47 = vector.extract_strided_slice %44 {offsets = [2, 0], sizes = [1, 32], strides = [1, 1]} : vector<6x32xf32> to vector<1x32xf32>
    %48 = vector.extract_strided_slice %44 {offsets = [3, 0], sizes = [1, 32], strides = [1, 1]} : vector<6x32xf32> to vector<1x32xf32>
    %49 = vector.extract_strided_slice %44 {offsets = [4, 0], sizes = [1, 32], strides = [1, 1]} : vector<6x32xf32> to vector<1x32xf32>
    %50 = vector.extract_strided_slice %44 {offsets = [5, 0], sizes = [1, 32], strides = [1, 1]} : vector<6x32xf32> to vector<1x32xf32>
    %cst = arith.constant dense<0.000000e+00> : vector<16x96xf32>
    %51 = tpu.matmul %0, %32, %cst {dimension_numbers = #tpu.dot_dimension_numbers<[1], [0], [0], [1], [0, 0, 1, 1], [], []>} : vector<16x32xf32>, vector<32x96xf32>, vector<16x96xf32> -> vector<16x96xf32>
    %52 = vector.broadcast %34 : vector<1x96xf32> to vector<16x96xf32>
    %53 = arith.addf %51, %52 : vector<16x96xf32>
    %54 = vector.extract_strided_slice %53 {offsets = [0, 0], sizes = [16, 32], strides = [1, 1]} : vector<16x96xf32> to vector<16x32xf32>
    %cst_27 = arith.constant 0.353553385 : f32
    %55 = vector.broadcast %cst_27 : f32 to vector<16x32xf32>
    %56 = arith.mulf %54, %55 : vector<16x32xf32>
    %57 = vector.extract_strided_slice %53 {offsets = [0, 32], sizes = [16, 32], strides = [1, 1]} : vector<16x96xf32> to vector<16x32xf32>
    %58 = vector.extract_strided_slice %53 {offsets = [0, 64], sizes = [16, 32], strides = [1, 1]} : vector<16x96xf32> to vector<16x32xf32>
    %59 = vector.broadcast %9 : vector<1x32xf32> to vector<16x32xf32>
    %60 = arith.mulf %56, %59 : vector<16x32xf32>
    %61 = vector.broadcast %16 : vector<1x32xf32> to vector<16x32xf32>
    %62 = arith.mulf %56, %61 : vector<16x32xf32>
    %63 = vector.broadcast %23 : vector<1x32xf32> to vector<16x32xf32>
    %64 = arith.mulf %56, %63 : vector<16x32xf32>
    %65 = vector.broadcast %30 : vector<1x32xf32> to vector<16x32xf32>
    %66 = arith.mulf %56, %65 : vector<16x32xf32>
    %67 = tpu.concatenate %60, %62, %64, %66 in 0 : vector<16x32xf32>, vector<16x32xf32>, vector<16x32xf32>, vector<16x32xf32> -> vector<64x32xf32>
    %cst_28 = arith.constant dense<0.000000e+00> : vector<64x16xf32>
    %68 = tpu.matmul %67, %57, %cst_28 {dimension_numbers = #tpu.dot_dimension_numbers<[1], [1], [0], [0], [0, 0, 1, 0], [], []>} : vector<64x32xf32>, vector<16x32xf32>, vector<64x16xf32> -> vector<64x16xf32>
    %69 = arith.addf %68, %1 : vector<64x16xf32>
    %cst_29 = arith.constant dense<0xFF800000> : vector<64xf32>
    %70 = vector.multi_reduction <maximumf>, %69, %cst_29 [1] : vector<64x16xf32> to vector<64xf32>
    %71 = vector.shape_cast %70 : vector<64xf32> to vector<64x1xf32>
    %72 = vector.broadcast %71 : vector<64x1xf32> to vector<64x16xf32>
    %73 = arith.subf %69, %72 : vector<64x16xf32>
    %74 = math.exp %73 : vector<64x16xf32>
    %cst_30 = arith.constant dense<0.000000e+00> : vector<64xf32>
    %75 = vector.multi_reduction <add>, %74, %cst_30 [1] : vector<64x16xf32> to vector<64xf32>
    %76 = vector.shape_cast %75 : vector<64xf32> to vector<64x1xf32>
    %77 = tpu.reciprocal %76 {approx = true} : vector<64x1xf32> -> vector<64x1xf32>
    %78 = vector.broadcast %77 : vector<64x1xf32> to vector<64x16xf32>
    %79 = arith.mulf %74, %78 : vector<64x16xf32>
    %cst_31 = arith.constant dense<0.000000e+00> : vector<64x32xf32>
    %80 = tpu.matmul %79, %58, %cst_31 {dimension_numbers = #tpu.dot_dimension_numbers<[1], [0], [0], [1], [0, 0, 1, 1], [], []>} : vector<64x16xf32>, vector<16x32xf32>, vector<64x32xf32> -> vector<64x32xf32>
    %81 = vector.extract_strided_slice %80 {offsets = [0, 0], sizes = [16, 32], strides = [1, 1]} : vector<64x32xf32> to vector<16x32xf32>
    %82 = vector.broadcast %9 : vector<1x32xf32> to vector<16x32xf32>
    %83 = arith.mulf %82, %81 : vector<16x32xf32>
    %84 = vector.extract_strided_slice %80 {offsets = [16, 0], sizes = [16, 32], strides = [1, 1]} : vector<64x32xf32> to vector<16x32xf32>
    %85 = vector.broadcast %16 : vector<1x32xf32> to vector<16x32xf32>
    %86 = arith.mulf %85, %84 : vector<16x32xf32>
    %87 = arith.addf %83, %86 : vector<16x32xf32>
    %88 = vector.extract_strided_slice %80 {offsets = [32, 0], sizes = [16, 32], strides = [1, 1]} : vector<64x32xf32> to vector<16x32xf32>
    %89 = vector.broadcast %23 : vector<1x32xf32> to vector<16x32xf32>
    %90 = arith.mulf %89, %88 : vector<16x32xf32>
    %91 = arith.addf %87, %90 : vector<16x32xf32>
    %92 = vector.extract_strided_slice %80 {offsets = [48, 0], sizes = [16, 32], strides = [1, 1]} : vector<64x32xf32> to vector<16x32xf32>
    %93 = vector.broadcast %30 : vector<1x32xf32> to vector<16x32xf32>
    %94 = arith.mulf %93, %92 : vector<16x32xf32>
    %95 = arith.addf %91, %94 : vector<16x32xf32>
    %cst_32 = arith.constant dense<0.000000e+00> : vector<16x32xf32>
    %96 = tpu.matmul %95, %36, %cst_32 {dimension_numbers = #tpu.dot_dimension_numbers<[1], [0], [0], [1], [0, 0, 1, 1], [], []>} : vector<16x32xf32>, vector<32x32xf32>, vector<16x32xf32> -> vector<16x32xf32>
    %97 = vector.broadcast %45 : vector<1x32xf32> to vector<16x32xf32>
    %98 = arith.addf %96, %97 : vector<16x32xf32>
    %99 = arith.addf %0, %98 : vector<16x32xf32>
    %cst_33 = arith.constant dense<0.000000e+00> : vector<16xf32>
    %100 = vector.multi_reduction <add>, %99, %cst_33 [1] : vector<16x32xf32> to vector<16xf32>
    %101 = vector.shape_cast %100 : vector<16xf32> to vector<16x1xf32>
    %cst_34 = arith.constant 3.200000e+01 : f32
    %102 = vector.broadcast %cst_34 : f32 to vector<16x1xf32>
    %103 = arith.divf %101, %102 : vector<16x1xf32>
    %104 = vector.broadcast %103 : vector<16x1xf32> to vector<16x32xf32>
    %105 = arith.subf %99, %104 : vector<16x32xf32>
    %106 = arith.mulf %105, %105 : vector<16x32xf32>
    %cst_35 = arith.constant dense<0.000000e+00> : vector<16xf32>
    %107 = vector.multi_reduction <add>, %106, %cst_35 [1] : vector<16x32xf32> to vector<16xf32>
    %108 = vector.shape_cast %107 : vector<16xf32> to vector<16x1xf32>
    %cst_36 = arith.constant 3.200000e+01 : f32
    %109 = vector.broadcast %cst_36 : f32 to vector<16x1xf32>
    %110 = arith.divf %108, %109 : vector<16x1xf32>
    %cst_37 = arith.constant 9.99999974E-6 : f32
    %111 = vector.broadcast %cst_37 : f32 to vector<16x1xf32>
    %112 = arith.addf %110, %111 : vector<16x1xf32>
    %113 = math.rsqrt %112 : vector<16x1xf32>
    %114 = vector.broadcast %113 : vector<16x1xf32> to vector<16x32xf32>
    %115 = arith.mulf %105, %114 : vector<16x32xf32>
    %116 = vector.broadcast %47 : vector<1x32xf32> to vector<16x32xf32>
    %117 = arith.mulf %115, %116 : vector<16x32xf32>
    %118 = vector.broadcast %48 : vector<1x32xf32> to vector<16x32xf32>
    %119 = arith.addf %117, %118 : vector<16x32xf32>
    %cst_38 = arith.constant dense<0.000000e+00> : vector<16x2048xf32>
    %120 = tpu.matmul %119, %38, %cst_38 {dimension_numbers = #tpu.dot_dimension_numbers<[1], [0], [0], [1], [0, 0, 1, 1], [], []>} : vector<16x32xf32>, vector<32x2048xf32>, vector<16x2048xf32> -> vector<16x2048xf32>
    %121 = vector.broadcast %40 : vector<1x2048xf32> to vector<16x2048xf32>
    %122 = arith.addf %120, %121 : vector<16x2048xf32>
    %cst_39 = arith.constant 0.000000e+00 : f32
    %123 = vector.broadcast %cst_39 : f32 to vector<16x2048xf32>
    %124 = arith.maximumf %122, %123 : vector<16x2048xf32>
    %cst_40 = arith.constant dense<0.000000e+00> : vector<16x32xf32>
    %125 = tpu.matmul %124, %42, %cst_40 {dimension_numbers = #tpu.dot_dimension_numbers<[1], [0], [0], [1], [0, 0, 1, 1], [], []>} : vector<16x2048xf32>, vector<2048x32xf32>, vector<16x32xf32> -> vector<16x32xf32>
    %126 = vector.broadcast %46 : vector<1x32xf32> to vector<16x32xf32>
    %127 = arith.addf %125, %126 : vector<16x32xf32>
    %128 = arith.addf %119, %127 : vector<16x32xf32>
    %cst_41 = arith.constant dense<0.000000e+00> : vector<16xf32>
    %129 = vector.multi_reduction <add>, %128, %cst_41 [1] : vector<16x32xf32> to vector<16xf32>
    %130 = vector.shape_cast %129 : vector<16xf32> to vector<16x1xf32>
    %cst_42 = arith.constant 3.200000e+01 : f32
    %131 = vector.broadcast %cst_42 : f32 to vector<16x1xf32>
    %132 = arith.divf %130, %131 : vector<16x1xf32>
    %133 = vector.broadcast %132 : vector<16x1xf32> to vector<16x32xf32>
    %134 = arith.subf %128, %133 : vector<16x32xf32>
    %135 = arith.mulf %134, %134 : vector<16x32xf32>
    %cst_43 = arith.constant dense<0.000000e+00> : vector<16xf32>
    %136 = vector.multi_reduction <add>, %135, %cst_43 [1] : vector<16x32xf32> to vector<16xf32>
    %137 = vector.shape_cast %136 : vector<16xf32> to vector<16x1xf32>
    %cst_44 = arith.constant 3.200000e+01 : f32
    %138 = vector.broadcast %cst_44 : f32 to vector<16x1xf32>
    %139 = arith.divf %137, %138 : vector<16x1xf32>
    %cst_45 = arith.constant 9.99999974E-6 : f32
    %140 = vector.broadcast %cst_45 : f32 to vector<16x1xf32>
    %141 = arith.addf %139, %140 : vector<16x1xf32>
    %142 = math.rsqrt %141 : vector<16x1xf32>
    %143 = vector.broadcast %142 : vector<16x1xf32> to vector<16x32xf32>
    %144 = arith.mulf %134, %143 : vector<16x32xf32>
    %145 = vector.broadcast %49 : vector<1x32xf32> to vector<16x32xf32>
    %146 = arith.mulf %144, %145 : vector<16x32xf32>
    %147 = vector.broadcast %50 : vector<1x32xf32> to vector<16x32xf32>
    %148 = arith.addf %146, %147 : vector<16x32xf32>
    %c1 = arith.constant 1 : index
    %c0_46 = arith.constant 0 : index
    %c0_47 = arith.constant 0 : index
    %149 = vector.load %arg3[%c1, %c0_46, %c0_47] : memref<2x32x96xf32, #tpu.memory_space<vmem>>, vector<1x32x96xf32>
    %150 = vector.shape_cast %149 : vector<1x32x96xf32> to vector<32x96xf32>
    %c1_48 = arith.constant 1 : index
    %c0_49 = arith.constant 0 : index
    %c0_50 = arith.constant 0 : index
    %151 = vector.load %arg4[%c1_48, %c0_49, %c0_50] : memref<2x1x96xf32, #tpu.memory_space<vmem>>, vector<1x1x96xf32>
    %152 = vector.shape_cast %151 : vector<1x1x96xf32> to vector<1x96xf32>
    %c1_51 = arith.constant 1 : index
    %c0_52 = arith.constant 0 : index
    %c0_53 = arith.constant 0 : index
    %153 = vector.load %arg5[%c1_51, %c0_52, %c0_53] : memref<2x32x32xf32, #tpu.memory_space<vmem>>, vector<1x32x32xf32>
    %154 = vector.shape_cast %153 : vector<1x32x32xf32> to vector<32x32xf32>
    %c1_54 = arith.constant 1 : index
    %c0_55 = arith.constant 0 : index
    %c0_56 = arith.constant 0 : index
    %155 = vector.load %arg6[%c1_54, %c0_55, %c0_56] : memref<2x32x2048xf32, #tpu.memory_space<vmem>>, vector<1x32x2048xf32>
    %156 = vector.shape_cast %155 : vector<1x32x2048xf32> to vector<32x2048xf32>
    %c1_57 = arith.constant 1 : index
    %c0_58 = arith.constant 0 : index
    %c0_59 = arith.constant 0 : index
    %157 = vector.load %arg7[%c1_57, %c0_58, %c0_59] : memref<2x1x2048xf32, #tpu.memory_space<vmem>>, vector<1x1x2048xf32>
    %158 = vector.shape_cast %157 : vector<1x1x2048xf32> to vector<1x2048xf32>
    %c1_60 = arith.constant 1 : index
    %c0_61 = arith.constant 0 : index
    %c0_62 = arith.constant 0 : index
    %159 = vector.load %arg8[%c1_60, %c0_61, %c0_62] : memref<2x2048x32xf32, #tpu.memory_space<vmem>>, vector<1x2048x32xf32>
    %160 = vector.shape_cast %159 : vector<1x2048x32xf32> to vector<2048x32xf32>
    %c1_63 = arith.constant 1 : index
    %c0_64 = arith.constant 0 : index
    %c0_65 = arith.constant 0 : index
    %161 = vector.load %arg9[%c1_63, %c0_64, %c0_65] : memref<2x6x32xf32, #tpu.memory_space<vmem>>, vector<1x6x32xf32>
    %162 = vector.shape_cast %161 : vector<1x6x32xf32> to vector<6x32xf32>
    %163 = vector.extract_strided_slice %162 {offsets = [0, 0], sizes = [1, 32], strides = [1, 1]} : vector<6x32xf32> to vector<1x32xf32>
    %164 = vector.extract_strided_slice %162 {offsets = [1, 0], sizes = [1, 32], strides = [1, 1]} : vector<6x32xf32> to vector<1x32xf32>
    %165 = vector.extract_strided_slice %162 {offsets = [2, 0], sizes = [1, 32], strides = [1, 1]} : vector<6x32xf32> to vector<1x32xf32>
    %166 = vector.extract_strided_slice %162 {offsets = [3, 0], sizes = [1, 32], strides = [1, 1]} : vector<6x32xf32> to vector<1x32xf32>
    %167 = vector.extract_strided_slice %162 {offsets = [4, 0], sizes = [1, 32], strides = [1, 1]} : vector<6x32xf32> to vector<1x32xf32>
    %168 = vector.extract_strided_slice %162 {offsets = [5, 0], sizes = [1, 32], strides = [1, 1]} : vector<6x32xf32> to vector<1x32xf32>
    %cst_66 = arith.constant dense<0.000000e+00> : vector<16x96xf32>
    %169 = tpu.matmul %148, %150, %cst_66 {dimension_numbers = #tpu.dot_dimension_numbers<[1], [0], [0], [1], [0, 0, 1, 1], [], []>} : vector<16x32xf32>, vector<32x96xf32>, vector<16x96xf32> -> vector<16x96xf32>
    %170 = vector.broadcast %152 : vector<1x96xf32> to vector<16x96xf32>
    %171 = arith.addf %169, %170 : vector<16x96xf32>
    %172 = vector.extract_strided_slice %171 {offsets = [0, 0], sizes = [16, 32], strides = [1, 1]} : vector<16x96xf32> to vector<16x32xf32>
    %cst_67 = arith.constant 0.353553385 : f32
    %173 = vector.broadcast %cst_67 : f32 to vector<16x32xf32>
    %174 = arith.mulf %172, %173 : vector<16x32xf32>
    %175 = vector.extract_strided_slice %171 {offsets = [0, 32], sizes = [16, 32], strides = [1, 1]} : vector<16x96xf32> to vector<16x32xf32>
    %176 = vector.extract_strided_slice %171 {offsets = [0, 64], sizes = [16, 32], strides = [1, 1]} : vector<16x96xf32> to vector<16x32xf32>
    %177 = vector.broadcast %9 : vector<1x32xf32> to vector<16x32xf32>
    %178 = arith.mulf %174, %177 : vector<16x32xf32>
    %179 = vector.broadcast %16 : vector<1x32xf32> to vector<16x32xf32>
    %180 = arith.mulf %174, %179 : vector<16x32xf32>
    %181 = vector.broadcast %23 : vector<1x32xf32> to vector<16x32xf32>
    %182 = arith.mulf %174, %181 : vector<16x32xf32>
    %183 = vector.broadcast %30 : vector<1x32xf32> to vector<16x32xf32>
    %184 = arith.mulf %174, %183 : vector<16x32xf32>
    %185 = tpu.concatenate %178, %180, %182, %184 in 0 : vector<16x32xf32>, vector<16x32xf32>, vector<16x32xf32>, vector<16x32xf32> -> vector<64x32xf32>
    %cst_68 = arith.constant dense<0.000000e+00> : vector<64x16xf32>
    %186 = tpu.matmul %185, %175, %cst_68 {dimension_numbers = #tpu.dot_dimension_numbers<[1], [1], [0], [0], [0, 0, 1, 0], [], []>} : vector<64x32xf32>, vector<16x32xf32>, vector<64x16xf32> -> vector<64x16xf32>
    %187 = arith.addf %186, %1 : vector<64x16xf32>
    %cst_69 = arith.constant dense<0xFF800000> : vector<64xf32>
    %188 = vector.multi_reduction <maximumf>, %187, %cst_69 [1] : vector<64x16xf32> to vector<64xf32>
    %189 = vector.shape_cast %188 : vector<64xf32> to vector<64x1xf32>
    %190 = vector.broadcast %189 : vector<64x1xf32> to vector<64x16xf32>
    %191 = arith.subf %187, %190 : vector<64x16xf32>
    %192 = math.exp %191 : vector<64x16xf32>
    %cst_70 = arith.constant dense<0.000000e+00> : vector<64xf32>
    %193 = vector.multi_reduction <add>, %192, %cst_70 [1] : vector<64x16xf32> to vector<64xf32>
    %194 = vector.shape_cast %193 : vector<64xf32> to vector<64x1xf32>
    %195 = tpu.reciprocal %194 {approx = true} : vector<64x1xf32> -> vector<64x1xf32>
    %196 = vector.broadcast %195 : vector<64x1xf32> to vector<64x16xf32>
    %197 = arith.mulf %192, %196 : vector<64x16xf32>
    %cst_71 = arith.constant dense<0.000000e+00> : vector<64x32xf32>
    %198 = tpu.matmul %197, %176, %cst_71 {dimension_numbers = #tpu.dot_dimension_numbers<[1], [0], [0], [1], [0, 0, 1, 1], [], []>} : vector<64x16xf32>, vector<16x32xf32>, vector<64x32xf32> -> vector<64x32xf32>
    %199 = vector.extract_strided_slice %198 {offsets = [0, 0], sizes = [16, 32], strides = [1, 1]} : vector<64x32xf32> to vector<16x32xf32>
    %200 = vector.broadcast %9 : vector<1x32xf32> to vector<16x32xf32>
    %201 = arith.mulf %200, %199 : vector<16x32xf32>
    %202 = vector.extract_strided_slice %198 {offsets = [16, 0], sizes = [16, 32], strides = [1, 1]} : vector<64x32xf32> to vector<16x32xf32>
    %203 = vector.broadcast %16 : vector<1x32xf32> to vector<16x32xf32>
    %204 = arith.mulf %203, %202 : vector<16x32xf32>
    %205 = arith.addf %201, %204 : vector<16x32xf32>
    %206 = vector.extract_strided_slice %198 {offsets = [32, 0], sizes = [16, 32], strides = [1, 1]} : vector<64x32xf32> to vector<16x32xf32>
    %207 = vector.broadcast %23 : vector<1x32xf32> to vector<16x32xf32>
    %208 = arith.mulf %207, %206 : vector<16x32xf32>
    %209 = arith.addf %205, %208 : vector<16x32xf32>
    %210 = vector.extract_strided_slice %198 {offsets = [48, 0], sizes = [16, 32], strides = [1, 1]} : vector<64x32xf32> to vector<16x32xf32>
    %211 = vector.broadcast %30 : vector<1x32xf32> to vector<16x32xf32>
    %212 = arith.mulf %211, %210 : vector<16x32xf32>
    %213 = arith.addf %209, %212 : vector<16x32xf32>
    %cst_72 = arith.constant dense<0.000000e+00> : vector<16x32xf32>
    %214 = tpu.matmul %213, %154, %cst_72 {dimension_numbers = #tpu.dot_dimension_numbers<[1], [0], [0], [1], [0, 0, 1, 1], [], []>} : vector<16x32xf32>, vector<32x32xf32>, vector<16x32xf32> -> vector<16x32xf32>
    %215 = vector.broadcast %163 : vector<1x32xf32> to vector<16x32xf32>
    %216 = arith.addf %214, %215 : vector<16x32xf32>
    %217 = arith.addf %148, %216 : vector<16x32xf32>
    %cst_73 = arith.constant dense<0.000000e+00> : vector<16xf32>
    %218 = vector.multi_reduction <add>, %217, %cst_73 [1] : vector<16x32xf32> to vector<16xf32>
    %219 = vector.shape_cast %218 : vector<16xf32> to vector<16x1xf32>
    %cst_74 = arith.constant 3.200000e+01 : f32
    %220 = vector.broadcast %cst_74 : f32 to vector<16x1xf32>
    %221 = arith.divf %219, %220 : vector<16x1xf32>
    %222 = vector.broadcast %221 : vector<16x1xf32> to vector<16x32xf32>
    %223 = arith.subf %217, %222 : vector<16x32xf32>
    %224 = arith.mulf %223, %223 : vector<16x32xf32>
    %cst_75 = arith.constant dense<0.000000e+00> : vector<16xf32>
    %225 = vector.multi_reduction <add>, %224, %cst_75 [1] : vector<16x32xf32> to vector<16xf32>
    %226 = vector.shape_cast %225 : vector<16xf32> to vector<16x1xf32>
    %cst_76 = arith.constant 3.200000e+01 : f32
    %227 = vector.broadcast %cst_76 : f32 to vector<16x1xf32>
    %228 = arith.divf %226, %227 : vector<16x1xf32>
    %cst_77 = arith.constant 9.99999974E-6 : f32
    %229 = vector.broadcast %cst_77 : f32 to vector<16x1xf32>
    %230 = arith.addf %228, %229 : vector<16x1xf32>
    %231 = math.rsqrt %230 : vector<16x1xf32>
    %232 = vector.broadcast %231 : vector<16x1xf32> to vector<16x32xf32>
    %233 = arith.mulf %223, %232 : vector<16x32xf32>
    %234 = vector.broadcast %165 : vector<1x32xf32> to vector<16x32xf32>
    %235 = arith.mulf %233, %234 : vector<16x32xf32>
    %236 = vector.broadcast %166 : vector<1x32xf32> to vector<16x32xf32>
    %237 = arith.addf %235, %236 : vector<16x32xf32>
    %cst_78 = arith.constant dense<0.000000e+00> : vector<16x2048xf32>
    %238 = tpu.matmul %237, %156, %cst_78 {dimension_numbers = #tpu.dot_dimension_numbers<[1], [0], [0], [1], [0, 0, 1, 1], [], []>} : vector<16x32xf32>, vector<32x2048xf32>, vector<16x2048xf32> -> vector<16x2048xf32>
    %239 = vector.broadcast %158 : vector<1x2048xf32> to vector<16x2048xf32>
    %240 = arith.addf %238, %239 : vector<16x2048xf32>
    %cst_79 = arith.constant 0.000000e+00 : f32
    %241 = vector.broadcast %cst_79 : f32 to vector<16x2048xf32>
    %242 = arith.maximumf %240, %241 : vector<16x2048xf32>
    %cst_80 = arith.constant dense<0.000000e+00> : vector<16x32xf32>
    %243 = tpu.matmul %242, %160, %cst_80 {dimension_numbers = #tpu.dot_dimension_numbers<[1], [0], [0], [1], [0, 0, 1, 1], [], []>} : vector<16x2048xf32>, vector<2048x32xf32>, vector<16x32xf32> -> vector<16x32xf32>
    %244 = vector.broadcast %164 : vector<1x32xf32> to vector<16x32xf32>
    %245 = arith.addf %243, %244 : vector<16x32xf32>
    %246 = arith.addf %237, %245 : vector<16x32xf32>
    %cst_81 = arith.constant dense<0.000000e+00> : vector<16xf32>
    %247 = vector.multi_reduction <add>, %246, %cst_81 [1] : vector<16x32xf32> to vector<16xf32>
    %248 = vector.shape_cast %247 : vector<16xf32> to vector<16x1xf32>
    %cst_82 = arith.constant 3.200000e+01 : f32
    %249 = vector.broadcast %cst_82 : f32 to vector<16x1xf32>
    %250 = arith.divf %248, %249 : vector<16x1xf32>
    %251 = vector.broadcast %250 : vector<16x1xf32> to vector<16x32xf32>
    %252 = arith.subf %246, %251 : vector<16x32xf32>
    %253 = arith.mulf %252, %252 : vector<16x32xf32>
    %cst_83 = arith.constant dense<0.000000e+00> : vector<16xf32>
    %254 = vector.multi_reduction <add>, %253, %cst_83 [1] : vector<16x32xf32> to vector<16xf32>
    %255 = vector.shape_cast %254 : vector<16xf32> to vector<16x1xf32>
    %cst_84 = arith.constant 3.200000e+01 : f32
    %256 = vector.broadcast %cst_84 : f32 to vector<16x1xf32>
    %257 = arith.divf %255, %256 : vector<16x1xf32>
    %cst_85 = arith.constant 9.99999974E-6 : f32
    %258 = vector.broadcast %cst_85 : f32 to vector<16x1xf32>
    %259 = arith.addf %257, %258 : vector<16x1xf32>
    %260 = math.rsqrt %259 : vector<16x1xf32>
    %261 = vector.broadcast %260 : vector<16x1xf32> to vector<16x32xf32>
    %262 = arith.mulf %252, %261 : vector<16x32xf32>
    %263 = vector.broadcast %167 : vector<1x32xf32> to vector<16x32xf32>
    %264 = arith.mulf %262, %263 : vector<16x32xf32>
    %265 = vector.broadcast %168 : vector<1x32xf32> to vector<16x32xf32>
    %266 = arith.addf %264, %265 : vector<16x32xf32>
    %c0_86 = arith.constant 0 : index
    %c0_87 = arith.constant 0 : index
    %267 = vector.load %arg10[%c0_86, %c0_87] : memref<16x32xf32, #tpu.memory_space<vmem>>, vector<16x32xf32>
    tpu.vector_store %arg10[%c0_86, %c0_87], %266 {strides = array<i32>} : memref<16x32xf32, #tpu.memory_space<vmem>>, vector<16x32xf32>,
    return
  }
  func.func @transform_0(%arg0: i32) -> (i32, i32) {
    %c0_i32 = arith.constant 0 : i32
    %c0_i32_0 = arith.constant 0 : i32
    %c0_i32_1 = arith.constant 0 : i32
    return %c0_i32, %c0_i32_0 : i32, i32
  }
  func.func @transform_1(%arg0: i32) -> (i32, i32) {
    %c0_i32 = arith.constant 0 : i32
    %c0_i32_0 = arith.constant 0 : i32
    %c0_i32_1 = arith.constant 0 : i32
    return %c0_i32, %c0_i32_0 : i32, i32
  }
  func.func @transform_2(%arg0: i32) -> (i32, i32, i32) {
    %c0_i32 = arith.constant 0 : i32
    %c0_i32_0 = arith.constant 0 : i32
    %c0_i32_1 = arith.constant 0 : i32
    %c0_i32_2 = arith.constant 0 : i32
    return %c0_i32, %c0_i32_0, %c0_i32_1 : i32, i32, i32
  }
  func.func @transform_3(%arg0: i32) -> (i32, i32, i32) {
    %c0_i32 = arith.constant 0 : i32
    %c0_i32_0 = arith.constant 0 : i32
    %c0_i32_1 = arith.constant 0 : i32
    %c0_i32_2 = arith.constant 0 : i32
    return %c0_i32, %c0_i32_0, %c0_i32_1 : i32, i32, i32
  }
  func.func @transform_4(%arg0: i32) -> (i32, i32, i32) {
    %c0_i32 = arith.constant 0 : i32
    %c0_i32_0 = arith.constant 0 : i32
    %c0_i32_1 = arith.constant 0 : i32
    %c0_i32_2 = arith.constant 0 : i32
    return %c0_i32, %c0_i32_0, %c0_i32_1 : i32, i32, i32
  }
  func.func @transform_5(%arg0: i32) -> (i32, i32, i32) {
    %c0_i32 = arith.constant 0 : i32
    %c0_i32_0 = arith.constant 0 : i32
    %c0_i32_1 = arith.constant 0 : i32
    %c0_i32_2 = arith.constant 0 : i32
    return %c0_i32, %c0_i32_0, %c0_i32_1 : i32, i32, i32
  }
  func.func @transform_6(%arg0: i32) -> (i32, i32, i32) {
    %c0_i32 = arith.constant 0 : i32
    %c0_i32_0 = arith.constant 0 : i32
    %c0_i32_1 = arith.constant 0 : i32
    %c0_i32_2 = arith.constant 0 : i32
    return %c0_i32, %c0_i32_0, %c0_i32_1 : i32, i32, i32
  }
  func.func @transform_7(%arg0: i32) -> (i32, i32, i32) {
    %c0_i32 = arith.constant 0 : i32
    %c0_i32_0 = arith.constant 0 : i32
    %c0_i32_1 = arith.constant 0 : i32
    %c0_i32_2 = arith.constant 0 : i32
    return %c0_i32, %c0_i32_0, %c0_i32_1 : i32, i32, i32
  }
  func.func @transform_8(%arg0: i32) -> (i32, i32, i32) {
    %c0_i32 = arith.constant 0 : i32
    %c0_i32_0 = arith.constant 0 : i32
    %c0_i32_1 = arith.constant 0 : i32
    %c0_i32_2 = arith.constant 0 : i32
    return %c0_i32, %c0_i32_0, %c0_i32_1 : i32, i32, i32
  }
  func.func @transform_9(%arg0: i32) -> (i32, i32) {
    %c0_i32 = arith.constant 0 : i32
    %c0_i32_0 = arith.constant 0 : i32
    %c0_i32_1 = arith.constant 0 : i32
    return %c0_i32, %c0_i32_0 : i32, i32
  }
}

</mosaic_0001>

<llo_original>
// kernel: transformer_block_forward.1
$region0: #{transformer_block_forward.1}
  #allocation0 [shape = 'u32[]', space=smem, size = 0x4, offset = 0x4, fixed_abs, tag = 'smem constant byte address 0x4 - core index']
  #allocation1 [shape = 'u32[72,128]{1,0:T(1,128)}', space=vmem, size = 0x9000, scoped, tag = 'internal scratch']
  %s0 = inlined_call_operand.vmem [shape: f32[16,32], index: 0, kind: input, shape index: {}]
  %s1 = inlined_call_operand.vmem [shape: f32[64,16], index: 1, kind: input, shape index: {}]
  %s2 = inlined_call_operand.vmem [shape: f32[2,32,96], index: 2, kind: input, shape index: {}]
  %s3 = inlined_call_operand.vmem [shape: f32[2,1,96], index: 3, kind: input, shape index: {}]
  %s4 = inlined_call_operand.vmem [shape: f32[2,32,32], index: 4, kind: input, shape index: {}]
  %s5 = inlined_call_operand.vmem [shape: f32[2,32,2048], index: 5, kind: input, shape index: {}]
  %s6 = inlined_call_operand.vmem [shape: f32[2,1,2048], index: 6, kind: input, shape index: {}]
  %s7 = inlined_call_operand.vmem [shape: f32[2,2048,32], index: 7, kind: input, shape index: {}]
  %s8 = inlined_call_operand.vmem [shape: f32[2,6,32], index: 8, kind: input, shape index: {}]
  %s9 = inlined_call_operand.vmem [shape: f32[16,32], index: 9, kind: output, shape index: {}]
  %s10 = sld [smem:[#allocation0]]
  $region46: #{transformer_block_forward.1} parent=0
    _
  %s12 = ssub.s32 1, %s10
  %s13 = scalar_select 0, %s12, %s10
  // Predicated region
  $region2: #{transformer_block_forward.1} parent=0 // pred_check
    _
  $region3: #{transformer_block_forward.1} parent=0 // pred_check_branch
    %15 = sbr.rel (0) target = $region5
  $region4: #{transformer_block_forward.1} parent=0 // pred_region
    _
  $region5: #{transformer_block_forward.1} parent=0 // pred_fallthru
    _
  // Predicated region
  $region6: #{transformer_block_forward.1} parent=0 // pred_check
    _
  $region7: #{transformer_block_forward.1} parent=0 // pred_check_branch
    %17 = sbr.rel (0) target = $region9
  $region8: #{transformer_block_forward.1} parent=0 // pred_region
    _
  $region9: #{transformer_block_forward.1} parent=0 // pred_fallthru
    _
  // Predicated region
  $region10: #{transformer_block_forward.1} parent=0 // pred_check
    _
  $region11: #{transformer_block_forward.1} parent=0 // pred_check_branch
    %19 = sbr.rel (0) target = $region13
  $region12: #{transformer_block_forward.1} parent=0 // pred_region
    _
  $region13: #{transformer_block_forward.1} parent=0 // pred_fallthru
    _
  // Predicated region
  $region14: #{transformer_block_forward.1} parent=0 // pred_check
    _
  $region15: #{transformer_block_forward.1} parent=0 // pred_check_branch
    %21 = sbr.rel (0) target = $region17
  $region16: #{transformer_block_forward.1} parent=0 // pred_region
    _
  $region17: #{transformer_block_forward.1} parent=0 // pred_fallthru
    _
  // Predicated region
  $region18: #{transformer_block_forward.1} parent=0 // pred_check
    _
  $region19: #{transformer_block_forward.1} parent=0 // pred_check_branch
    %23 = sbr.rel (0) target = $region21
  $region20: #{transformer_block_forward.1} parent=0 // pred_region
    _
  $region21: #{transformer_block_forward.1} parent=0 // pred_fallthru
    _
  // Predicated region
  $region22: #{transformer_block_forward.1} parent=0 // pred_check
    _
  $region23: #{transformer_block_forward.1} parent=0 // pred_check_branch
    %25 = sbr.rel (0) target = $region25
  $region24: #{transformer_block_forward.1} parent=0 // pred_region
    _
  $region25: #{transformer_block_forward.1} parent=0 // pred_fallthru
    _
  // Predicated region
  $region26: #{transformer_block_forward.1} parent=0 // pred_check
    _
  $region27: #{transformer_block_forward.1} parent=0 // pred_check_branch
    %27 = sbr.rel (0) target = $region29
  $region28: #{transformer_block_forward.1} parent=0 // pred_region
    _
  $region29: #{transformer_block_forward.1} parent=0 // pred_fallthru
    _
  // Predicated region
  $region30: #{transformer_block_forward.1} parent=0 // pred_check
    _
  $region31: #{transformer_block_forward.1} parent=0 // pred_check_branch
    %29 = sbr.rel (0) target = $region33
  $region32: #{transformer_block_forward.1} parent=0 // pred_region
    _
  $region33: #{transformer_block_forward.1} parent=0 // pred_fallthru
    _
  // Predicated region
  $region34: #{transformer_block_forward.1} parent=0 // pred_check
    _
  $region35: #{transformer_block_forward.1} parent=0 // pred_check_branch
    %31 = sbr.rel (0) target = $region37
  $region36: #{transformer_block_forward.1} parent=0 // pred_region
    _
  $region37: #{transformer_block_forward.1} parent=0 // pred_fallthru
    _
  %v32 = vld [vmem:[%s0] sm:$0xff]
  %v33 = vld [vmem:[%s0 + $0x8] sm:$0xff]
  %v34 = vld [vmem:[%s1] sm:$0xff]
  %v35 = vld [vmem:[%s1 + $0x8] sm:$0xff]
  %v36 = vld [vmem:[%s1 + $0x10] sm:$0xff]
  %v37 = vld [vmem:[%s1 + $0x18] sm:$0xff]
  %v38 = vld [vmem:[%s1 + $0x20] sm:$0xff]
  %v39 = vld [vmem:[%s1 + $0x28] sm:$0xff]
  %v40 = vld [vmem:[%s1 + $0x30] sm:$0xff]
  %v41 = vld [vmem:[%s1 + $0x38] sm:$0xff]
  %v42 = vlaneseq
  %v43 = vand.u32 %v42, 127
  %vm44 = vcmp.ge.s32.totalorder %v43, 0
  %vm45 = vcmp.lt.s32.totalorder %v43, 8
  %vm46 = vmand %vm44, %vm45
  %v47 = vsel %vm46, 1, 0
  %v48 = vcvt.s32.f32 %v47
  %vm49 = vcmp.ge.s32.totalorder %v43, 8
  %vm50 = vcmp.lt.s32.totalorder %v43, 16
  %vm51 = vmand %vm49, %vm50
  %v52 = vsel %vm51, 1, 0
  %v53 = vcvt.s32.f32 %v52
  %vm54 = vcmp.ge.s32.totalorder %v43, 16
  %vm55 = vcmp.lt.s32.totalorder %v43, 24
  %vm56 = vmand %vm54, %vm55
  %v57 = vsel %vm56, 1, 0
  %v58 = vcvt.s32.f32 %v57
  %vm59 = vcmp.ge.s32.totalorder %v43, 24
  %vm60 = vcmp.lt.s32.totalorder %v43, 32
  %vm61 = vmand %vm59, %vm60
  %v62 = vsel %vm61, 1, 0
  %v63 = vcvt.s32.f32 %v62
  %v64 = vld [vmem:[%s2] sm:$0xff]
  %v65 = vld [vmem:[%s2 + $0x8] sm:$0xff]
  %v66 = vld [vmem:[%s2 + $0x10] sm:$0xff]
  %v67 = vld [vmem:[%s2 + $0x18] sm:$0xff]
  %v68 = vld [vmem:[%s3] sm:$0x1]
  %v69 = vld [vmem:[%s4] sm:$0xff]
  %v70 = vld [vmem:[%s4 + $0x8] sm:$0xff]
  %v71 = vld [vmem:[%s4 + $0x10] sm:$0xff]
  %v72 = vld [vmem:[%s4 + $0x18] sm:$0xff]
  %v73 = vld [vmem:[%s5] sm:$0xff]
  %v74 = vld [vmem:[%s5 + $0x8] sm:$0xff]
  %v75 = vld [vmem:[%s5 + $0x10] sm:$0xff]
  %v76 = vld [vmem:[%s5 + $0x18] sm:$0xff]
  %v77 = vld [vmem:[%s5 + $0x20] sm:$0xff]
  %v78 = vld [vmem:[%s5 + $0x28] sm:$0xff]
  %v79 = vld [vmem:[%s5 + $0x30] sm:$0xff]
  %v80 = vld [vmem:[%s5 + $0x38] sm:$0xff]
  %v81 = vld [vmem:[%s5 + $0x40] sm:$0xff]
  %v82 = vld [vmem:[%s5 + $0x48] sm:$0xff]
  %v83 = vld [vmem:[%s5 + $0x50] sm:$0xff]
  %v84 = vld [vmem:[%s5 + $0x58] sm:$0xff]
  %v85 = vld [vmem:[%s5 + $0x60] sm:$0xff]
  %v86 = vld [vmem:[%s5 + $0x68] sm:$0xff]
  %v87 = vld [vmem:[%s5 + $0x70] sm:$0xff]
  %v88 = vld [vmem:[%s5 + $0x78] sm:$0xff]
  %v89 = vld [vmem:[%s5 + $0x80] sm:$0xff]
  %v90 = vld [vmem:[%s5 + $0x88] sm:$0xff]
  %v91 = vld [vmem:[%s5 + $0x90] sm:$0xff]
  %v92 = vld [vmem:[%s5 + $0x98] sm:$0xff]
  %v93 = vld [vmem:[%s5 + $0xa0] sm:$0xff]
  %v94 = vld [vmem:[%s5 + $0xa8] sm:$0xff]
  %v95 = vld [vmem:[%s5 + $0xb0] sm:$0xff]
  %v96 = vld [vmem:[%s5 + $0xb8] sm:$0xff]
  %v97 = vld [vmem:[%s5 + $0xc0] sm:$0xff]
  %v98 = vld [vmem:[%s5 + $0xc8] sm:$0xff]
  %v99 = vld [vmem:[%s5 + $0xd0] sm:$0xff]
  %v100 = vld [vmem:[%s5 + $0xd8] sm:$0xff]
  %v101 = vld [vmem:[%s5 + $0xe0] sm:$0xff]
  %v102 = vld [vmem:[%s5 + $0xe8] sm:$0xff]
  %v103 = vld [vmem:[%s5 + $0xf0] sm:$0xff]
  %v104 = vld [vmem:[%s5 + $0xf8] sm:$0xff]
  %v105 = vld [vmem:[%s5 + $0x100] sm:$0xff]
  %v106 = vld [vmem:[%s5 + $0x108] sm:$0xff]
  %v107 = vld [vmem:[%s5 + $0x110] sm:$0xff]
  %v108 = vld [vmem:[%s5 + $0x118] sm:$0xff]
  %v109 = vld [vmem:[%s5 + $0x120] sm:$0xff]
  %v110 = vld [vmem:[%s5 + $0x128] sm:$0xff]
  %v111 = vld [vmem:[%s5 + $0x130] sm:$0xff]
  %v112 = vld [vmem:[%s5 + $0x138] sm:$0xff]
  %v113 = vld [vmem:[%s5 + $0x140] sm:$0xff]
  %v114 = vld [vmem:[%s5 + $0x148] sm:$0xff]
  %v115 = vld [vmem:[%s5 + $0x150] sm:$0xff]
  %v116 = vld [vmem:[%s5 + $0x158] sm:$0xff]
  %v117 = vld [vmem:[%s5 + $0x160] sm:$0xff]
  %v118 = vld [vmem:[%s5 + $0x168] sm:$0xff]
  %v119 = vld [vmem:[%s5 + $0x170] sm:$0xff]
  %v120 = vld [vmem:[%s5 + $0x178] sm:$0xff]
  %v121 = vld [vmem:[%s5 + $0x180] sm:$0xff]
  %v122 = vld [vmem:[%s5 + $0x188] sm:$0xff]
  %v123 = vld [vmem:[%s5 + $0x190] sm:$0xff]
  %v124 = vld [vmem:[%s5 + $0x198] sm:$0xff]
  %v125 = vld [vmem:[%s5 + $0x1a0] sm:$0xff]
  %v126 = vld [vmem:[%s5 + $0x1a8] sm:$0xff]
  %v127 = vld [vmem:[%s5 + $0x1b0] sm:$0xff]
  %v128 = vld [vmem:[%s5 + $0x1b8] sm:$0xff]
  %v129 = vld [vmem:[%s5 + $0x1c0] sm:$0xff]
  %v130 = vld [vmem:[%s5 + $0x1c8] sm:$0xff]
  %v131 = vld [vmem:[%s5 + $0x1d0] sm:$0xff]
  %v132 = vld [vmem:[%s5 + $0x1d8] sm:$0xff]
  %v133 = vld [vmem:[%s5 + $0x1e0] sm:$0xff]
  %v134 = vld [vmem:[%s5 + $0x1e8] sm:$0xff]
  %v135 = vld [vmem:[%s5 + $0x1f0] sm:$0xff]
  %v136 = vld [vmem:[%s5 + $0x1f8] sm:$0xff]
  %v137 = vld [vmem:[%s6] sm:$0xff]
  %v138 = vld [vmem:[%s6 + $0x8] sm:$0xff]
  %v139 = vld [vmem:[%s7] sm:$0xff]
  %v140 = vld [vmem:[%s7 + $0x8] sm:$0xff]
  %v141 = vld [vmem:[%s7 + $0x10] sm:$0xff]
  %v142 = vld [vmem:[%s7 + $0x18] sm:$0xff]
  %v143 = vld [vmem:[%s7 + $0x20] sm:$0xff]
  %v144 = vld [vmem:[%s7 + $0x28] sm:$0xff]
  %v145 = vld [vmem:[%s7 + $0x30] sm:$0xff]
  %v146 = vld [vmem:[%s7 + $0x38] sm:$0xff]
  %v147 = vld [vmem:[%s7 + $0x40] sm:$0xff]
  %v148 = vld [vmem:[%s7 + $0x48] sm:$0xff]
  %v149 = vld [vmem:[%s7 + $0x50] sm:$0xff]
  %v150 = vld [vmem:[%s7 + $0x58] sm:$0xff]
  %v151 = vld [vmem:[%s7 + $0x60] sm:$0xff]
  %v152 = vld [vmem:[%s7 + $0x68] sm:$0xff]
  %v153 = vld [vmem:[%s7 + $0x70] sm:$0xff]
  %v154 = vld [vmem:[%s7 + $0x78] sm:$0xff]
  %v155 = vld [vmem:[%s7 + $0x80] sm:$0xff]
  %v156 = vld [vmem:[%s7 + $0x88] sm:$0xff]
  %v157 = vld [vmem:[%s7 + $0x90] sm:$0xff]
  %v158 = vld [vmem:[%s7 + $0x98] sm:$0xff]
  %v159 = vld [vmem:[%s7 + $0xa0] sm:$0xff]
  %v160 = vld [vmem:[%s7 + $0xa8] sm:$0xff]
  %v161 = vld [vmem:[%s7 + $0xb0] sm:$0xff]
  %v162 = vld [vmem:[%s7 + $0xb8] sm:$0xff]
  %v163 = vld [vmem:[%s7 + $0xc0] sm:$0xff]
  %v164 = vld [vmem:[%s7 + $0xc8] sm:$0xff]
  %v165 = vld [vmem:[%s7 + $0xd0] sm:$0xff]
  %v166 = vld [vmem:[%s7 + $0xd8] sm:$0xff]
  %v167 = vld [vmem:[%s7 + $0xe0] sm:$0xff]
  %v168 = vld [vmem:[%s7 + $0xe8] sm:$0xff]
  %v169 = vld [vmem:[%s7 + $0xf0] sm:$0xff]
  %v170 = vld [vmem:[%s7 + $0xf8] sm:$0xff]
  %v171 = vld [vmem:[%s7 + $0x100] sm:$0xff]
  %v172 = vld [vmem:[%s7 + $0x108] sm:$0xff]
  %v173 = vld [vmem:[%s7 + $0x110] sm:$0xff]
  %v174 = vld [vmem:[%s7 + $0x118] sm:$0xff]
  %v175 = vld [vmem:[%s7 + $0x120] sm:$0xff]
  %v176 = vld [vmem:[%s7 + $0x128] sm:$0xff]
  %v177 = vld [vmem:[%s7 + $0x130] sm:$0xff]
  %v178 = vld [vmem:[%s7 + $0x138] sm:$0xff]
  %v179 = vld [vmem:[%s7 + $0x140] sm:$0xff]
  %v180 = vld [vmem:[%s7 + $0x148] sm:$0xff]
  %v181 = vld [vmem:[%s7 + $0x150] sm:$0xff]
  %v182 = vld [vmem:[%s7 + $0x158] sm:$0xff]
  %v183 = vld [vmem:[%s7 + $0x160] sm:$0xff]
  %v184 = vld [vmem:[%s7 + $0x168] sm:$0xff]
  %v185 = vld [vmem:[%s7 + $0x170] sm:$0xff]
  %v186 = vld [vmem:[%s7 + $0x178] sm:$0xff]
  %v187 = vld [vmem:[%s7 + $0x180] sm:$0xff]
  %v188 = vld [vmem:[%s7 + $0x188] sm:$0xff]
  %v189 = vld [vmem:[%s7 + $0x190] sm:$0xff]
  %v190 = vld [vmem:[%s7 + $0x198] sm:$0xff]
  %v191 = vld [vmem:[%s7 + $0x1a0] sm:$0xff]
  %v192 = vld [vmem:[%s7 + $0x1a8] sm:$0xff]
  %v193 = vld [vmem:[%s7 + $0x1b0] sm:$0xff]
  %v194 = vld [vmem:[%s7 + $0x1b8] sm:$0xff]
  %v195 = vld [vmem:[%s7 + $0x1c0] sm:$0xff]
  %v196 = vld [vmem:[%s7 + $0x1c8] sm:$0xff]
  %v197 = vld [vmem:[%s7 + $0x1d0] sm:$0xff]
  %v198 = vld [vmem:[%s7 + $0x1d8] sm:$0xff]
  %v199 = vld [vmem:[%s7 + $0x1e0] sm:$0xff]
  %v200 = vld [vmem:[%s7 + $0x1e8] sm:$0xff]
  %v201 = vld [vmem:[%s7 + $0x1f0] sm:$0xff]
  %v202 = vld [vmem:[%s7 + $0x1f8] sm:$0xff]
  %v203 = vld [vmem:[%s7 + $0x200] sm:$0xff]
  %v204 = vld [vmem:[%s7 + $0x208] sm:$0xff]
  %v205 = vld [vmem:[%s7 + $0x210] sm:$0xff]
  %v206 = vld [vmem:[%s7 + $0x218] sm:$0xff]
  %v207 = vld [vmem:[%s7 + $0x220] sm:$0xff]
  %v208 = vld [vmem:[%s7 + $0x228] sm:$0xff]
  %v209 = vld [vmem:[%s7 + $0x230] sm:$0xff]
  %v210 = vld [vmem:[%s7 + $0x238] sm:$0xff]
  %v211 = vld [vmem:[%s7 + $0x240] sm:$0xff]
  %v212 = vld [vmem:[%s7 + $0x248] sm:$0xff]
  %v213 = vld [vmem:[%s7 + $0x250] sm:$0xff]
  %v214 = vld [vmem:[%s7 + $0x258] sm:$0xff]
  %v215 = vld [vmem:[%s7 + $0x260] sm:$0xff]
  %v216 = vld [vmem:[%s7 + $0x268] sm:$0xff]
  %v217 = vld [vmem:[%s7 + $0x270] sm:$0xff]
  %v218 = vld [vmem:[%s7 + $0x278] sm:$0xff]
  %v219 = vld [vmem:[%s7 + $0x280] sm:$0xff]
  %v220 = vld [vmem:[%s7 + $0x288] sm:$0xff]
  %v221 = vld [vmem:[%s7 + $0x290] sm:$0xff]
  %v222 = vld [vmem:[%s7 + $0x298] sm:$0xff]
  %v223 = vld [vmem:[%s7 + $0x2a0] sm:$0xff]
  %v224 = vld [vmem:[%s7 + $0x2a8] sm:$0xff]
  %v225 = vld [vmem:[%s7 + $0x2b0] sm:$0xff]
  %v226 = vld [vmem:[%s7 + $0x2b8] sm:$0xff]
  %v227 = vld [vmem:[%s7 + $0x2c0] sm:$0xff]
  %v228 = vld [vmem:[%s7 + $0x2c8] sm:$0xff]
  %v229 = vld [vmem:[%s7 + $0x2d0] sm:$0xff]
  %v230 = vld [vmem:[%s7 + $0x2d8] sm:$0xff]
  %v231 = vld [vmem:[%s7 + $0x2e0] sm:$0xff]
  %v232 = vld [vmem:[%s7 + $0x2e8] sm:$0xff]
  %v233 = vld [vmem:[%s7 + $0x2f0] sm:$0xff]
  %v234 = vld [vmem:[%s7 + $0x2f8] sm:$0xff]
  %v235 = vld [vmem:[%s7 + $0x300] sm:$0xff]
  %v236 = vld [vmem:[%s7 + $0x308] sm:$0xff]
  %v237 = vld [vmem:[%s7 + $0x310] sm:$0xff]
  %v238 = vld [vmem:[%s7 + $0x318] sm:$0xff]
  %v239 = vld [vmem:[%s7 + $0x320] sm:$0xff]
  %v240 = vld [vmem:[%s7 + $0x328] sm:$0xff]
  %v241 = vld [vmem:[%s7 + $0x330] sm:$0xff]
  %v242 = vld [vmem:[%s7 + $0x338] sm:$0xff]
  %v243 = vld [vmem:[%s7 + $0x340] sm:$0xff]
  %v244 = vld [vmem:[%s7 + $0x348] sm:$0xff]
  %v245 = vld [vmem:[%s7 + $0x350] sm:$0xff]
  %v246 = vld [vmem:[%s7 + $0x358] sm:$0xff]
  %v247 = vld [vmem:[%s7 + $0x360] sm:$0xff]
  %v248 = vld [vmem:[%s7 + $0x368] sm:$0xff]
  %v249 = vld [vmem:[%s7 + $0x370] sm:$0xff]
  %v250 = vld [vmem:[%s7 + $0x378] sm:$0xff]
  %v251 = vld [vmem:[%s7 + $0x380] sm:$0xff]
  %v252 = vld [vmem:[%s7 + $0x388] sm:$0xff]
  %v253 = vld [vmem:[%s7 + $0x390] sm:$0xff]
  %v254 = vld [vmem:[%s7 + $0x398] sm:$0xff]
  %v255 = vld [vmem:[%s7 + $0x3a0] sm:$0xff]
  %v256 = vld [vmem:[%s7 + $0x3a8] sm:$0xff]
  %v257 = vld [vmem:[%s7 + $0x3b0] sm:$0xff]
  %v258 = vld [vmem:[%s7 + $0x3b8] sm:$0xff]
  %v259 = vld [vmem:[%s7 + $0x3c0] sm:$0xff]
  %v260 = vld [vmem:[%s7 + $0x3c8] sm:$0xff]
  %v261 = vld [vmem:[%s7 + $0x3d0] sm:$0xff]
  %v262 = vld [vmem:[%s7 + $0x3d8] sm:$0xff]
  %v263 = vld [vmem:[%s7 + $0x3e0] sm:$0xff]
  %v264 = vld [vmem:[%s7 + $0x3e8] sm:$0xff]
  %v265 = vld [vmem:[%s7 + $0x3f0] sm:$0xff]
  %v266 = vld [vmem:[%s7 + $0x3f8] sm:$0xff]
  %v267 = vld [vmem:[%s7 + $0x400] sm:$0xff]
  %v268 = vld [vmem:[%s7 + $0x408] sm:$0xff]
  %v269 = vld [vmem:[%s7 + $0x410] sm:$0xff]
  %v270 = vld [vmem:[%s7 + $0x418] sm:$0xff]
  %v271 = vld [vmem:[%s7 + $0x420] sm:$0xff]
  %v272 = vld [vmem:[%s7 + $0x428] sm:$0xff]
  %v273 = vld [vmem:[%s7 + $0x430] sm:$0xff]
  %v274 = vld [vmem:[%s7 + $0x438] sm:$0xff]
  %v275 = vld [vmem:[%s7 + $0x440] sm:$0xff]
  %v276 = vld [vmem:[%s7 + $0x448] sm:$0xff]
  %v277 = vld [vmem:[%s7 + $0x450] sm:$0xff]
  %v278 = vld [vmem:[%s7 + $0x458] sm:$0xff]
  %v279 = vld [vmem:[%s7 + $0x460] sm:$0xff]
  %v280 = vld [vmem:[%s7 + $0x468] sm:$0xff]
  %v281 = vld [vmem:[%s7 + $0x470] sm:$0xff]
  %v282 = vld [vmem:[%s7 + $0x478] sm:$0xff]
  %v283 = vld [vmem:[%s7 + $0x480] sm:$0xff]
  %v284 = vld [vmem:[%s7 + $0x488] sm:$0xff]
  %v285 = vld [vmem:[%s7 + $0x490] sm:$0xff]
  %v286 = vld [vmem:[%s7 + $0x498] sm:$0xff]
  %v287 = vld [vmem:[%s7 + $0x4a0] sm:$0xff]
  %v288 = vld [vmem:[%s7 + $0x4a8] sm:$0xff]
  %v289 = vld [vmem:[%s7 + $0x4b0] sm:$0xff]
  %v290 = vld [vmem:[%s7 + $0x4b8] sm:$0xff]
  %v291 = vld [vmem:[%s7 + $0x4c0] sm:$0xff]
  %v292 = vld [vmem:[%s7 + $0x4c8] sm:$0xff]
  %v293 = vld [vmem:[%s7 + $0x4d0] sm:$0xff]
  %v294 = vld [vmem:[%s7 + $0x4d8] sm:$0xff]
  %v295 = vld [vmem:[%s7 + $0x4e0] sm:$0xff]
  %v296 = vld [vmem:[%s7 + $0x4e8] sm:$0xff]
  %v297 = vld [vmem:[%s7 + $0x4f0] sm:$0xff]
  %v298 = vld [vmem:[%s7 + $0x4f8] sm:$0xff]
  %v299 = vld [vmem:[%s7 + $0x500] sm:$0xff]
  %v300 = vld [vmem:[%s7 + $0x508] sm:$0xff]
  %v301 = vld [vmem:[%s7 + $0x510] sm:$0xff]
  %v302 = vld [vmem:[%s7 + $0x518] sm:$0xff]
  %v303 = vld [vmem:[%s7 + $0x520] sm:$0xff]
  %v304 = vld [vmem:[%s7 + $0x528] sm:$0xff]
  %v305 = vld [vmem:[%s7 + $0x530] sm:$0xff]
  %v306 = vld [vmem:[%s7 + $0x538] sm:$0xff]
  %v307 = vld [vmem:[%s7 + $0x540] sm:$0xff]
  %v308 = vld [vmem:[%s7 + $0x548] sm:$0xff]
  %v309 = vld [vmem:[%s7 + $0x550] sm:$0xff]
  %v310 = vld [vmem:[%s7 + $0x558] sm:$0xff]
  %v311 = vld [vmem:[%s7 + $0x560] sm:$0xff]
  %v312 = vld [vmem:[%s7 + $0x568] sm:$0xff]
  %v313 = vld [vmem:[%s7 + $0x570] sm:$0xff]
  %v314 = vld [vmem:[%s7 + $0x578] sm:$0xff]
  %v315 = vld [vmem:[%s7 + $0x580] sm:$0xff]
  %v316 = vld [vmem:[%s7 + $0x588] sm:$0xff]
  %v317 = vld [vmem:[%s7 + $0x590] sm:$0xff]
  %v318 = vld [vmem:[%s7 + $0x598] sm:$0xff]
  %v319 = vld [vmem:[%s7 + $0x5a0] sm:$0xff]
  %v320 = vld [vmem:[%s7 + $0x5a8] sm:$0xff]
  %v321 = vld [vmem:[%s7 + $0x5b0] sm:$0xff]
  %v322 = vld [vmem:[%s7 + $0x5b8] sm:$0xff]
  %v323 = vld [vmem:[%s7 + $0x5c0] sm:$0xff]
  %v324 = vld [vmem:[%s7 + $0x5c8] sm:$0xff]
  %v325 = vld [vmem:[%s7 + $0x5d0] sm:$0xff]
  %v326 = vld [vmem:[%s7 + $0x5d8] sm:$0xff]
  %v327 = vld [vmem:[%s7 + $0x5e0] sm:$0xff]
  %v328 = vld [vmem:[%s7 + $0x5e8] sm:$0xff]
  %v329 = vld [vmem:[%s7 + $0x5f0] sm:$0xff]
  %v330 = vld [vmem:[%s7 + $0x5f8] sm:$0xff]
  %v331 = vld [vmem:[%s7 + $0x600] sm:$0xff]
  %v332 = vld [vmem:[%s7 + $0x608] sm:$0xff]
  %v333 = vld [vmem:[%s7 + $0x610] sm:$0xff]
  %v334 = vld [vmem:[%s7 + $0x618] sm:$0xff]
  %v335 = vld [vmem:[%s7 + $0x620] sm:$0xff]
  %v336 = vld [vmem:[%s7 + $0x628] sm:$0xff]
  %v337 = vld [vmem:[%s7 + $0x630] sm:$0xff]
  %v338 = vld [vmem:[%s7 + $0x638] sm:$0xff]
  %v339 = vld [vmem:[%s7 + $0x640] sm:$0xff]
  %v340 = vld [vmem:[%s7 + $0x648] sm:$0xff]
  %v341 = vld [vmem:[%s7 + $0x650] sm:$0xff]
  %v342 = vld [vmem:[%s7 + $0x658] sm:$0xff]
  %v343 = vld [vmem:[%s7 + $0x660] sm:$0xff]
  %v344 = vld [vmem:[%s7 + $0x668] sm:$0xff]
  %v345 = vld [vmem:[%s7 + $0x670] sm:$0xff]
  %v346 = vld [vmem:[%s7 + $0x678] sm:$0xff]
  %v347 = vld [vmem:[%s7 + $0x680] sm:$0xff]
  %v348 = vld [vmem:[%s7 + $0x688] sm:$0xff]
  %v349 = vld [vmem:[%s7 + $0x690] sm:$0xff]
  %v350 = vld [vmem:[%s7 + $0x698] sm:$0xff]
  %v351 = vld [vmem:[%s7 + $0x6a0] sm:$0xff]
  %v352 = vld [vmem:[%s7 + $0x6a8] sm:$0xff]
  %v353 = vld [vmem:[%s7 + $0x6b0] sm:$0xff]
  %v354 = vld [vmem:[%s7 + $0x6b8] sm:$0xff]
  %v355 = vld [vmem:[%s7 + $0x6c0] sm:$0xff]
  %v356 = vld [vmem:[%s7 + $0x6c8] sm:$0xff]
  %v357 = vld [vmem:[%s7 + $0x6d0] sm:$0xff]
  %v358 = vld [vmem:[%s7 + $0x6d8] sm:$0xff]
  %v359 = vld [vmem:[%s7 + $0x6e0] sm:$0xff]
  %v360 = vld [vmem:[%s7 + $0x6e8] sm:$0xff]
  %v361 = vld [vmem:[%s7 + $0x6f0] sm:$0xff]
  %v362 = vld [vmem:[%s7 + $0x6f8] sm:$0xff]
  %v363 = vld [vmem:[%s7 + $0x700] sm:$0xff]
  %v364 = vld [vmem:[%s7 + $0x708] sm:$0xff]
  %v365 = vld [vmem:[%s7 + $0x710] sm:$0xff]
  %v366 = vld [vmem:[%s7 + $0x718] sm:$0xff]
  %v367 = vld [vmem:[%s7 + $0x720] sm:$0xff]
  %v368 = vld [vmem:[%s7 + $0x728] sm:$0xff]
  %v369 = vld [vmem:[%s7 + $0x730] sm:$0xff]
  %v370 = vld [vmem:[%s7 + $0x738] sm:$0xff]
  %v371 = vld [vmem:[%s7 + $0x740] sm:$0xff]
  %v372 = vld [vmem:[%s7 + $0x748] sm:$0xff]
  %v373 = vld [vmem:[%s7 + $0x750] sm:$0xff]
  %v374 = vld [vmem:[%s7 + $0x758] sm:$0xff]
  %v375 = vld [vmem:[%s7 + $0x760] sm:$0xff]
  %v376 = vld [vmem:[%s7 + $0x768] sm:$0xff]
  %v377 = vld [vmem:[%s7 + $0x770] sm:$0xff]
  %v378 = vld [vmem:[%s7 + $0x778] sm:$0xff]
  %v379 = vld [vmem:[%s7 + $0x780] sm:$0xff]
  %v380 = vld [vmem:[%s7 + $0x788] sm:$0xff]
  %v381 = vld [vmem:[%s7 + $0x790] sm:$0xff]
  %v382 = vld [vmem:[%s7 + $0x798] sm:$0xff]
  %v383 = vld [vmem:[%s7 + $0x7a0] sm:$0xff]
  %v384 = vld [vmem:[%s7 + $0x7a8] sm:$0xff]
  %v385 = vld [vmem:[%s7 + $0x7b0] sm:$0xff]
  %v386 = vld [vmem:[%s7 + $0x7b8] sm:$0xff]
  %v387 = vld [vmem:[%s7 + $0x7c0] sm:$0xff]
  %v388 = vld [vmem:[%s7 + $0x7c8] sm:$0xff]
  %v389 = vld [vmem:[%s7 + $0x7d0] sm:$0xff]
  %v390 = vld [vmem:[%s7 + $0x7d8] sm:$0xff]
  %v391 = vld [vmem:[%s7 + $0x7e0] sm:$0xff]
  %v392 = vld [vmem:[%s7 + $0x7e8] sm:$0xff]
  %v393 = vld [vmem:[%s7 + $0x7f0] sm:$0xff]
  %v394 = vld [vmem:[%s7 + $0x7f8] sm:$0xff]
  %v395 = vld [vmem:[%s8] sm:$0x3f]
  %v397 = vperm.slane %v68, 0
  %vm399 = vcmask 261120
  %v401 = vsel %vm399, %v32, 0
  %v404 = vsel %vm399, %v33, 0
  %406 = vmatpush.msra.mxu0 0.0
  %407 = vmatpush.msra.mxu0 0.0
  %408 = vmatpush.msra.mxu0 0.0
  %409 = vmatpush.msra.mxu0 0.0
  %410 = vmatpush.msra.mxu0 0.0
  %411 = vmatpush.msra.mxu0 0.0
  %412 = vmatpush.msra.mxu0 0.0
  %413 = vmatpush.msra.mxu0 0.0
  %414 = vmatpush.msra.mxu0 0.0
  %415 = vmatpush.msra.mxu0 0.0
  %416 = vmatpush.msra.mxu0 0.0
  %417 = vmatpush.msra.mxu0 0.0
  %418 = vmatpush.msra.mxu0 %v67
  %419 = vmatpush.msra.mxu0 %v66
  %420 = vmatpush.msra.mxu0 %v65
  %421 = vmatpush.msra.mxu0 %v64
  %422 = vmatmul.f32.gmra.mxu0 %v401
  %v423 = vpop.f32.mrf.mxu0
  %v424 = vadd.f32 %v397, %v423
  %425 = vmatmul.f32.gmra.mxu0 %v404
  %v426 = vpop.f32.mrf.mxu0
  %v427 = vadd.f32 %v397, %v426
  %428 = vdwg.mxu0
  %v429 = vmul.f32 %v424, 0.35355338
  %v430 = vmul.f32 %v427, 0.35355338
  %v431 = vmul.f32 %v429, %v48
  %v432 = vmul.f32 %v430, %v48
  %v433 = vmul.f32 %v429, %v53
  %v434 = vmul.f32 %v430, %v53
  %v435 = vmul.f32 %v429, %v58
  %v436 = vmul.f32 %v430, %v58
  %v437 = vmul.f32 %v429, %v63
  %v438 = vmul.f32 %v430, %v63
  %441 = vrot.lane.b32.xlu0 %v424, 96
  %v442 = vpop.permute.xlu0 %441
  %443 = vrot.lane.b32.xlu0 %v427, 96
  %v444 = vpop.permute.xlu0 %443
  %v446 = vsel %vm399, %v431, 0
  %v449 = vsel %vm399, %v432, 0
  %v452 = vsel %vm399, %v433, 0
  %v455 = vsel %vm399, %v434, 0
  %v458 = vsel %vm399, %v435, 0
  %v461 = vsel %vm399, %v436, 0
  %v464 = vsel %vm399, %v437, 0
  %v467 = vsel %vm399, %v438, 0
  %v469 = vsel %vm399, %v442, 0
  %v471 = vsel %vm399, %v444, 0
  %473 = vmatpush.xpose.msra.mxu0 0.0
  %474 = vmatpush.xpose.msra.mxu0 0.0
  %475 = vmatpush.xpose.msra.mxu0 0.0
  %476 = vmatpush.xpose.msra.mxu0 0.0
  %477 = vmatpush.xpose.msra.mxu0 0.0
  %478 = vmatpush.xpose.msra.mxu0 0.0
  %479 = vmatpush.xpose.msra.mxu0 0.0
  %480 = vmatpush.xpose.msra.mxu0 0.0
  %481 = vmatpush.xpose.msra.mxu0 0.0
  %482 = vmatpush.xpose.msra.mxu0 0.0
  %483 = vmatpush.xpose.msra.mxu0 0.0
  %484 = vmatpush.xpose.msra.mxu0 0.0
  %485 = vmatpush.xpose.msra.mxu0 0.0
  %486 = vmatpush.xpose.msra.mxu0 0.0
  %487 = vmatpush.xpose.msra.mxu0 %v471
  %488 = vmatpush.xpose.msra.mxu0 %v469
  %489 = vmatmul.f32.gmra.mxu0 %v446
  %v490 = vpop.f32.mrf.mxu0
  %v491 = vadd.f32 %v34, %v490
  %492 = vmatmul.f32.gmra.mxu0 %v449
  %v493 = vpop.f32.mrf.mxu0
  %v494 = vadd.f32 %v35, %v493
  %495 = vmatmul.f32.gmra.mxu0 %v452
  %v496 = vpop.f32.mrf.mxu0
  %v497 = vadd.f32 %v36, %v496
  %498 = vmatmul.f32.gmra.mxu0 %v455
  %v499 = vpop.f32.mrf.mxu0
  %v500 = vadd.f32 %v37, %v499
  %501 = vmatmul.f32.gmra.mxu0 %v458
  %v502 = vpop.f32.mrf.mxu0
  %v503 = vadd.f32 %v38, %v502
  %504 = vmatmul.f32.gmra.mxu0 %v461
  %v505 = vpop.f32.mrf.mxu0
  %v506 = vadd.f32 %v39, %v505
  %507 = vmatmul.f32.gmra.mxu0 %v464
  %v508 = vpop.f32.mrf.mxu0
  %v509 = vadd.f32 %v40, %v508
  %510 = vmatmul.f32.gmra.mxu0 %v467
  %v511 = vpop.f32.mrf.mxu0
  %v512 = vadd.f32 %v41, %v511
  %513 = vdwg.mxu0
  %vm514 = vcmask 130048
  %v515 = vsel %vm514, %v491, -inf
  %516 = vmax.xlane.f32.xlu0 %v515
  %v517 = vpop.xlane.xlu0 %516
  %v518 = vsel %vm514, %v494, -inf
  %519 = vmax.xlane.f32.xlu0 %v518
  %v520 = vpop.xlane.xlu0 %519
  %v521 = vsel %vm514, %v497, -inf
  %522 = vmax.xlane.f32.xlu0 %v521
  %v523 = vpop.xlane.xlu0 %522
  %v524 = vsel %vm514, %v500, -inf
  %525 = vmax.xlane.f32.xlu0 %v524
  %v526 = vpop.xlane.xlu0 %525
  %v527 = vsel %vm514, %v503, -inf
  %528 = vmax.xlane.f32.xlu0 %v527
  %v529 = vpop.xlane.xlu0 %528
  %v530 = vsel %vm514, %v506, -inf
  %531 = vmax.xlane.f32.xlu0 %v530
  %v532 = vpop.xlane.xlu0 %531
  %v533 = vsel %vm514, %v509, -inf
  %534 = vmax.xlane.f32.xlu0 %v533
  %v535 = vpop.xlane.xlu0 %534
  %v536 = vsel %vm514, %v512, -inf
  %537 = vmax.xlane.f32.xlu0 %v536
  %v538 = vpop.xlane.xlu0 %537
  %v539 = vsub.f32 %v491, %v517
  %v540 = vsub.f32 %v494, %v520
  %v541 = vsub.f32 %v497, %v523
  %v542 = vsub.f32 %v500, %v526
  %v543 = vsub.f32 %v503, %v529
  %v544 = vsub.f32 %v506, %v532
  %v545 = vsub.f32 %v509, %v535
  %v546 = vsub.f32 %v512, %v538
  %v547 = vmul.f32 %v539, 1.442695
  %v548 = vpow.pop %v547
  %v549 = vmul.f32 %v540, 1.442695
  %v550 = vpow.pop %v549
  %v551 = vmul.f32 %v541, 1.442695
  %v552 = vpow.pop %v551
  %v553 = vmul.f32 %v542, 1.442695
  %v554 = vpow.pop %v553
  %v555 = vmul.f32 %v543, 1.442695
  %v556 = vpow.pop %v555
  %v557 = vmul.f32 %v544, 1.442695
  %v558 = vpow.pop %v557
  %v559 = vmul.f32 %v545, 1.442695
  %v560 = vpow.pop %v559
  %v561 = vmul.f32 %v546, 1.442695
  %v562 = vpow.pop %v561
  %v563 = vsel %vm514, %v548, 0.0
  %564 = vadd.xlane.f32.xlu0 %v563
  %v565 = vpop.xlane.xlu0 %564
  %v566 = vsel %vm514, %v550, 0.0
  %567 = vadd.xlane.f32.xlu0 %v566
  %v568 = vpop.xlane.xlu0 %567
  %v569 = vsel %vm514, %v552, 0.0
  %570 = vadd.xlane.f32.xlu0 %v569
  %v571 = vpop.xlane.xlu0 %570
  %v572 = vsel %vm514, %v554, 0.0
  %573 = vadd.xlane.f32.xlu0 %v572
  %v574 = vpop.xlane.xlu0 %573
  %v575 = vsel %vm514, %v556, 0.0
  %576 = vadd.xlane.f32.xlu0 %v575
  %v577 = vpop.xlane.xlu0 %576
  %v578 = vsel %vm514, %v558, 0.0
  %579 = vadd.xlane.f32.xlu0 %v578
  %v580 = vpop.xlane.xlu0 %579
  %v581 = vsel %vm514, %v560, 0.0
  %582 = vadd.xlane.f32.xlu0 %v581
  %v583 = vpop.xlane.xlu0 %582
  %v584 = vsel %vm514, %v562, 0.0
  %585 = vadd.xlane.f32.xlu0 %v584
  %v586 = vpop.xlane.xlu0 %585
  %v587 = vrcp.pop %v565
  %v588 = vrcp.pop %v568
  %v589 = vrcp.pop %v571
  %v590 = vrcp.pop %v574
  %v591 = vrcp.pop %v577
  %v592 = vrcp.pop %v580
  %v593 = vrcp.pop %v583
  %v594 = vrcp.pop %v586
  %v595 = vmul.f32 %v548, %v587
  %v596 = vmul.f32 %v550, %v588
  %v597 = vmul.f32 %v552, %v589
  %v598 = vmul.f32 %v554, %v590
  %v599 = vmul.f32 %v556, %v591
  %v600 = vmul.f32 %v558, %v592
  %v601 = vmul.f32 %v560, %v593
  %v602 = vmul.f32 %v562, %v594
  %603 = vrot.lane.b32.xlu0 %v424, 64
  %v604 = vpop.permute.xlu0 %603
  %605 = vrot.lane.b32.xlu0 %v427, 64
  %v606 = vpop.permute.xlu0 %605
  %v610 = vsel %vm514, %v595, 0
  %v613 = vsel %vm514, %v596, 0
  %v616 = vsel %vm514, %v597, 0
  %v619 = vsel %vm514, %v598, 0
  %v622 = vsel %vm514, %v599, 0
  %v625 = vsel %vm514, %v600, 0
  %v628 = vsel %vm514, %v601, 0
  %v631 = vsel %vm514, %v602, 0
  %633 = vmatpush.msra.mxu0 0.0
  %634 = vmatpush.msra.mxu0 0.0
  %635 = vmatpush.msra.mxu0 0.0
  %636 = vmatpush.msra.mxu0 0.0
  %637 = vmatpush.msra.mxu0 0.0
  %638 = vmatpush.msra.mxu0 0.0
  %639 = vmatpush.msra.mxu0 0.0
  %640 = vmatpush.msra.mxu0 0.0
  %641 = vmatpush.msra.mxu0 0.0
  %642 = vmatpush.msra.mxu0 0.0
  %643 = vmatpush.msra.mxu0 0.0
  %644 = vmatpush.msra.mxu0 0.0
  %645 = vmatpush.msra.mxu0 0.0
  %646 = vmatpush.msra.mxu0 0.0
  %647 = vmatpush.msra.mxu0 %v606
  %648 = vmatpush.msra.mxu0 %v604
  %649 = vmatmul.f32.gmra.mxu0 %v610
  %v650 = vpop.f32.mrf.mxu0
  %v651 = vadd.f32 0.0, %v650
  %652 = vmatmul.f32.gmra.mxu0 %v613
  %v653 = vpop.f32.mrf.mxu0
  %v654 = vadd.f32 0.0, %v653
  %655 = vmatmul.f32.gmra.mxu0 %v616
  %v656 = vpop.f32.mrf.mxu0
  %v657 = vadd.f32 0.0, %v656
  %658 = vmatmul.f32.gmra.mxu0 %v619
  %v659 = vpop.f32.mrf.mxu0
  %v660 = vadd.f32 0.0, %v659
  %661 = vmatmul.f32.gmra.mxu0 %v622
  %v662 = vpop.f32.mrf.mxu0
  %v663 = vadd.f32 0.0, %v662
  %664 = vmatmul.f32.gmra.mxu0 %v625
  %v665 = vpop.f32.mrf.mxu0
  %v666 = vadd.f32 0.0, %v665
  %667 = vmatmul.f32.gmra.mxu0 %v628
  %v668 = vpop.f32.mrf.mxu0
  %v669 = vadd.f32 0.0, %v668
  %670 = vmatmul.f32.gmra.mxu0 %v631
  %v671 = vpop.f32.mrf.mxu0
  %v672 = vadd.f32 0.0, %v671
  %673 = vdwg.mxu0
  %v674 = vmul.f32 %v48, %v651
  %v675 = vmul.f32 %v48, %v654
  %v676 = vmul.f32 %v53, %v657
  %v677 = vmul.f32 %v53, %v660
  %v678 = vadd.f32 %v674, %v676
  %v679 = vadd.f32 %v675, %v677
  %v680 = vmul.f32 %v58, %v663
  %v681 = vmul.f32 %v58, %v666
  %v682 = vadd.f32 %v678, %v680
  %v683 = vadd.f32 %v679, %v681
  %v684 = vmul.f32 %v63, %v669
  %v685 = vmul.f32 %v63, %v672
  %v686 = vadd.f32 %v682, %v684
  %v687 = vadd.f32 %v683, %v685
  %v688 = vperm.slane %v395, 0
  %v690 = vsel %vm399, %v686, 0
  %v693 = vsel %vm399, %v687, 0
  %695 = vmatpush.msra.mxu0 0.0
  %696 = vmatpush.msra.mxu0 0.0
  %697 = vmatpush.msra.mxu0 0.0
  %698 = vmatpush.msra.mxu0 0.0
  %699 = vmatpush.msra.mxu0 0.0
  %700 = vmatpush.msra.mxu0 0.0
  %701 = vmatpush.msra.mxu0 0.0
  %702 = vmatpush.msra.mxu0 0.0
  %703 = vmatpush.msra.mxu0 0.0
  %704 = vmatpush.msra.mxu0 0.0
  %705 = vmatpush.msra.mxu0 0.0
  %706 = vmatpush.msra.mxu0 0.0
  %707 = vmatpush.msra.mxu0 %v72
  %708 = vmatpush.msra.mxu0 %v71
  %709 = vmatpush.msra.mxu0 %v70
  %710 = vmatpush.msra.mxu0 %v69
  %711 = vmatmul.f32.gmra.mxu0 %v690
  %v712 = vpop.f32.mrf.mxu0
  %v713 = vadd.f32 %v688, %v712
  %714 = vmatmul.f32.gmra.mxu0 %v693
  %v715 = vpop.f32.mrf.mxu0
  %v716 = vadd.f32 %v688, %v715
  %717 = vdwg.mxu0
  %v718 = vadd.f32 %v32, %v713
  %v719 = vadd.f32 %v33, %v716
  %v720 = vsel %vm399, %v718, 0.0
  %721 = vadd.xlane.f32.xlu0 %v720
  %v722 = vpop.xlane.xlu0 %721
  %v723 = vsel %vm399, %v719, 0.0
  %724 = vadd.xlane.f32.xlu0 %v723
  %v725 = vpop.xlane.xlu0 %724
  %v726 = vrcp.pop 32.0
  %v727 = vmul.f32 32.0, %v726
  %v728 = vsub.f32 1.0, %v727
  %v729 = vmul.f32 %v726, %v728
  %v730 = vadd.f32 %v726, %v729
  %vm731 = vweird.f32 %v726
  %v732 = vsel %vm731, %v726, %v730
  %v733 = vmul.f32 %v722, %v732
  %v734 = vmul.f32 %v725, %v732
  %v735 = vsub.f32 %v718, %v733
  %v736 = vsub.f32 %v719, %v734
  %v737 = vmul.f32 %v735, %v735
  %v738 = vmul.f32 %v736, %v736
  %v739 = vsel %vm399, %v737, 0.0
  %740 = vadd.xlane.f32.xlu0 %v739
  %v741 = vpop.xlane.xlu0 %740
  %v742 = vsel %vm399, %v738, 0.0
  %743 = vadd.xlane.f32.xlu0 %v742
  %v744 = vpop.xlane.xlu0 %743
  %v745 = vmul.f32 %v741, %v732
  %v746 = vmul.f32 %v744, %v732
  %v747 = vadd.f32 %v745, 1e-05
  %v748 = vadd.f32 %v746, 1e-05
  %v749 = vrsqrt.pop %v747
  %v750 = vmul.f32 %v749, %v747
  %v751 = vmul.f32 %v750, %v749
  %v752 = vmul.f32 0.5, %v751
  %v753 = vsub.f32 1.5, %v752
  %v754 = vmul.f32 %v749, %v753
  %vm755 = vweird.f32 %v747
  %vm756 = vweird.f32 %v749
  %vm757 = vmor %vm755, %vm756
  %v758 = vsel %vm757, %v749, %v754
  %v759 = vrsqrt.pop %v748
  %v760 = vmul.f32 %v759, %v748
  %v761 = vmul.f32 %v760, %v759
  %v762 = vmul.f32 0.5, %v761
  %v763 = vsub.f32 1.5, %v762
  %v764 = vmul.f32 %v759, %v763
  %vm765 = vweird.f32 %v748
  %vm766 = vweird.f32 %v759
  %vm767 = vmor %vm765, %vm766
  %v768 = vsel %vm767, %v759, %v764
  %v769 = vmul.f32 %v735, %v758
  %v770 = vmul.f32 %v736, %v768
  %v771 = vperm.slane %v395, 2
  %v772 = vmul.f32 %v769, %v771
  %v773 = vmul.f32 %v770, %v771
  %v774 = vperm.slane %v395, 3
  %v775 = vadd.f32 %v772, %v774
  %v776 = vadd.f32 %v773, %v774
  %v779 = vperm.slane %v137, 0
  %v780 = vperm.slane %v137, 1
  %v781 = vperm.slane %v137, 2
  %v782 = vperm.slane %v137, 3
  %v783 = vperm.slane %v137, 4
  %v784 = vperm.slane %v137, 5
  %v785 = vperm.slane %v137, 6
  %v786 = vperm.slane %v137, 7
  %v787 = vperm.slane %v138, 0
  %v788 = vperm.slane %v138, 1
  %v789 = vperm.slane %v138, 2
  %v790 = vperm.slane %v138, 3
  %v791 = vperm.slane %v138, 4
  %v792 = vperm.slane %v138, 5
  %v793 = vperm.slane %v138, 6
  %v794 = vperm.slane %v138, 7
  %v812 = vsel %vm399, %v775, 0
  %v815 = vsel %vm399, %v776, 0
  %817 = vmatpush.msra.mxu0 0.0
  %818 = vmatpush.msra.mxu0 0.0
  %819 = vmatpush.msra.mxu0 0.0
  %820 = vmatpush.msra.mxu0 0.0
  %821 = vmatpush.msra.mxu0 0.0
  %822 = vmatpush.msra.mxu0 0.0
  %823 = vmatpush.msra.mxu0 0.0
  %824 = vmatpush.msra.mxu0 0.0
  %825 = vmatpush.msra.mxu0 0.0
  %826 = vmatpush.msra.mxu0 0.0
  %827 = vmatpush.msra.mxu0 0.0
  %828 = vmatpush.msra.mxu0 0.0
  %829 = vmatpush.msra.mxu0 %v121
  %830 = vmatpush.msra.mxu0 %v105
  %831 = vmatpush.msra.mxu0 %v89
  %832 = vmatpush.msra.mxu0 %v73
  %833 = vmatmul.f32.gmra.mxu0 %v812
  %v834 = vpop.f32.mrf.mxu0
  %v835 = vadd.f32 %v779, %v834
  %836 = vmatmul.f32.gmra.mxu0 %v815
  %v837 = vpop.f32.mrf.mxu0
  %v838 = vadd.f32 %v779, %v837
  %839 = vdwg.mxu0
  %840 = vmatpush.msra.mxu0 0.0
  %841 = vmatpush.msra.mxu0 0.0
  %842 = vmatpush.msra.mxu0 0.0
  %843 = vmatpush.msra.mxu0 0.0
  %844 = vmatpush.msra.mxu0 0.0
  %845 = vmatpush.msra.mxu0 0.0
  %846 = vmatpush.msra.mxu0 0.0
  %847 = vmatpush.msra.mxu0 0.0
  %848 = vmatpush.msra.mxu0 0.0
  %849 = vmatpush.msra.mxu0 0.0
  %850 = vmatpush.msra.mxu0 0.0
  %851 = vmatpush.msra.mxu0 0.0
  %852 = vmatpush.msra.mxu0 %v122
  %853 = vmatpush.msra.mxu0 %v106
  %854 = vmatpush.msra.mxu0 %v90
  %855 = vmatpush.msra.mxu0 %v74
  %856 = vmatmul.f32.gmra.mxu0 %v812
  %v857 = vpop.f32.mrf.mxu0
  %v858 = vadd.f32 %v780, %v857
  %859 = vmatmul.f32.gmra.mxu0 %v815
  %v860 = vpop.f32.mrf.mxu0
  %v861 = vadd.f32 %v780, %v860
  %862 = vdwg.mxu0
  %863 = vmatpush.msra.mxu0 0.0
  %864 = vmatpush.msra.mxu0 0.0
  %865 = vmatpush.msra.mxu0 0.0
  %866 = vmatpush.msra.mxu0 0.0
  %867 = vmatpush.msra.mxu0 0.0
  %868 = vmatpush.msra.mxu0 0.0
  %869 = vmatpush.msra.mxu0 0.0
  %870 = vmatpush.msra.mxu0 0.0
  %871 = vmatpush.msra.mxu0 0.0
  %872 = vmatpush.msra.mxu0 0.0
  %873 = vmatpush.msra.mxu0 0.0
  %874 = vmatpush.msra.mxu0 0.0
  %875 = vmatpush.msra.mxu0 %v123
  %876 = vmatpush.msra.mxu0 %v107
  %877 = vmatpush.msra.mxu0 %v91
  %878 = vmatpush.msra.mxu0 %v75
  %879 = vmatmul.f32.gmra.mxu0 %v812
  %v880 = vpop.f32.mrf.mxu0
  %v881 = vadd.f32 %v781, %v880
  %882 = vmatmul.f32.gmra.mxu0 %v815
  %v883 = vpop.f32.mrf.mxu0
  %v884 = vadd.f32 %v781, %v883
  %885 = vdwg.mxu0
  %886 = vmatpush.msra.mxu0 0.0
  %887 = vmatpush.msra.mxu0 0.0
  %888 = vmatpush.msra.mxu0 0.0
  %889 = vmatpush.msra.mxu0 0.0
  %890 = vmatpush.msra.mxu0 0.0
  %891 = vmatpush.msra.mxu0 0.0
  %892 = vmatpush.msra.mxu0 0.0
  %893 = vmatpush.msra.mxu0 0.0
  %894 = vmatpush.msra.mxu0 0.0
  %895 = vmatpush.msra.mxu0 0.0
  %896 = vmatpush.msra.mxu0 0.0
  %897 = vmatpush.msra.mxu0 0.0
  %898 = vmatpush.msra.mxu0 %v124
  %899 = vmatpush.msra.mxu0 %v108
  %900 = vmatpush.msra.mxu0 %v92
  %901 = vmatpush.msra.mxu0 %v76
  %902 = vmatmul.f32.gmra.mxu0 %v812
  %v903 = vpop.f32.mrf.mxu0
  %v904 = vadd.f32 %v782, %v903
  %905 = vmatmul.f32.gmra.mxu0 %v815
  %v906 = vpop.f32.mrf.mxu0
  %v907 = vadd.f32 %v782, %v906
  %908 = vdwg.mxu0
  %909 = vmatpush.msra.mxu0 0.0
  %910 = vmatpush.msra.mxu0 0.0
  %911 = vmatpush.msra.mxu0 0.0
  %912 = vmatpush.msra.mxu0 0.0
  %913 = vmatpush.msra.mxu0 0.0
  %914 = vmatpush.msra.mxu0 0.0
  %915 = vmatpush.msra.mxu0 0.0
  %916 = vmatpush.msra.mxu0 0.0
  %917 = vmatpush.msra.mxu0 0.0
  %918 = vmatpush.msra.mxu0 0.0
  %919 = vmatpush.msra.mxu0 0.0
  %920 = vmatpush.msra.mxu0 0.0
  %921 = vmatpush.msra.mxu0 %v125
  %922 = vmatpush.msra.mxu0 %v109
  %923 = vmatpush.msra.mxu0 %v93
  %924 = vmatpush.msra.mxu0 %v77
  %925 = vmatmul.f32.gmra.mxu0 %v812
  %v926 = vpop.f32.mrf.mxu0
  %v927 = vadd.f32 %v783, %v926
  %928 = vmatmul.f32.gmra.mxu0 %v815
  %v929 = vpop.f32.mrf.mxu0
  %v930 = vadd.f32 %v783, %v929
  %931 = vdwg.mxu0
  %932 = vmatpush.msra.mxu0 0.0
  %933 = vmatpush.msra.mxu0 0.0
  %934 = vmatpush.msra.mxu0 0.0
  %935 = vmatpush.msra.mxu0 0.0
  %936 = vmatpush.msra.mxu0 0.0
  %937 = vmatpush.msra.mxu0 0.0
  %938 = vmatpush.msra.mxu0 0.0
  %939 = vmatpush.msra.mxu0 0.0
  %940 = vmatpush.msra.mxu0 0.0
  %941 = vmatpush.msra.mxu0 0.0
  %942 = vmatpush.msra.mxu0 0.0
  %943 = vmatpush.msra.mxu0 0.0
  %944 = vmatpush.msra.mxu0 %v126
  %945 = vmatpush.msra.mxu0 %v110
  %946 = vmatpush.msra.mxu0 %v94
  %947 = vmatpush.msra.mxu0 %v78
  %948 = vmatmul.f32.gmra.mxu0 %v812
  %v949 = vpop.f32.mrf.mxu0
  %v950 = vadd.f32 %v784, %v949
  %951 = vmatmul.f32.gmra.mxu0 %v815
  %v952 = vpop.f32.mrf.mxu0
  %v953 = vadd.f32 %v784, %v952
  %954 = vdwg.mxu0
  %955 = vmatpush.msra.mxu0 0.0
  %956 = vmatpush.msra.mxu0 0.0
  %957 = vmatpush.msra.mxu0 0.0
  %958 = vmatpush.msra.mxu0 0.0
  %959 = vmatpush.msra.mxu0 0.0
  %960 = vmatpush.msra.mxu0 0.0
  %961 = vmatpush.msra.mxu0 0.0
  %962 = vmatpush.msra.mxu0 0.0
  %963 = vmatpush.msra.mxu0 0.0
  %964 = vmatpush.msra.mxu0 0.0
  %965 = vmatpush.msra.mxu0 0.0
  %966 = vmatpush.msra.mxu0 0.0
  %967 = vmatpush.msra.mxu0 %v127
  %968 = vmatpush.msra.mxu0 %v111
  %969 = vmatpush.msra.mxu0 %v95
  %970 = vmatpush.msra.mxu0 %v79
  %971 = vmatmul.f32.gmra.mxu0 %v812
  %v972 = vpop.f32.mrf.mxu0
  %v973 = vadd.f32 %v785, %v972
  %974 = vmatmul.f32.gmra.mxu0 %v815
  %v975 = vpop.f32.mrf.mxu0
  %v976 = vadd.f32 %v785, %v975
  %977 = vdwg.mxu0
  %978 = vmatpush.msra.mxu0 0.0
  %979 = vmatpush.msra.mxu0 0.0
  %980 = vmatpush.msra.mxu0 0.0
  %981 = vmatpush.msra.mxu0 0.0
  %982 = vmatpush.msra.mxu0 0.0
  %983 = vmatpush.msra.mxu0 0.0
  %984 = vmatpush.msra.mxu0 0.0
  %985 = vmatpush.msra.mxu0 0.0
  %986 = vmatpush.msra.mxu0 0.0
  %987 = vmatpush.msra.mxu0 0.0
  %988 = vmatpush.msra.mxu0 0.0
  %989 = vmatpush.msra.mxu0 0.0
  %990 = vmatpush.msra.mxu0 %v128
  %991 = vmatpush.msra.mxu0 %v112
  %992 = vmatpush.msra.mxu0 %v96
  %993 = vmatpush.msra.mxu0 %v80
  %994 = vmatmul.f32.gmra.mxu0 %v812
  %v995 = vpop.f32.mrf.mxu0
  %v996 = vadd.f32 %v786, %v995
  %997 = vmatmul.f32.gmra.mxu0 %v815
  %v998 = vpop.f32.mrf.mxu0
  %v999 = vadd.f32 %v786, %v998
  %1000 = vdwg.mxu0
  %1001 = vmatpush.msra.mxu0 0.0
  %1002 = vmatpush.msra.mxu0 0.0
  %1003 = vmatpush.msra.mxu0 0.0
  %1004 = vmatpush.msra.mxu0 0.0
  %1005 = vmatpush.msra.mxu0 0.0
  %1006 = vmatpush.msra.mxu0 0.0
  %1007 = vmatpush.msra.mxu0 0.0
  %1008 = vmatpush.msra.mxu0 0.0
  %1009 = vmatpush.msra.mxu0 0.0
  %1010 = vmatpush.msra.mxu0 0.0
  %1011 = vmatpush.msra.mxu0 0.0
  %1012 = vmatpush.msra.mxu0 0.0
  %1013 = vmatpush.msra.mxu0 %v129
  %1014 = vmatpush.msra.mxu0 %v113
  %1015 = vmatpush.msra.mxu0 %v97
  %1016 = vmatpush.msra.mxu0 %v81
  %1017 = vmatmul.f32.gmra.mxu0 %v812
  %v1018 = vpop.f32.mrf.mxu0
  %v1019 = vadd.f32 %v787, %v1018
  %1020 = vmatmul.f32.gmra.mxu0 %v815
  %v1021 = vpop.f32.mrf.mxu0
  %v1022 = vadd.f32 %v787, %v1021
  %1023 = vdwg.mxu0
  %1024 = vmatpush.msra.mxu0 0.0
  %1025 = vmatpush.msra.mxu0 0.0
  %1026 = vmatpush.msra.mxu0 0.0
  %1027 = vmatpush.msra.mxu0 0.0
  %1028 = vmatpush.msra.mxu0 0.0
  %1029 = vmatpush.msra.mxu0 0.0
  %1030 = vmatpush.msra.mxu0 0.0
  %1031 = vmatpush.msra.mxu0 0.0
  %1032 = vmatpush.msra.mxu0 0.0
  %1033 = vmatpush.msra.mxu0 0.0
  %1034 = vmatpush.msra.mxu0 0.0
  %1035 = vmatpush.msra.mxu0 0.0
  %1036 = vmatpush.msra.mxu0 %v130
  %1037 = vmatpush.msra.mxu0 %v114
  %1038 = vmatpush.msra.mxu0 %v98
  %1039 = vmatpush.msra.mxu0 %v82
  %1040 = vmatmul.f32.gmra.mxu0 %v812
  %v1041 = vpop.f32.mrf.mxu0
  %v1042 = vadd.f32 %v788, %v1041
  %1043 = vmatmul.f32.gmra.mxu0 %v815
  %v1044 = vpop.f32.mrf.mxu0
  %v1045 = vadd.f32 %v788, %v1044
  %1046 = vdwg.mxu0
  %1047 = vmatpush.msra.mxu0 0.0
  %1048 = vmatpush.msra.mxu0 0.0
  %1049 = vmatpush.msra.mxu0 0.0
  %1050 = vmatpush.msra.mxu0 0.0
  %1051 = vmatpush.msra.mxu0 0.0
  %1052 = vmatpush.msra.mxu0 0.0
  %1053 = vmatpush.msra.mxu0 0.0
  %1054 = vmatpush.msra.mxu0 0.0
  %1055 = vmatpush.msra.mxu0 0.0
  %1056 = vmatpush.msra.mxu0 0.0
  %1057 = vmatpush.msra.mxu0 0.0
  %1058 = vmatpush.msra.mxu0 0.0
  %1059 = vmatpush.msra.mxu0 %v131
  %1060 = vmatpush.msra.mxu0 %v115
  %1061 = vmatpush.msra.mxu0 %v99
  %1062 = vmatpush.msra.mxu0 %v83
  %1063 = vmatmul.f32.gmra.mxu0 %v812
  %v1064 = vpop.f32.mrf.mxu0
  %v1065 = vadd.f32 %v789, %v1064
  %1066 = vmatmul.f32.gmra.mxu0 %v815
  %v1067 = vpop.f32.mrf.mxu0
  %v1068 = vadd.f32 %v789, %v1067
  %1069 = vdwg.mxu0
  %1070 = vmatpush.msra.mxu0 0.0
  %1071 = vmatpush.msra.mxu0 0.0
  %1072 = vmatpush.msra.mxu0 0.0
  %1073 = vmatpush.msra.mxu0 0.0
  %1074 = vmatpush.msra.mxu0 0.0
  %1075 = vmatpush.msra.mxu0 0.0
  %1076 = vmatpush.msra.mxu0 0.0
  %1077 = vmatpush.msra.mxu0 0.0
  %1078 = vmatpush.msra.mxu0 0.0
  %1079 = vmatpush.msra.mxu0 0.0
  %1080 = vmatpush.msra.mxu0 0.0
  %1081 = vmatpush.msra.mxu0 0.0
  %1082 = vmatpush.msra.mxu0 %v132
  %1083 = vmatpush.msra.mxu0 %v116
  %1084 = vmatpush.msra.mxu0 %v100
  %1085 = vmatpush.msra.mxu0 %v84
  %1086 = vmatmul.f32.gmra.mxu0 %v812
  %v1087 = vpop.f32.mrf.mxu0
  %v1088 = vadd.f32 %v790, %v1087
  %1089 = vmatmul.f32.gmra.mxu0 %v815
  %v1090 = vpop.f32.mrf.mxu0
  %v1091 = vadd.f32 %v790, %v1090
  %1092 = vdwg.mxu0
  %1093 = vmatpush.msra.mxu0 0.0
  %1094 = vmatpush.msra.mxu0 0.0
  %1095 = vmatpush.msra.mxu0 0.0
  %1096 = vmatpush.msra.mxu0 0.0
  %1097 = vmatpush.msra.mxu0 0.0
  %1098 = vmatpush.msra.mxu0 0.0
  %1099 = vmatpush.msra.mxu0 0.0
  %1100 = vmatpush.msra.mxu0 0.0
  %1101 = vmatpush.msra.mxu0 0.0
  %1102 = vmatpush.msra.mxu0 0.0
  %1103 = vmatpush.msra.mxu0 0.0
  %1104 = vmatpush.msra.mxu0 0.0
  %1105 = vmatpush.msra.mxu0 %v133
  %1106 = vmatpush.msra.mxu0 %v117
  %1107 = vmatpush.msra.mxu0 %v101
  %1108 = vmatpush.msra.mxu0 %v85
  %1109 = vmatmul.f32.gmra.mxu0 %v812
  %v1110 = vpop.f32.mrf.mxu0
  %v1111 = vadd.f32 %v791, %v1110
  %1112 = vmatmul.f32.gmra.mxu0 %v815
  %v1113 = vpop.f32.mrf.mxu0
  %v1114 = vadd.f32 %v791, %v1113
  %1115 = vdwg.mxu0
  %1116 = vmatpush.msra.mxu0 0.0
  %1117 = vmatpush.msra.mxu0 0.0
  %1118 = vmatpush.msra.mxu0 0.0
  %1119 = vmatpush.msra.mxu0 0.0
  %1120 = vmatpush.msra.mxu0 0.0
  %1121 = vmatpush.msra.mxu0 0.0
  %1122 = vmatpush.msra.mxu0 0.0
  %1123 = vmatpush.msra.mxu0 0.0
  %1124 = vmatpush.msra.mxu0 0.0
  %1125 = vmatpush.msra.mxu0 0.0
  %1126 = vmatpush.msra.mxu0 0.0
  %1127 = vmatpush.msra.mxu0 0.0
  %1128 = vmatpush.msra.mxu0 %v134
  %1129 = vmatpush.msra.mxu0 %v118
  %1130 = vmatpush.msra.mxu0 %v102
  %1131 = vmatpush.msra.mxu0 %v86
  %1132 = vmatmul.f32.gmra.mxu0 %v812
  %v1133 = vpop.f32.mrf.mxu0
  %v1134 = vadd.f32 %v792, %v1133
  %1135 = vmatmul.f32.gmra.mxu0 %v815
  %v1136 = vpop.f32.mrf.mxu0
  %v1137 = vadd.f32 %v792, %v1136
  %1138 = vdwg.mxu0
  %1139 = vmatpush.msra.mxu0 0.0
  %1140 = vmatpush.msra.mxu0 0.0
  %1141 = vmatpush.msra.mxu0 0.0
  %1142 = vmatpush.msra.mxu0 0.0
  %1143 = vmatpush.msra.mxu0 0.0
  %1144 = vmatpush.msra.mxu0 0.0
  %1145 = vmatpush.msra.mxu0 0.0
  %1146 = vmatpush.msra.mxu0 0.0
  %1147 = vmatpush.msra.mxu0 0.0
  %1148 = vmatpush.msra.mxu0 0.0
  %1149 = vmatpush.msra.mxu0 0.0
  %1150 = vmatpush.msra.mxu0 0.0
  %1151 = vmatpush.msra.mxu0 %v135
  %1152 = vmatpush.msra.mxu0 %v119
  %1153 = vmatpush.msra.mxu0 %v103
  %1154 = vmatpush.msra.mxu0 %v87
  %1155 = vmatmul.f32.gmra.mxu0 %v812
  %v1156 = vpop.f32.mrf.mxu0
  %v1157 = vadd.f32 %v793, %v1156
  %1158 = vmatmul.f32.gmra.mxu0 %v815
  %v1159 = vpop.f32.mrf.mxu0
  %v1160 = vadd.f32 %v793, %v1159
  %1161 = vdwg.mxu0
  %1162 = vmatpush.msra.mxu0 0.0
  %1163 = vmatpush.msra.mxu0 0.0
  %1164 = vmatpush.msra.mxu0 0.0
  %1165 = vmatpush.msra.mxu0 0.0
  %1166 = vmatpush.msra.mxu0 0.0
  %1167 = vmatpush.msra.mxu0 0.0
  %1168 = vmatpush.msra.mxu0 0.0
  %1169 = vmatpush.msra.mxu0 0.0
  %1170 = vmatpush.msra.mxu0 0.0
  %1171 = vmatpush.msra.mxu0 0.0
  %1172 = vmatpush.msra.mxu0 0.0
  %1173 = vmatpush.msra.mxu0 0.0
  %1174 = vmatpush.msra.mxu0 %v136
  %1175 = vmatpush.msra.mxu0 %v120
  %1176 = vmatpush.msra.mxu0 %v104
  %1177 = vmatpush.msra.mxu0 %v88
  %1178 = vmatmul.f32.gmra.mxu0 %v812
  %v1179 = vpop.f32.mrf.mxu0
  %v1180 = vadd.f32 %v794, %v1179
  %1181 = vmatmul.f32.gmra.mxu0 %v815
  %v1182 = vpop.f32.mrf.mxu0
  %v1183 = vadd.f32 %v794, %v1182
  %1184 = vdwg.mxu0
  %v1185 = vmax.f32 %v835, 0.0
  %v1186 = vmax.f32 %v858, 0.0
  %v1187 = vmax.f32 %v881, 0.0
  %v1188 = vmax.f32 %v904, 0.0
  %v1189 = vmax.f32 %v927, 0.0
  %v1190 = vmax.f32 %v950, 0.0
  %v1191 = vmax.f32 %v973, 0.0
  %v1192 = vmax.f32 %v996, 0.0
  %v1193 = vmax.f32 %v1019, 0.0
  %v1194 = vmax.f32 %v1042, 0.0
  %v1195 = vmax.f32 %v1065, 0.0
  %v1196 = vmax.f32 %v1088, 0.0
  %v1197 = vmax.f32 %v1111, 0.0
  %v1198 = vmax.f32 %v1134, 0.0
  %v1199 = vmax.f32 %v1157, 0.0
  %v1200 = vmax.f32 %v1180, 0.0
  %v1201 = vmax.f32 %v838, 0.0
  %v1202 = vmax.f32 %v861, 0.0
  %v1203 = vmax.f32 %v884, 0.0
  %v1204 = vmax.f32 %v907, 0.0
  %v1205 = vmax.f32 %v930, 0.0
  %v1206 = vmax.f32 %v953, 0.0
  %v1207 = vmax.f32 %v976, 0.0
  %v1208 = vmax.f32 %v999, 0.0
  %v1209 = vmax.f32 %v1022, 0.0
  %v1210 = vmax.f32 %v1045, 0.0
  %v1211 = vmax.f32 %v1068, 0.0
  %v1212 = vmax.f32 %v1091, 0.0
  %v1213 = vmax.f32 %v1114, 0.0
  %v1214 = vmax.f32 %v1137, 0.0
  %v1215 = vmax.f32 %v1160, 0.0
  %v1216 = vmax.f32 %v1183, 0.0
  %v1217 = vperm.slane %v395, 1
  %1218 = vmatpush.msra.mxu0 %v154
  %1219 = vmatpush.msra.mxu0 %v153
  %1220 = vmatpush.msra.mxu0 %v152
  %1221 = vmatpush.msra.mxu0 %v151
  %1222 = vmatpush.msra.mxu0 %v150
  %1223 = vmatpush.msra.mxu0 %v149
  %1224 = vmatpush.msra.mxu0 %v148
  %1225 = vmatpush.msra.mxu0 %v147
  %1226 = vmatpush.msra.mxu0 %v146
  %1227 = vmatpush.msra.mxu0 %v145
  %1228 = vmatpush.msra.mxu0 %v144
  %1229 = vmatpush.msra.mxu0 %v143
  %1230 = vmatpush.msra.mxu0 %v142
  %1231 = vmatpush.msra.mxu0 %v141
  %1232 = vmatpush.msra.mxu0 %v140
  %1233 = vmatpush.msra.mxu0 %v139
  %1234 = vmatmul.f32.gmra.mxu0 %v1185
  %v1235 = vpop.f32.mrf.mxu0
  %v1236 = vadd.f32 %v1217, %v1235
  %1237 = vmatmul.f32.gmra.mxu0 %v1201
  %v1238 = vpop.f32.mrf.mxu0
  %v1239 = vadd.f32 %v1217, %v1238
  %1240 = vdwg.mxu0
  %1241 = vmatpush.msra.mxu0 %v170
  %1242 = vmatpush.msra.mxu0 %v169
  %1243 = vmatpush.msra.mxu0 %v168
  %1244 = vmatpush.msra.mxu0 %v167
  %1245 = vmatpush.msra.mxu0 %v166
  %1246 = vmatpush.msra.mxu0 %v165
  %1247 = vmatpush.msra.mxu0 %v164
  %1248 = vmatpush.msra.mxu0 %v163
  %1249 = vmatpush.msra.mxu0 %v162
  %1250 = vmatpush.msra.mxu0 %v161
  %1251 = vmatpush.msra.mxu0 %v160
  %1252 = vmatpush.msra.mxu0 %v159
  %1253 = vmatpush.msra.mxu0 %v158
  %1254 = vmatpush.msra.mxu0 %v157
  %1255 = vmatpush.msra.mxu0 %v156
  %1256 = vmatpush.msra.mxu0 %v155
  %1257 = vmatmul.f32.gmra.mxu0 %v1186
  %v1258 = vpop.f32.mrf.mxu0
  %v1259 = vadd.f32 %v1236, %v1258
  %1260 = vmatmul.f32.gmra.mxu0 %v1202
  %v1261 = vpop.f32.mrf.mxu0
  %v1262 = vadd.f32 %v1239, %v1261
  %1263 = vdwg.mxu0
  %1264 = vmatpush.msra.mxu0 %v186
  %1265 = vmatpush.msra.mxu0 %v185
  %1266 = vmatpush.msra.mxu0 %v184
  %1267 = vmatpush.msra.mxu0 %v183
  %1268 = vmatpush.msra.mxu0 %v182
  %1269 = vmatpush.msra.mxu0 %v181
  %1270 = vmatpush.msra.mxu0 %v180
  %1271 = vmatpush.msra.mxu0 %v179
  %1272 = vmatpush.msra.mxu0 %v178
  %1273 = vmatpush.msra.mxu0 %v177
  %1274 = vmatpush.msra.mxu0 %v176
  %1275 = vmatpush.msra.mxu0 %v175
  %1276 = vmatpush.msra.mxu0 %v174
  %1277 = vmatpush.msra.mxu0 %v173
  %1278 = vmatpush.msra.mxu0 %v172
  %1279 = vmatpush.msra.mxu0 %v171
  %1280 = vmatmul.f32.gmra.mxu0 %v1187
  %v1281 = vpop.f32.mrf.mxu0
  %v1282 = vadd.f32 %v1259, %v1281
  %1283 = vmatmul.f32.gmra.mxu0 %v1203
  %v1284 = vpop.f32.mrf.mxu0
  %v1285 = vadd.f32 %v1262, %v1284
  %1286 = vdwg.mxu0
  %1287 = vmatpush.msra.mxu0 %v202
  %1288 = vmatpush.msra.mxu0 %v201
  %1289 = vmatpush.msra.mxu0 %v200
  %1290 = vmatpush.msra.mxu0 %v199
  %1291 = vmatpush.msra.mxu0 %v198
  %1292 = vmatpush.msra.mxu0 %v197
  %1293 = vmatpush.msra.mxu0 %v196
  %1294 = vmatpush.msra.mxu0 %v195
  %1295 = vmatpush.msra.mxu0 %v194
  %1296 = vmatpush.msra.mxu0 %v193
  %1297 = vmatpush.msra.mxu0 %v192
  %1298 = vmatpush.msra.mxu0 %v191
  %1299 = vmatpush.msra.mxu0 %v190
  %1300 = vmatpush.msra.mxu0 %v189
  %1301 = vmatpush.msra.mxu0 %v188
  %1302 = vmatpush.msra.mxu0 %v187
  %1303 = vmatmul.f32.gmra.mxu0 %v1188
  %v1304 = vpop.f32.mrf.mxu0
  %v1305 = vadd.f32 %v1282, %v1304
  %1306 = vmatmul.f32.gmra.mxu0 %v1204
  %v1307 = vpop.f32.mrf.mxu0
  %v1308 = vadd.f32 %v1285, %v1307
  %1309 = vdwg.mxu0
  %1310 = vmatpush.msra.mxu0 %v218
  %1311 = vmatpush.msra.mxu0 %v217
  %1312 = vmatpush.msra.mxu0 %v216
  %1313 = vmatpush.msra.mxu0 %v215
  %1314 = vmatpush.msra.mxu0 %v214
  %1315 = vmatpush.msra.mxu0 %v213
  %1316 = vmatpush.msra.mxu0 %v212
  %1317 = vmatpush.msra.mxu0 %v211
  %1318 = vmatpush.msra.mxu0 %v210
  %1319 = vmatpush.msra.mxu0 %v209
  %1320 = vmatpush.msra.mxu0 %v208
  %1321 = vmatpush.msra.mxu0 %v207
  %1322 = vmatpush.msra.mxu0 %v206
  %1323 = vmatpush.msra.mxu0 %v205
  %1324 = vmatpush.msra.mxu0 %v204
  %1325 = vmatpush.msra.mxu0 %v203
  %1326 = vmatmul.f32.gmra.mxu0 %v1189
  %v1327 = vpop.f32.mrf.mxu0
  %v1328 = vadd.f32 %v1305, %v1327
  %1329 = vmatmul.f32.gmra.mxu0 %v1205
  %v1330 = vpop.f32.mrf.mxu0
  %v1331 = vadd.f32 %v1308, %v1330
  %1332 = vdwg.mxu0
  %1333 = vmatpush.msra.mxu0 %v234
  %1334 = vmatpush.msra.mxu0 %v233
  %1335 = vmatpush.msra.mxu0 %v232
  %1336 = vmatpush.msra.mxu0 %v231
  %1337 = vmatpush.msra.mxu0 %v230
  %1338 = vmatpush.msra.mxu0 %v229
  %1339 = vmatpush.msra.mxu0 %v228
  %1340 = vmatpush.msra.mxu0 %v227
  %1341 = vmatpush.msra.mxu0 %v226
  %1342 = vmatpush.msra.mxu0 %v225
  %1343 = vmatpush.msra.mxu0 %v224
  %1344 = vmatpush.msra.mxu0 %v223
  %1345 = vmatpush.msra.mxu0 %v222
  %1346 = vmatpush.msra.mxu0 %v221
  %1347 = vmatpush.msra.mxu0 %v220
  %1348 = vmatpush.msra.mxu0 %v219
  %1349 = vmatmul.f32.gmra.mxu0 %v1190
  %v1350 = vpop.f32.mrf.mxu0
  %v1351 = vadd.f32 %v1328, %v1350
  %1352 = vmatmul.f32.gmra.mxu0 %v1206
  %v1353 = vpop.f32.mrf.mxu0
  %v1354 = vadd.f32 %v1331, %v1353
  %1355 = vdwg.mxu0
  %1356 = vmatpush.msra.mxu0 %v250
  %1357 = vmatpush.msra.mxu0 %v249
  %1358 = vmatpush.msra.mxu0 %v248
  %1359 = vmatpush.msra.mxu0 %v247
  %1360 = vmatpush.msra.mxu0 %v246
  %1361 = vmatpush.msra.mxu0 %v245
  %1362 = vmatpush.msra.mxu0 %v244
  %1363 = vmatpush.msra.mxu0 %v243
  %1364 = vmatpush.msra.mxu0 %v242
  %1365 = vmatpush.msra.mxu0 %v241
  %1366 = vmatpush.msra.mxu0 %v240
  %1367 = vmatpush.msra.mxu0 %v239
  %1368 = vmatpush.msra.mxu0 %v238
  %1369 = vmatpush.msra.mxu0 %v237
  %1370 = vmatpush.msra.mxu0 %v236
  %1371 = vmatpush.msra.mxu0 %v235
  %1372 = vmatmul.f32.gmra.mxu0 %v1191
  %v1373 = vpop.f32.mrf.mxu0
  %v1374 = vadd.f32 %v1351, %v1373
  %1375 = vmatmul.f32.gmra.mxu0 %v1207
  %v1376 = vpop.f32.mrf.mxu0
  %v1377 = vadd.f32 %v1354, %v1376
  %1378 = vdwg.mxu0
  %1379 = vmatpush.msra.mxu0 %v266
  %1380 = vmatpush.msra.mxu0 %v265
  %1381 = vmatpush.msra.mxu0 %v264
  %1382 = vmatpush.msra.mxu0 %v263
  %1383 = vmatpush.msra.mxu0 %v262
  %1384 = vmatpush.msra.mxu0 %v261
  %1385 = vmatpush.msra.mxu0 %v260
  %1386 = vmatpush.msra.mxu0 %v259
  %1387 = vmatpush.msra.mxu0 %v258
  %1388 = vmatpush.msra.mxu0 %v257
  %1389 = vmatpush.msra.mxu0 %v256
  %1390 = vmatpush.msra.mxu0 %v255
  %1391 = vmatpush.msra.mxu0 %v254
  %1392 = vmatpush.msra.mxu0 %v253
  %1393 = vmatpush.msra.mxu0 %v252
  %1394 = vmatpush.msra.mxu0 %v251
  %1395 = vmatmul.f32.gmra.mxu0 %v1192
  %v1396 = vpop.f32.mrf.mxu0
  %v1397 = vadd.f32 %v1374, %v1396
  %1398 = vmatmul.f32.gmra.mxu0 %v1208
  %v1399 = vpop.f32.mrf.mxu0
  %v1400 = vadd.f32 %v1377, %v1399
  %1401 = vdwg.mxu0
  %1402 = vmatpush.msra.mxu0 %v282
  %1403 = vmatpush.msra.mxu0 %v281
  %1404 = vmatpush.msra.mxu0 %v280
  %1405 = vmatpush.msra.mxu0 %v279
  %1406 = vmatpush.msra.mxu0 %v278
  %1407 = vmatpush.msra.mxu0 %v277
  %1408 = vmatpush.msra.mxu0 %v276
  %1409 = vmatpush.msra.mxu0 %v275
  %1410 = vmatpush.msra.mxu0 %v274
  %1411 = vmatpush.msra.mxu0 %v273
  %1412 = vmatpush.msra.mxu0 %v272
  %1413 = vmatpush.msra.mxu0 %v271
  %1414 = vmatpush.msra.mxu0 %v270
  %1415 = vmatpush.msra.mxu0 %v269
  %1416 = vmatpush.msra.mxu0 %v268
  %1417 = vmatpush.msra.mxu0 %v267
  %1418 = vmatmul.f32.gmra.mxu0 %v1193
  %v1419 = vpop.f32.mrf.mxu0
  %v1420 = vadd.f32 %v1397, %v1419
  %1421 = vmatmul.f32.gmra.mxu0 %v1209
  %v1422 = vpop.f32.mrf.mxu0
  %v1423 = vadd.f32 %v1400, %v1422
  %1424 = vdwg.mxu0
  %1425 = vmatpush.msra.mxu0 %v298
  %1426 = vmatpush.msra.mxu0 %v297
  %1427 = vmatpush.msra.mxu0 %v296
  %1428 = vmatpush.msra.mxu0 %v295
  %1429 = vmatpush.msra.mxu0 %v294
  %1430 = vmatpush.msra.mxu0 %v293
  %1431 = vmatpush.msra.mxu0 %v292
  %1432 = vmatpush.msra.mxu0 %v291
  %1433 = vmatpush.msra.mxu0 %v290
  %1434 = vmatpush.msra.mxu0 %v289
  %1435 = vmatpush.msra.mxu0 %v288
  %1436 = vmatpush.msra.mxu0 %v287
  %1437 = vmatpush.msra.mxu0 %v286
  %1438 = vmatpush.msra.mxu0 %v285
  %1439 = vmatpush.msra.mxu0 %v284
  %1440 = vmatpush.msra.mxu0 %v283
  %1441 = vmatmul.f32.gmra.mxu0 %v1194
  %v1442 = vpop.f32.mrf.mxu0
  %v1443 = vadd.f32 %v1420, %v1442
  %1444 = vmatmul.f32.gmra.mxu0 %v1210
  %v1445 = vpop.f32.mrf.mxu0
  %v1446 = vadd.f32 %v1423, %v1445
  %1447 = vdwg.mxu0
  %1448 = vmatpush.msra.mxu0 %v314
  %1449 = vmatpush.msra.mxu0 %v313
  %1450 = vmatpush.msra.mxu0 %v312
  %1451 = vmatpush.msra.mxu0 %v311
  %1452 = vmatpush.msra.mxu0 %v310
  %1453 = vmatpush.msra.mxu0 %v309
  %1454 = vmatpush.msra.mxu0 %v308
  %1455 = vmatpush.msra.mxu0 %v307
  %1456 = vmatpush.msra.mxu0 %v306
  %1457 = vmatpush.msra.mxu0 %v305
  %1458 = vmatpush.msra.mxu0 %v304
  %1459 = vmatpush.msra.mxu0 %v303
  %1460 = vmatpush.msra.mxu0 %v302
  %1461 = vmatpush.msra.mxu0 %v301
  %1462 = vmatpush.msra.mxu0 %v300
  %1463 = vmatpush.msra.mxu0 %v299
  %1464 = vmatmul.f32.gmra.mxu0 %v1195
  %v1465 = vpop.f32.mrf.mxu0
  %v1466 = vadd.f32 %v1443, %v1465
  %1467 = vmatmul.f32.gmra.mxu0 %v1211
  %v1468 = vpop.f32.mrf.mxu0
  %v1469 = vadd.f32 %v1446, %v1468
  %1470 = vdwg.mxu0
  %1471 = vmatpush.msra.mxu0 %v330
  %1472 = vmatpush.msra.mxu0 %v329
  %1473 = vmatpush.msra.mxu0 %v328
  %1474 = vmatpush.msra.mxu0 %v327
  %1475 = vmatpush.msra.mxu0 %v326
  %1476 = vmatpush.msra.mxu0 %v325
  %1477 = vmatpush.msra.mxu0 %v324
  %1478 = vmatpush.msra.mxu0 %v323
  %1479 = vmatpush.msra.mxu0 %v322
  %1480 = vmatpush.msra.mxu0 %v321
  %1481 = vmatpush.msra.mxu0 %v320
  %1482 = vmatpush.msra.mxu0 %v319
  %1483 = vmatpush.msra.mxu0 %v318
  %1484 = vmatpush.msra.mxu0 %v317
  %1485 = vmatpush.msra.mxu0 %v316
  %1486 = vmatpush.msra.mxu0 %v315
  %1487 = vmatmul.f32.gmra.mxu0 %v1196
  %v1488 = vpop.f32.mrf.mxu0
  %v1489 = vadd.f32 %v1466, %v1488
  %1490 = vmatmul.f32.gmra.mxu0 %v1212
  %v1491 = vpop.f32.mrf.mxu0
  %v1492 = vadd.f32 %v1469, %v1491
  %1493 = vdwg.mxu0
  %1494 = vmatpush.msra.mxu0 %v346
  %1495 = vmatpush.msra.mxu0 %v345
  %1496 = vmatpush.msra.mxu0 %v344
  %1497 = vmatpush.msra.mxu0 %v343
  %1498 = vmatpush.msra.mxu0 %v342
  %1499 = vmatpush.msra.mxu0 %v341
  %1500 = vmatpush.msra.mxu0 %v340
  %1501 = vmatpush.msra.mxu0 %v339
  %1502 = vmatpush.msra.mxu0 %v338
  %1503 = vmatpush.msra.mxu0 %v337
  %1504 = vmatpush.msra.mxu0 %v336
  %1505 = vmatpush.msra.mxu0 %v335
  %1506 = vmatpush.msra.mxu0 %v334
  %1507 = vmatpush.msra.mxu0 %v333
  %1508 = vmatpush.msra.mxu0 %v332
  %1509 = vmatpush.msra.mxu0 %v331
  %1510 = vmatmul.f32.gmra.mxu0 %v1197
  %v1511 = vpop.f32.mrf.mxu0
  %v1512 = vadd.f32 %v1489, %v1511
  %1513 = vmatmul.f32.gmra.mxu0 %v1213
  %v1514 = vpop.f32.mrf.mxu0
  %v1515 = vadd.f32 %v1492, %v1514
  %1516 = vdwg.mxu0
  %1517 = vmatpush.msra.mxu0 %v362
  %1518 = vmatpush.msra.mxu0 %v361
  %1519 = vmatpush.msra.mxu0 %v360
  %1520 = vmatpush.msra.mxu0 %v359
  %1521 = vmatpush.msra.mxu0 %v358
  %1522 = vmatpush.msra.mxu0 %v357
  %1523 = vmatpush.msra.mxu0 %v356
  %1524 = vmatpush.msra.mxu0 %v355
  %1525 = vmatpush.msra.mxu0 %v354
  %1526 = vmatpush.msra.mxu0 %v353
  %1527 = vmatpush.msra.mxu0 %v352
  %1528 = vmatpush.msra.mxu0 %v351
  %1529 = vmatpush.msra.mxu0 %v350
  %1530 = vmatpush.msra.mxu0 %v349
  %1531 = vmatpush.msra.mxu0 %v348
  %1532 = vmatpush.msra.mxu0 %v347
  %1533 = vmatmul.f32.gmra.mxu0 %v1198
  %v1534 = vpop.f32.mrf.mxu0
  %v1535 = vadd.f32 %v1512, %v1534
  %1536 = vmatmul.f32.gmra.mxu0 %v1214
  %v1537 = vpop.f32.mrf.mxu0
  %v1538 = vadd.f32 %v1515, %v1537
  %1539 = vdwg.mxu0
  %1540 = vmatpush.msra.mxu0 %v378
  %1541 = vmatpush.msra.mxu0 %v377
  %1542 = vmatpush.msra.mxu0 %v376
  %1543 = vmatpush.msra.mxu0 %v375
  %1544 = vmatpush.msra.mxu0 %v374
  %1545 = vmatpush.msra.mxu0 %v373
  %1546 = vmatpush.msra.mxu0 %v372
  %1547 = vmatpush.msra.mxu0 %v371
  %1548 = vmatpush.msra.mxu0 %v370
  %1549 = vmatpush.msra.mxu0 %v369
  %1550 = vmatpush.msra.mxu0 %v368
  %1551 = vmatpush.msra.mxu0 %v367
  %1552 = vmatpush.msra.mxu0 %v366
  %1553 = vmatpush.msra.mxu0 %v365
  %1554 = vmatpush.msra.mxu0 %v364
  %1555 = vmatpush.msra.mxu0 %v363
  %1556 = vmatmul.f32.gmra.mxu0 %v1199
  %v1557 = vpop.f32.mrf.mxu0
  %v1558 = vadd.f32 %v1535, %v1557
  %1559 = vmatmul.f32.gmra.mxu0 %v1215
  %v1560 = vpop.f32.mrf.mxu0
  %v1561 = vadd.f32 %v1538, %v1560
  %1562 = vdwg.mxu0
  %1563 = vmatpush.msra.mxu0 %v394
  %1564 = vmatpush.msra.mxu0 %v393
  %1565 = vmatpush.msra.mxu0 %v392
  %1566 = vmatpush.msra.mxu0 %v391
  %1567 = vmatpush.msra.mxu0 %v390
  %1568 = vmatpush.msra.mxu0 %v389
  %1569 = vmatpush.msra.mxu0 %v388
  %1570 = vmatpush.msra.mxu0 %v387
  %1571 = vmatpush.msra.mxu0 %v386
  %1572 = vmatpush.msra.mxu0 %v385
  %1573 = vmatpush.msra.mxu0 %v384
  %1574 = vmatpush.msra.mxu0 %v383
  %1575 = vmatpush.msra.mxu0 %v382
  %1576 = vmatpush.msra.mxu0 %v381
  %1577 = vmatpush.msra.mxu0 %v380
  %1578 = vmatpush.msra.mxu0 %v379
  %1579 = vmatmul.f32.gmra.mxu0 %v1200
  %v1580 = vpop.f32.mrf.mxu0
  %v1581 = vadd.f32 %v1558, %v1580
  %1582 = vmatmul.f32.gmra.mxu0 %v1216
  %v1583 = vpop.f32.mrf.mxu0
  %v1584 = vadd.f32 %v1561, %v1583
  %1585 = vdwg.mxu0
  %v1586 = vadd.f32 %v775, %v1581
  %v1587 = vadd.f32 %v776, %v1584
  %v1588 = vsel %vm399, %v1586, 0.0
  %1589 = vadd.xlane.f32.xlu0 %v1588
  %v1590 = vpop.xlane.xlu0 %1589
  %v1591 = vsel %vm399, %v1587, 0.0
  %1592 = vadd.xlane.f32.xlu0 %v1591
  %v1593 = vpop.xlane.xlu0 %1592
  %v1594 = vmul.f32 %v1590, %v732
  %v1595 = vmul.f32 %v1593, %v732
  %v1596 = vsub.f32 %v1586, %v1594
  %v1597 = vsub.f32 %v1587, %v1595
  %v1598 = vmul.f32 %v1596, %v1596
  %v1599 = vmul.f32 %v1597, %v1597
  %v1600 = vsel %vm399, %v1598, 0.0
  %1601 = vadd.xlane.f32.xlu0 %v1600
  %v1602 = vpop.xlane.xlu0 %1601
  %v1603 = vsel %vm399, %v1599, 0.0
  %1604 = vadd.xlane.f32.xlu0 %v1603
  %v1605 = vpop.xlane.xlu0 %1604
  %v1606 = vmul.f32 %v1602, %v732
  %v1607 = vmul.f32 %v1605, %v732
  %v1608 = vadd.f32 %v1606, 1e-05
  %v1609 = vadd.f32 %v1607, 1e-05
  %v1610 = vrsqrt.pop %v1608
  %v1611 = vmul.f32 %v1610, %v1608
  %v1612 = vmul.f32 %v1611, %v1610
  %v1613 = vmul.f32 0.5, %v1612
  %v1614 = vsub.f32 1.5, %v1613
  %v1615 = vmul.f32 %v1610, %v1614
  %vm1616 = vweird.f32 %v1608
  %vm1617 = vweird.f32 %v1610
  %vm1618 = vmor %vm1616, %vm1617
  %v1619 = vsel %vm1618, %v1610, %v1615
  %v1620 = vrsqrt.pop %v1609
  %v1621 = vmul.f32 %v1620, %v1609
  %v1622 = vmul.f32 %v1621, %v1620
  %v1623 = vmul.f32 0.5, %v1622
  %v1624 = vsub.f32 1.5, %v1623
  %v1625 = vmul.f32 %v1620, %v1624
  %vm1626 = vweird.f32 %v1609
  %vm1627 = vweird.f32 %v1620
  %vm1628 = vmor %vm1626, %vm1627
  %v1629 = vsel %vm1628, %v1620, %v1625
  %v1630 = vmul.f32 %v1596, %v1619
  %v1631 = vmul.f32 %v1597, %v1629
  %v1632 = vperm.slane %v395, 4
  %v1633 = vmul.f32 %v1630, %v1632
  %v1634 = vmul.f32 %v1631, %v1632
  %v1635 = vperm.slane %v395, 5
  %v1636 = vadd.f32 %v1633, %v1635
  %v1637 = vadd.f32 %v1634, %v1635
  %s1638 = scalar_lea.vmem %s2, 32
  %v1639 = vld [vmem:[%s1638] sm:$0xff]
  %v1640 = vld [vmem:[%s1638 + $0x8] sm:$0xff]
  %v1641 = vld [vmem:[%s1638 + $0x10] sm:$0xff]
  %v1642 = vld [vmem:[%s1638 + $0x18] sm:$0xff]
  %s1643 = scalar_lea.vmem %s3, 1
  %v1644 = vld [vmem:[%s1643] sm:$0x1]
  %s1645 = scalar_lea.vmem %s4, 32
  %v1646 = vld [vmem:[%s1645] sm:$0xff]
  %v1647 = vld [vmem:[%s1645 + $0x8] sm:$0xff]
  %v1648 = vld [vmem:[%s1645 + $0x10] sm:$0xff]
  %v1649 = vld [vmem:[%s1645 + $0x18] sm:$0xff]
  %s1650 = scalar_lea.vmem %s5, 512
  %v1651 = vld [vmem:[%s1650] sm:$0xff]
  %v1652 = vld [vmem:[%s1650 + $0x8] sm:$0xff]
  %v1653 = vld [vmem:[%s1650 + $0x10] sm:$0xff]
  %v1654 = vld [vmem:[%s1650 + $0x18] sm:$0xff]
  %v1655 = vld [vmem:[%s1650 + $0x20] sm:$0xff]
  %v1656 = vld [vmem:[%s1650 + $0x28] sm:$0xff]
  %v1657 = vld [vmem:[%s1650 + $0x30] sm:$0xff]
  %v1658 = vld [vmem:[%s1650 + $0x38] sm:$0xff]
  %v1659 = vld [vmem:[%s1650 + $0x40] sm:$0xff]
  %v1660 = vld [vmem:[%s1650 + $0x48] sm:$0xff]
  %v1661 = vld [vmem:[%s1650 + $0x50] sm:$0xff]
  %v1662 = vld [vmem:[%s1650 + $0x58] sm:$0xff]
  %v1663 = vld [vmem:[%s1650 + $0x60] sm:$0xff]
  %v1664 = vld [vmem:[%s1650 + $0x68] sm:$0xff]
  %v1665 = vld [vmem:[%s1650 + $0x70] sm:$0xff]
  %v1666 = vld [vmem:[%s1650 + $0x78] sm:$0xff]
  %v1667 = vld [vmem:[%s1650 + $0x80] sm:$0xff]
  %v1668 = vld [vmem:[%s1650 + $0x88] sm:$0xff]
  %v1669 = vld [vmem:[%s1650 + $0x90] sm:$0xff]
  %v1670 = vld [vmem:[%s1650 + $0x98] sm:$0xff]
  %v1671 = vld [vmem:[%s1650 + $0xa0] sm:$0xff]
  %v1672 = vld [vmem:[%s1650 + $0xa8] sm:$0xff]
  %v1673 = vld [vmem:[%s1650 + $0xb0] sm:$0xff]
  %v1674 = vld [vmem:[%s1650 + $0xb8] sm:$0xff]
  %v1675 = vld [vmem:[%s1650 + $0xc0] sm:$0xff]
  %v1676 = vld [vmem:[%s1650 + $0xc8] sm:$0xff]
  %v1677 = vld [vmem:[%s1650 + $0xd0] sm:$0xff]
  %v1678 = vld [vmem:[%s1650 + $0xd8] sm:$0xff]
  %v1679 = vld [vmem:[%s1650 + $0xe0] sm:$0xff]
  %v1680 = vld [vmem:[%s1650 + $0xe8] sm:$0xff]
  %v1681 = vld [vmem:[%s1650 + $0xf0] sm:$0xff]
  %v1682 = vld [vmem:[%s1650 + $0xf8] sm:$0xff]
  %v1683 = vld [vmem:[%s1650 + $0x100] sm:$0xff]
  %v1684 = vld [vmem:[%s1650 + $0x108] sm:$0xff]
  %v1685 = vld [vmem:[%s1650 + $0x110] sm:$0xff]
  %v1686 = vld [vmem:[%s1650 + $0x118] sm:$0xff]
  %v1687 = vld [vmem:[%s1650 + $0x120] sm:$0xff]
  %v1688 = vld [vmem:[%s1650 + $0x128] sm:$0xff]
  %v1689 = vld [vmem:[%s1650 + $0x130] sm:$0xff]
  %v1690 = vld [vmem:[%s1650 + $0x138] sm:$0xff]
  %v1691 = vld [vmem:[%s1650 + $0x140] sm:$0xff]
  %v1692 = vld [vmem:[%s1650 + $0x148] sm:$0xff]
  %v1693 = vld [vmem:[%s1650 + $0x150] sm:$0xff]
  %v1694 = vld [vmem:[%s1650 + $0x158] sm:$0xff]
  %v1695 = vld [vmem:[%s1650 + $0x160] sm:$0xff]
  %v1696 = vld [vmem:[%s1650 + $0x168] sm:$0xff]
  %v1697 = vld [vmem:[%s1650 + $0x170] sm:$0xff]
  %v1698 = vld [vmem:[%s1650 + $0x178] sm:$0xff]
  %v1699 = vld [vmem:[%s1650 + $0x180] sm:$0xff]
  %v1700 = vld [vmem:[%s1650 + $0x188] sm:$0xff]
  %v1701 = vld [vmem:[%s1650 + $0x190] sm:$0xff]
  %v1702 = vld [vmem:[%s1650 + $0x198] sm:$0xff]
  %v1703 = vld [vmem:[%s1650 + $0x1a0] sm:$0xff]
  %v1704 = vld [vmem:[%s1650 + $0x1a8] sm:$0xff]
  %v1705 = vld [vmem:[%s1650 + $0x1b0] sm:$0xff]
  %v1706 = vld [vmem:[%s1650 + $0x1b8] sm:$0xff]
  %v1707 = vld [vmem:[%s1650 + $0x1c0] sm:$0xff]
  %v1708 = vld [vmem:[%s1650 + $0x1c8] sm:$0xff]
  %v1709 = vld [vmem:[%s1650 + $0x1d0] sm:$0xff]
  %v1710 = vld [vmem:[%s1650 + $0x1d8] sm:$0xff]
  %v1711 = vld [vmem:[%s1650 + $0x1e0] sm:$0xff]
  %v1712 = vld [vmem:[%s1650 + $0x1e8] sm:$0xff]
  %v1713 = vld [vmem:[%s1650 + $0x1f0] sm:$0xff]
  %v1714 = vld [vmem:[%s1650 + $0x1f8] sm:$0xff]
  %s1715 = scalar_lea.vmem %s6, 16
  %v1716 = vld [vmem:[%s1715] sm:$0xff]
  %v1717 = vld [vmem:[%s1715 + $0x8] sm:$0xff]
  %s1718 = scalar_lea.vmem %s7, 2048
  %v1719 = vld [vmem:[%s1718] sm:$0xff]
  %v1720 = vld [vmem:[%s1718 + $0x8] sm:$0xff]
  %v1721 = vld [vmem:[%s1718 + $0x10] sm:$0xff]
  %v1722 = vld [vmem:[%s1718 + $0x18] sm:$0xff]
  %v1723 = vld [vmem:[%s1718 + $0x20] sm:$0xff]
  %v1724 = vld [vmem:[%s1718 + $0x28] sm:$0xff]
  %v1725 = vld [vmem:[%s1718 + $0x30] sm:$0xff]
  %v1726 = vld [vmem:[%s1718 + $0x38] sm:$0xff]
  %v1727 = vld [vmem:[%s1718 + $0x40] sm:$0xff]
  %v1728 = vld [vmem:[%s1718 + $0x48] sm:$0xff]
  %v1729 = vld [vmem:[%s1718 + $0x50] sm:$0xff]
  %v1730 = vld [vmem:[%s1718 + $0x58] sm:$0xff]
  %v1731 = vld [vmem:[%s1718 + $0x60] sm:$0xff]
  %v1732 = vld [vmem:[%s1718 + $0x68] sm:$0xff]
  %v1733 = vld [vmem:[%s1718 + $0x70] sm:$0xff]
  %v1734 = vld [vmem:[%s1718 + $0x78] sm:$0xff]
  %v1735 = vld [vmem:[%s1718 + $0x80] sm:$0xff]
  %v1736 = vld [vmem:[%s1718 + $0x88] sm:$0xff]
  %v1737 = vld [vmem:[%s1718 + $0x90] sm:$0xff]
  %v1738 = vld [vmem:[%s1718 + $0x98] sm:$0xff]
  %v1739 = vld [vmem:[%s1718 + $0xa0] sm:$0xff]
  %v1740 = vld [vmem:[%s1718 + $0xa8] sm:$0xff]
  %v1741 = vld [vmem:[%s1718 + $0xb0] sm:$0xff]
  %v1742 = vld [vmem:[%s1718 + $0xb8] sm:$0xff]
  %v1743 = vld [vmem:[%s1718 + $0xc0] sm:$0xff]
  %v1744 = vld [vmem:[%s1718 + $0xc8] sm:$0xff]
  %v1745 = vld [vmem:[%s1718 + $0xd0] sm:$0xff]
  %v1746 = vld [vmem:[%s1718 + $0xd8] sm:$0xff]
  %v1747 = vld [vmem:[%s1718 + $0xe0] sm:$0xff]
  %v1748 = vld [vmem:[%s1718 + $0xe8] sm:$0xff]
  %v1749 = vld [vmem:[%s1718 + $0xf0] sm:$0xff]
  %v1750 = vld [vmem:[%s1718 + $0xf8] sm:$0xff]
  %v1751 = vld [vmem:[%s1718 + $0x100] sm:$0xff]
  %v1752 = vld [vmem:[%s1718 + $0x108] sm:$0xff]
  %v1753 = vld [vmem:[%s1718 + $0x110] sm:$0xff]
  %v1754 = vld [vmem:[%s1718 + $0x118] sm:$0xff]
  %v1755 = vld [vmem:[%s1718 + $0x120] sm:$0xff]
  %v1756 = vld [vmem:[%s1718 + $0x128] sm:$0xff]
  %v1757 = vld [vmem:[%s1718 + $0x130] sm:$0xff]
  %v1758 = vld [vmem:[%s1718 + $0x138] sm:$0xff]
  %v1759 = vld [vmem:[%s1718 + $0x140] sm:$0xff]
  %v1760 = vld [vmem:[%s1718 + $0x148] sm:$0xff]
  %v1761 = vld [vmem:[%s1718 + $0x150] sm:$0xff]
  %v1762 = vld [vmem:[%s1718 + $0x158] sm:$0xff]
  %v1763 = vld [vmem:[%s1718 + $0x160] sm:$0xff]
  %v1764 = vld [vmem:[%s1718 + $0x168] sm:$0xff]
  %v1765 = vld [vmem:[%s1718 + $0x170] sm:$0xff]
  %v1766 = vld [vmem:[%s1718 + $0x178] sm:$0xff]
  %v1767 = vld [vmem:[%s1718 + $0x180] sm:$0xff]
  %v1768 = vld [vmem:[%s1718 + $0x188] sm:$0xff]
  %v1769 = vld [vmem:[%s1718 + $0x190] sm:$0xff]
  %v1770 = vld [vmem:[%s1718 + $0x198] sm:$0xff]
  %v1771 = vld [vmem:[%s1718 + $0x1a0] sm:$0xff]
  %v1772 = vld [vmem:[%s1718 + $0x1a8] sm:$0xff]
  %v1773 = vld [vmem:[%s1718 + $0x1b0] sm:$0xff]
  %v1774 = vld [vmem:[%s1718 + $0x1b8] sm:$0xff]
  %v1775 = vld [vmem:[%s1718 + $0x1c0] sm:$0xff]
  %v1776 = vld [vmem:[%s1718 + $0x1c8] sm:$0xff]
  %v1777 = vld [vmem:[%s1718 + $0x1d0] sm:$0xff]
  %v1778 = vld [vmem:[%s1718 + $0x1d8] sm:$0xff]
  %v1779 = vld [vmem:[%s1718 + $0x1e0] sm:$0xff]
  %v1780 = vld [vmem:[%s1718 + $0x1e8] sm:$0xff]
  %v1781 = vld [vmem:[%s1718 + $0x1f0] sm:$0xff]
  %v1782 = vld [vmem:[%s1718 + $0x1f8] sm:$0xff]
  %v1783 = vld [vmem:[%s1718 + $0x200] sm:$0xff]
  %v1784 = vld [vmem:[%s1718 + $0x208] sm:$0xff]
  %v1785 = vld [vmem:[%s1718 + $0x210] sm:$0xff]
  %v1786 = vld [vmem:[%s1718 + $0x218] sm:$0xff]
  %v1787 = vld [vmem:[%s1718 + $0x220] sm:$0xff]
  %v1788 = vld [vmem:[%s1718 + $0x228] sm:$0xff]
  %v1789 = vld [vmem:[%s1718 + $0x230] sm:$0xff]
  %v1790 = vld [vmem:[%s1718 + $0x238] sm:$0xff]
  %v1791 = vld [vmem:[%s1718 + $0x240] sm:$0xff]
  %v1792 = vld [vmem:[%s1718 + $0x248] sm:$0xff]
  %v1793 = vld [vmem:[%s1718 + $0x250] sm:$0xff]
  %v1794 = vld [vmem:[%s1718 + $0x258] sm:$0xff]
  %v1795 = vld [vmem:[%s1718 + $0x260] sm:$0xff]
  %v1796 = vld [vmem:[%s1718 + $0x268] sm:$0xff]
  %v1797 = vld [vmem:[%s1718 + $0x270] sm:$0xff]
  %v1798 = vld [vmem:[%s1718 + $0x278] sm:$0xff]
  %v1799 = vld [vmem:[%s1718 + $0x280] sm:$0xff]
  %v1800 = vld [vmem:[%s1718 + $0x288] sm:$0xff]
  %v1801 = vld [vmem:[%s1718 + $0x290] sm:$0xff]
  %v1802 = vld [vmem:[%s1718 + $0x298] sm:$0xff]
  %v1803 = vld [vmem:[%s1718 + $0x2a0] sm:$0xff]
  %v1804 = vld [vmem:[%s1718 + $0x2a8] sm:$0xff]
  %v1805 = vld [vmem:[%s1718 + $0x2b0] sm:$0xff]
  %v1806 = vld [vmem:[%s1718 + $0x2b8] sm:$0xff]
  %v1807 = vld [vmem:[%s1718 + $0x2c0] sm:$0xff]
  %v1808 = vld [vmem:[%s1718 + $0x2c8] sm:$0xff]
  %v1809 = vld [vmem:[%s1718 + $0x2d0] sm:$0xff]
  %v1810 = vld [vmem:[%s1718 + $0x2d8] sm:$0xff]
  %v1811 = vld [vmem:[%s1718 + $0x2e0] sm:$0xff]
  %v1812 = vld [vmem:[%s1718 + $0x2e8] sm:$0xff]
  %v1813 = vld [vmem:[%s1718 + $0x2f0] sm:$0xff]
  %v1814 = vld [vmem:[%s1718 + $0x2f8] sm:$0xff]
  %v1815 = vld [vmem:[%s1718 + $0x300] sm:$0xff]
  %v1816 = vld [vmem:[%s1718 + $0x308] sm:$0xff]
  %v1817 = vld [vmem:[%s1718 + $0x310] sm:$0xff]
  %v1818 = vld [vmem:[%s1718 + $0x318] sm:$0xff]
  %v1819 = vld [vmem:[%s1718 + $0x320] sm:$0xff]
  %v1820 = vld [vmem:[%s1718 + $0x328] sm:$0xff]
  %v1821 = vld [vmem:[%s1718 + $0x330] sm:$0xff]
  %v1822 = vld [vmem:[%s1718 + $0x338] sm:$0xff]
  %v1823 = vld [vmem:[%s1718 + $0x340] sm:$0xff]
  %v1824 = vld [vmem:[%s1718 + $0x348] sm:$0xff]
  %v1825 = vld [vmem:[%s1718 + $0x350] sm:$0xff]
  %v1826 = vld [vmem:[%s1718 + $0x358] sm:$0xff]
  %v1827 = vld [vmem:[%s1718 + $0x360] sm:$0xff]
  %v1828 = vld [vmem:[%s1718 + $0x368] sm:$0xff]
  %v1829 = vld [vmem:[%s1718 + $0x370] sm:$0xff]
  %v1830 = vld [vmem:[%s1718 + $0x378] sm:$0xff]
  %v1831 = vld [vmem:[%s1718 + $0x380] sm:$0xff]
  %v1832 = vld [vmem:[%s1718 + $0x388] sm:$0xff]
  %v1833 = vld [vmem:[%s1718 + $0x390] sm:$0xff]
  %v1834 = vld [vmem:[%s1718 + $0x398] sm:$0xff]
  %v1835 = vld [vmem:[%s1718 + $0x3a0] sm:$0xff]
  %v1836 = vld [vmem:[%s1718 + $0x3a8] sm:$0xff]
  %v1837 = vld [vmem:[%s1718 + $0x3b0] sm:$0xff]
  %v1838 = vld [vmem:[%s1718 + $0x3b8] sm:$0xff]
  %v1839 = vld [vmem:[%s1718 + $0x3c0] sm:$0xff]
  %v1840 = vld [vmem:[%s1718 + $0x3c8] sm:$0xff]
  %v1841 = vld [vmem:[%s1718 + $0x3d0] sm:$0xff]
  %v1842 = vld [vmem:[%s1718 + $0x3d8] sm:$0xff]
  %v1843 = vld [vmem:[%s1718 + $0x3e0] sm:$0xff]
  %v1844 = vld [vmem:[%s1718 + $0x3e8] sm:$0xff]
  %v1845 = vld [vmem:[%s1718 + $0x3f0] sm:$0xff]
  %v1846 = vld [vmem:[%s1718 + $0x3f8] sm:$0xff]
  %v1847 = vld [vmem:[%s1718 + $0x400] sm:$0xff]
  %v1848 = vld [vmem:[%s1718 + $0x408] sm:$0xff]
  %v1849 = vld [vmem:[%s1718 + $0x410] sm:$0xff]
  %v1850 = vld [vmem:[%s1718 + $0x418] sm:$0xff]
  %v1851 = vld [vmem:[%s1718 + $0x420] sm:$0xff]
  %v1852 = vld [vmem:[%s1718 + $0x428] sm:$0xff]
  %v1853 = vld [vmem:[%s1718 + $0x430] sm:$0xff]
  %v1854 = vld [vmem:[%s1718 + $0x438] sm:$0xff]
  %v1855 = vld [vmem:[%s1718 + $0x440] sm:$0xff]
  %v1856 = vld [vmem:[%s1718 + $0x448] sm:$0xff]
  %v1857 = vld [vmem:[%s1718 + $0x450] sm:$0xff]
  %v1858 = vld [vmem:[%s1718 + $0x458] sm:$0xff]
  %v1859 = vld [vmem:[%s1718 + $0x460] sm:$0xff]
  %v1860 = vld [vmem:[%s1718 + $0x468] sm:$0xff]
  %v1861 = vld [vmem:[%s1718 + $0x470] sm:$0xff]
  %v1862 = vld [vmem:[%s1718 + $0x478] sm:$0xff]
  %v1863 = vld [vmem:[%s1718 + $0x480] sm:$0xff]
  %v1864 = vld [vmem:[%s1718 + $0x488] sm:$0xff]
  %v1865 = vld [vmem:[%s1718 + $0x490] sm:$0xff]
  %v1866 = vld [vmem:[%s1718 + $0x498] sm:$0xff]
  %v1867 = vld [vmem:[%s1718 + $0x4a0] sm:$0xff]
  %v1868 = vld [vmem:[%s1718 + $0x4a8] sm:$0xff]
  %v1869 = vld [vmem:[%s1718 + $0x4b0] sm:$0xff]
  %v1870 = vld [vmem:[%s1718 + $0x4b8] sm:$0xff]
  %v1871 = vld [vmem:[%s1718 + $0x4c0] sm:$0xff]
  %v1872 = vld [vmem:[%s1718 + $0x4c8] sm:$0xff]
  %v1873 = vld [vmem:[%s1718 + $0x4d0] sm:$0xff]
  %v1874 = vld [vmem:[%s1718 + $0x4d8] sm:$0xff]
  %v1875 = vld [vmem:[%s1718 + $0x4e0] sm:$0xff]
  %v1876 = vld [vmem:[%s1718 + $0x4e8] sm:$0xff]
  %v1877 = vld [vmem:[%s1718 + $0x4f0] sm:$0xff]
  %v1878 = vld [vmem:[%s1718 + $0x4f8] sm:$0xff]
  %v1879 = vld [vmem:[%s1718 + $0x500] sm:$0xff]
  %v1880 = vld [vmem:[%s1718 + $0x508] sm:$0xff]
  %v1881 = vld [vmem:[%s1718 + $0x510] sm:$0xff]
  %v1882 = vld [vmem:[%s1718 + $0x518] sm:$0xff]
  %v1883 = vld [vmem:[%s1718 + $0x520] sm:$0xff]
  %v1884 = vld [vmem:[%s1718 + $0x528] sm:$0xff]
  %v1885 = vld [vmem:[%s1718 + $0x530] sm:$0xff]
  %v1886 = vld [vmem:[%s1718 + $0x538] sm:$0xff]
  %v1887 = vld [vmem:[%s1718 + $0x540] sm:$0xff]
  %v1888 = vld [vmem:[%s1718 + $0x548] sm:$0xff]
  %v1889 = vld [vmem:[%s1718 + $0x550] sm:$0xff]
  %v1890 = vld [vmem:[%s1718 + $0x558] sm:$0xff]
  %v1891 = vld [vmem:[%s1718 + $0x560] sm:$0xff]
  %v1892 = vld [vmem:[%s1718 + $0x568] sm:$0xff]
  %v1893 = vld [vmem:[%s1718 + $0x570] sm:$0xff]
  %v1894 = vld [vmem:[%s1718 + $0x578] sm:$0xff]
  %v1895 = vld [vmem:[%s1718 + $0x580] sm:$0xff]
  %v1896 = vld [vmem:[%s1718 + $0x588] sm:$0xff]
  %v1897 = vld [vmem:[%s1718 + $0x590] sm:$0xff]
  %v1898 = vld [vmem:[%s1718 + $0x598] sm:$0xff]
  %v1899 = vld [vmem:[%s1718 + $0x5a0] sm:$0xff]
  %v1900 = vld [vmem:[%s1718 + $0x5a8] sm:$0xff]
  %v1901 = vld [vmem:[%s1718 + $0x5b0] sm:$0xff]
  %v1902 = vld [vmem:[%s1718 + $0x5b8] sm:$0xff]
  %v1903 = vld [vmem:[%s1718 + $0x5c0] sm:$0xff]
  %v1904 = vld [vmem:[%s1718 + $0x5c8] sm:$0xff]
  %v1905 = vld [vmem:[%s1718 + $0x5d0] sm:$0xff]
  %v1906 = vld [vmem:[%s1718 + $0x5d8] sm:$0xff]
  %v1907 = vld [vmem:[%s1718 + $0x5e0] sm:$0xff]
  %v1908 = vld [vmem:[%s1718 + $0x5e8] sm:$0xff]
  %v1909 = vld [vmem:[%s1718 + $0x5f0] sm:$0xff]
  %v1910 = vld [vmem:[%s1718 + $0x5f8] sm:$0xff]
  %v1911 = vld [vmem:[%s1718 + $0x600] sm:$0xff]
  %v1912 = vld [vmem:[%s1718 + $0x608] sm:$0xff]
  %v1913 = vld [vmem:[%s1718 + $0x610] sm:$0xff]
  %v1914 = vld [vmem:[%s1718 + $0x618] sm:$0xff]
  %v1915 = vld [vmem:[%s1718 + $0x620] sm:$0xff]
  %v1916 = vld [vmem:[%s1718 + $0x628] sm:$0xff]
  %v1917 = vld [vmem:[%s1718 + $0x630] sm:$0xff]
  %v1918 = vld [vmem:[%s1718 + $0x638] sm:$0xff]
  %v1919 = vld [vmem:[%s1718 + $0x640] sm:$0xff]
  %v1920 = vld [vmem:[%s1718 + $0x648] sm:$0xff]
  %v1921 = vld [vmem:[%s1718 + $0x650] sm:$0xff]
  %v1922 = vld [vmem:[%s1718 + $0x658] sm:$0xff]
  %v1923 = vld [vmem:[%s1718 + $0x660] sm:$0xff]
  %v1924 = vld [vmem:[%s1718 + $0x668] sm:$0xff]
  %v1925 = vld [vmem:[%s1718 + $0x670] sm:$0xff]
  %v1926 = vld [vmem:[%s1718 + $0x678] sm:$0xff]
  %v1927 = vld [vmem:[%s1718 + $0x680] sm:$0xff]
  %v1928 = vld [vmem:[%s1718 + $0x688] sm:$0xff]
  %v1929 = vld [vmem:[%s1718 + $0x690] sm:$0xff]
  %v1930 = vld [vmem:[%s1718 + $0x698] sm:$0xff]
  %v1931 = vld [vmem:[%s1718 + $0x6a0] sm:$0xff]
  %v1932 = vld [vmem:[%s1718 + $0x6a8] sm:$0xff]
  %v1933 = vld [vmem:[%s1718 + $0x6b0] sm:$0xff]
  %v1934 = vld [vmem:[%s1718 + $0x6b8] sm:$0xff]
  %v1935 = vld [vmem:[%s1718 + $0x6c0] sm:$0xff]
  %v1936 = vld [vmem:[%s1718 + $0x6c8] sm:$0xff]
  %v1937 = vld [vmem:[%s1718 + $0x6d0] sm:$0xff]
  %v1938 = vld [vmem:[%s1718 + $0x6d8] sm:$0xff]
  %v1939 = vld [vmem:[%s1718 + $0x6e0] sm:$0xff]
  %v1940 = vld [vmem:[%s1718 + $0x6e8] sm:$0xff]
  %v1941 = vld [vmem:[%s1718 + $0x6f0] sm:$0xff]
  %v1942 = vld [vmem:[%s1718 + $0x6f8] sm:$0xff]
  %v1943 = vld [vmem:[%s1718 + $0x700] sm:$0xff]
  %v1944 = vld [vmem:[%s1718 + $0x708] sm:$0xff]
  %v1945 = vld [vmem:[%s1718 + $0x710] sm:$0xff]
  %v1946 = vld [vmem:[%s1718 + $0x718] sm:$0xff]
  %v1947 = vld [vmem:[%s1718 + $0x720] sm:$0xff]
  %v1948 = vld [vmem:[%s1718 + $0x728] sm:$0xff]
  %v1949 = vld [vmem:[%s1718 + $0x730] sm:$0xff]
  %v1950 = vld [vmem:[%s1718 + $0x738] sm:$0xff]
  %v1951 = vld [vmem:[%s1718 + $0x740] sm:$0xff]
  %v1952 = vld [vmem:[%s1718 + $0x748] sm:$0xff]
  %v1953 = vld [vmem:[%s1718 + $0x750] sm:$0xff]
  %v1954 = vld [vmem:[%s1718 + $0x758] sm:$0xff]
  %v1955 = vld [vmem:[%s1718 + $0x760] sm:$0xff]
  %v1956 = vld [vmem:[%s1718 + $0x768] sm:$0xff]
  %v1957 = vld [vmem:[%s1718 + $0x770] sm:$0xff]
  %v1958 = vld [vmem:[%s1718 + $0x778] sm:$0xff]
  %v1959 = vld [vmem:[%s1718 + $0x780] sm:$0xff]
  %v1960 = vld [vmem:[%s1718 + $0x788] sm:$0xff]
  %v1961 = vld [vmem:[%s1718 + $0x790] sm:$0xff]
  %v1962 = vld [vmem:[%s1718 + $0x798] sm:$0xff]
  %v1963 = vld [vmem:[%s1718 + $0x7a0] sm:$0xff]
  %v1964 = vld [vmem:[%s1718 + $0x7a8] sm:$0xff]
  %v1965 = vld [vmem:[%s1718 + $0x7b0] sm:$0xff]
  %v1966 = vld [vmem:[%s1718 + $0x7b8] sm:$0xff]
  %v1967 = vld [vmem:[%s1718 + $0x7c0] sm:$0xff]
  %v1968 = vld [vmem:[%s1718 + $0x7c8] sm:$0xff]
  %v1969 = vld [vmem:[%s1718 + $0x7d0] sm:$0xff]
  %v1970 = vld [vmem:[%s1718 + $0x7d8] sm:$0xff]
  %v1971 = vld [vmem:[%s1718 + $0x7e0] sm:$0xff]
  %v1972 = vld [vmem:[%s1718 + $0x7e8] sm:$0xff]
  %v1973 = vld [vmem:[%s1718 + $0x7f0] sm:$0xff]
  %v1974 = vld [vmem:[%s1718 + $0x7f8] sm:$0xff]
  %s1975 = scalar_lea.vmem %s8, 8
  %v1976 = vld [vmem:[%s1975] sm:$0x3f]
  %v1978 = vperm.slane %v1644, 0
  %v1981 = vsel %vm399, %v1636, 0
  %v1984 = vsel %vm399, %v1637, 0
  %1986 = vmatpush.msra.mxu0 0.0
  %1987 = vmatpush.msra.mxu0 0.0
  %1988 = vmatpush.msra.mxu0 0.0
  %1989 = vmatpush.msra.mxu0 0.0
  %1990 = vmatpush.msra.mxu0 0.0
  %1991 = vmatpush.msra.mxu0 0.0
  %1992 = vmatpush.msra.mxu0 0.0
  %1993 = vmatpush.msra.mxu0 0.0
  %1994 = vmatpush.msra.mxu0 0.0
  %1995 = vmatpush.msra.mxu0 0.0
  %1996 = vmatpush.msra.mxu0 0.0
  %1997 = vmatpush.msra.mxu0 0.0
  %1998 = vmatpush.msra.mxu0 %v1642
  %1999 = vmatpush.msra.mxu0 %v1641
  %2000 = vmatpush.msra.mxu0 %v1640
  %2001 = vmatpush.msra.mxu0 %v1639
  %2002 = vmatmul.f32.gmra.mxu0 %v1981
  %v2003 = vpop.f32.mrf.mxu0
  %v2004 = vadd.f32 %v1978, %v2003
  %2005 = vmatmul.f32.gmra.mxu0 %v1984
  %v2006 = vpop.f32.mrf.mxu0
  %v2007 = vadd.f32 %v1978, %v2006
  %2008 = vdwg.mxu0
  %v2009 = vmul.f32 %v2004, 0.35355338
  %v2010 = vmul.f32 %v2007, 0.35355338
  %v2011 = vmul.f32 %v2009, %v48
  %v2012 = vmul.f32 %v2010, %v48
  %v2013 = vmul.f32 %v2009, %v53
  %v2014 = vmul.f32 %v2010, %v53
  %v2015 = vmul.f32 %v2009, %v58
  %v2016 = vmul.f32 %v2010, %v58
  %v2017 = vmul.f32 %v2009, %v63
  %v2018 = vmul.f32 %v2010, %v63
  %2021 = vrot.lane.b32.xlu0 %v2004, 96
  %v2022 = vpop.permute.xlu0 %2021
  %2023 = vrot.lane.b32.xlu0 %v2007, 96
  %v2024 = vpop.permute.xlu0 %2023
  %v2026 = vsel %vm399, %v2011, 0
  %v2029 = vsel %vm399, %v2012, 0
  %v2032 = vsel %vm399, %v2013, 0
  %v2035 = vsel %vm399, %v2014, 0
  %v2038 = vsel %vm399, %v2015, 0
  %v2041 = vsel %vm399, %v2016, 0
  %v2044 = vsel %vm399, %v2017, 0
  %v2047 = vsel %vm399, %v2018, 0
  %v2049 = vsel %vm399, %v2022, 0
  %v2051 = vsel %vm399, %v2024, 0
  %2053 = vmatpush.xpose.msra.mxu0 0.0
  %2054 = vmatpush.xpose.msra.mxu0 0.0
  %2055 = vmatpush.xpose.msra.mxu0 0.0
  %2056 = vmatpush.xpose.msra.mxu0 0.0
  %2057 = vmatpush.xpose.msra.mxu0 0.0
  %2058 = vmatpush.xpose.msra.mxu0 0.0
  %2059 = vmatpush.xpose.msra.mxu0 0.0
  %2060 = vmatpush.xpose.msra.mxu0 0.0
  %2061 = vmatpush.xpose.msra.mxu0 0.0
  %2062 = vmatpush.xpose.msra.mxu0 0.0
  %2063 = vmatpush.xpose.msra.mxu0 0.0
  %2064 = vmatpush.xpose.msra.mxu0 0.0
  %2065 = vmatpush.xpose.msra.mxu0 0.0
  %2066 = vmatpush.xpose.msra.mxu0 0.0
  %2067 = vmatpush.xpose.msra.mxu0 %v2051
  %2068 = vmatpush.xpose.msra.mxu0 %v2049
  %2069 = vmatmul.f32.gmra.mxu0 %v2026
  %v2070 = vpop.f32.mrf.mxu0
  %v2071 = vadd.f32 %v34, %v2070
  %2072 = vmatmul.f32.gmra.mxu0 %v2029
  %v2073 = vpop.f32.mrf.mxu0
  %v2074 = vadd.f32 %v35, %v2073
  %2075 = vmatmul.f32.gmra.mxu0 %v2032
  %v2076 = vpop.f32.mrf.mxu0
  %v2077 = vadd.f32 %v36, %v2076
  %2078 = vmatmul.f32.gmra.mxu0 %v2035
  %v2079 = vpop.f32.mrf.mxu0
  %v2080 = vadd.f32 %v37, %v2079
  %2081 = vmatmul.f32.gmra.mxu0 %v2038
  %v2082 = vpop.f32.mrf.mxu0
  %v2083 = vadd.f32 %v38, %v2082
  %2084 = vmatmul.f32.gmra.mxu0 %v2041
  %v2085 = vpop.f32.mrf.mxu0
  %v2086 = vadd.f32 %v39, %v2085
  %2087 = vmatmul.f32.gmra.mxu0 %v2044
  %v2088 = vpop.f32.mrf.mxu0
  %v2089 = vadd.f32 %v40, %v2088
  %2090 = vmatmul.f32.gmra.mxu0 %v2047
  %v2091 = vpop.f32.mrf.mxu0
  %v2092 = vadd.f32 %v41, %v2091
  %2093 = vdwg.mxu0
  %v2094 = vsel %vm514, %v2071, -inf
  %2095 = vmax.xlane.f32.xlu0 %v2094
  %v2096 = vpop.xlane.xlu0 %2095
  %v2097 = vsel %vm514, %v2074, -inf
  %2098 = vmax.xlane.f32.xlu0 %v2097
  %v2099 = vpop.xlane.xlu0 %2098
  %v2100 = vsel %vm514, %v2077, -inf
  %2101 = vmax.xlane.f32.xlu0 %v2100
  %v2102 = vpop.xlane.xlu0 %2101
  %v2103 = vsel %vm514, %v2080, -inf
  %2104 = vmax.xlane.f32.xlu0 %v2103
  %v2105 = vpop.xlane.xlu0 %2104
  %v2106 = vsel %vm514, %v2083, -inf
  %2107 = vmax.xlane.f32.xlu0 %v2106
  %v2108 = vpop.xlane.xlu0 %2107
  %v2109 = vsel %vm514, %v2086, -inf
  %2110 = vmax.xlane.f32.xlu0 %v2109
  %v2111 = vpop.xlane.xlu0 %2110
  %v2112 = vsel %vm514, %v2089, -inf
  %2113 = vmax.xlane.f32.xlu0 %v2112
  %v2114 = vpop.xlane.xlu0 %2113
  %v2115 = vsel %vm514, %v2092, -inf
  %2116 = vmax.xlane.f32.xlu0 %v2115
  %v2117 = vpop.xlane.xlu0 %2116
  %v2118 = vsub.f32 %v2071, %v2096
  %v2119 = vsub.f32 %v2074, %v2099
  %v2120 = vsub.f32 %v2077, %v2102
  %v2121 = vsub.f32 %v2080, %v2105
  %v2122 = vsub.f32 %v2083, %v2108
  %v2123 = vsub.f32 %v2086, %v2111
  %v2124 = vsub.f32 %v2089, %v2114
  %v2125 = vsub.f32 %v2092, %v2117
  %v2126 = vmul.f32 %v2118, 1.442695
  %v2127 = vpow.pop %v2126
  %v2128 = vmul.f32 %v2119, 1.442695
  %v2129 = vpow.pop %v2128
  %v2130 = vmul.f32 %v2120, 1.442695
  %v2131 = vpow.pop %v2130
  %v2132 = vmul.f32 %v2121, 1.442695
  %v2133 = vpow.pop %v2132
  %v2134 = vmul.f32 %v2122, 1.442695
  %v2135 = vpow.pop %v2134
  %v2136 = vmul.f32 %v2123, 1.442695
  %v2137 = vpow.pop %v2136
  %v2138 = vmul.f32 %v2124, 1.442695
  %v2139 = vpow.pop %v2138
  %v2140 = vmul.f32 %v2125, 1.442695
  %v2141 = vpow.pop %v2140
  %v2142 = vsel %vm514, %v2127, 0.0
  %2143 = vadd.xlane.f32.xlu0 %v2142
  %v2144 = vpop.xlane.xlu0 %2143
  %v2145 = vsel %vm514, %v2129, 0.0
  %2146 = vadd.xlane.f32.xlu0 %v2145
  %v2147 = vpop.xlane.xlu0 %2146
  %v2148 = vsel %vm514, %v2131, 0.0
  %2149 = vadd.xlane.f32.xlu0 %v2148
  %v2150 = vpop.xlane.xlu0 %2149
  %v2151 = vsel %vm514, %v2133, 0.0
  %2152 = vadd.xlane.f32.xlu0 %v2151
  %v2153 = vpop.xlane.xlu0 %2152
  %v2154 = vsel %vm514, %v2135, 0.0
  %2155 = vadd.xlane.f32.xlu0 %v2154
  %v2156 = vpop.xlane.xlu0 %2155
  %v2157 = vsel %vm514, %v2137, 0.0
  %2158 = vadd.xlane.f32.xlu0 %v2157
  %v2159 = vpop.xlane.xlu0 %2158
  %v2160 = vsel %vm514, %v2139, 0.0
  %2161 = vadd.xlane.f32.xlu0 %v2160
  %v2162 = vpop.xlane.xlu0 %2161
  %v2163 = vsel %vm514, %v2141, 0.0
  %2164 = vadd.xlane.f32.xlu0 %v2163
  %v2165 = vpop.xlane.xlu0 %2164
  %v2166 = vrcp.pop %v2144
  %v2167 = vrcp.pop %v2147
  %v2168 = vrcp.pop %v2150
  %v2169 = vrcp.pop %v2153
  %v2170 = vrcp.pop %v2156
  %v2171 = vrcp.pop %v2159
  %v2172 = vrcp.pop %v2162
  %v2173 = vrcp.pop %v2165
  %v2174 = vmul.f32 %v2127, %v2166
  %v2175 = vmul.f32 %v2129, %v2167
  %v2176 = vmul.f32 %v2131, %v2168
  %v2177 = vmul.f32 %v2133, %v2169
  %v2178 = vmul.f32 %v2135, %v2170
  %v2179 = vmul.f32 %v2137, %v2171
  %v2180 = vmul.f32 %v2139, %v2172
  %v2181 = vmul.f32 %v2141, %v2173
  %2182 = vrot.lane.b32.xlu0 %v2004, 64
  %v2183 = vpop.permute.xlu0 %2182
  %2184 = vrot.lane.b32.xlu0 %v2007, 64
  %v2185 = vpop.permute.xlu0 %2184
  %v2189 = vsel %vm514, %v2174, 0
  %v2192 = vsel %vm514, %v2175, 0
  %v2195 = vsel %vm514, %v2176, 0
  %v2198 = vsel %vm514, %v2177, 0
  %v2201 = vsel %vm514, %v2178, 0
  %v2204 = vsel %vm514, %v2179, 0
  %v2207 = vsel %vm514, %v2180, 0
  %v2210 = vsel %vm514, %v2181, 0
  %2212 = vmatpush.msra.mxu0 0.0
  %2213 = vmatpush.msra.mxu0 0.0
  %2214 = vmatpush.msra.mxu0 0.0
  %2215 = vmatpush.msra.mxu0 0.0
  %2216 = vmatpush.msra.mxu0 0.0
  %2217 = vmatpush.msra.mxu0 0.0
  %2218 = vmatpush.msra.mxu0 0.0
  %2219 = vmatpush.msra.mxu0 0.0
  %2220 = vmatpush.msra.mxu0 0.0
  %2221 = vmatpush.msra.mxu0 0.0
  %2222 = vmatpush.msra.mxu0 0.0
  %2223 = vmatpush.msra.mxu0 0.0
  %2224 = vmatpush.msra.mxu0 0.0
  %2225 = vmatpush.msra.mxu0 0.0
  %2226 = vmatpush.msra.mxu0 %v2185
  %2227 = vmatpush.msra.mxu0 %v2183
  %2228 = vmatmul.f32.gmra.mxu0 %v2189
  %v2229 = vpop.f32.mrf.mxu0
  %v2230 = vadd.f32 0.0, %v2229
  %2231 = vmatmul.f32.gmra.mxu0 %v2192
  %v2232 = vpop.f32.mrf.mxu0
  %v2233 = vadd.f32 0.0, %v2232
  %2234 = vmatmul.f32.gmra.mxu0 %v2195
  %v2235 = vpop.f32.mrf.mxu0
  %v2236 = vadd.f32 0.0, %v2235
  %2237 = vmatmul.f32.gmra.mxu0 %v2198
  %v2238 = vpop.f32.mrf.mxu0
  %v2239 = vadd.f32 0.0, %v2238
  %2240 = vmatmul.f32.gmra.mxu0 %v2201
  %v2241 = vpop.f32.mrf.mxu0
  %v2242 = vadd.f32 0.0, %v2241
  %2243 = vmatmul.f32.gmra.mxu0 %v2204
  %v2244 = vpop.f32.mrf.mxu0
  %v2245 = vadd.f32 0.0, %v2244
  %2246 = vmatmul.f32.gmra.mxu0 %v2207
  %v2247 = vpop.f32.mrf.mxu0
  %v2248 = vadd.f32 0.0, %v2247
  %2249 = vmatmul.f32.gmra.mxu0 %v2210
  %v2250 = vpop.f32.mrf.mxu0
  %v2251 = vadd.f32 0.0, %v2250
  %2252 = vdwg.mxu0
  %v2253 = vmul.f32 %v48, %v2230
  %v2254 = vmul.f32 %v48, %v2233
  %v2255 = vmul.f32 %v53, %v2236
  %v2256 = vmul.f32 %v53, %v2239
  %v2257 = vadd.f32 %v2253, %v2255
  %v2258 = vadd.f32 %v2254, %v2256
  %v2259 = vmul.f32 %v58, %v2242
  %v2260 = vmul.f32 %v58, %v2245
  %v2261 = vadd.f32 %v2257, %v2259
  %v2262 = vadd.f32 %v2258, %v2260
  %v2263 = vmul.f32 %v63, %v2248
  %v2264 = vmul.f32 %v63, %v2251
  %v2265 = vadd.f32 %v2261, %v2263
  %v2266 = vadd.f32 %v2262, %v2264
  %v2267 = vperm.slane %v1976, 0
  %v2269 = vsel %vm399, %v2265, 0
  %v2272 = vsel %vm399, %v2266, 0
  %2274 = vmatpush.msra.mxu0 0.0
  %2275 = vmatpush.msra.mxu0 0.0
  %2276 = vmatpush.msra.mxu0 0.0
  %2277 = vmatpush.msra.mxu0 0.0
  %2278 = vmatpush.msra.mxu0 0.0
  %2279 = vmatpush.msra.mxu0 0.0
  %2280 = vmatpush.msra.mxu0 0.0
  %2281 = vmatpush.msra.mxu0 0.0
  %2282 = vmatpush.msra.mxu0 0.0
  %2283 = vmatpush.msra.mxu0 0.0
  %2284 = vmatpush.msra.mxu0 0.0
  %2285 = vmatpush.msra.mxu0 0.0
  %2286 = vmatpush.msra.mxu0 %v1649
  %2287 = vmatpush.msra.mxu0 %v1648
  %2288 = vmatpush.msra.mxu0 %v1647
  %2289 = vmatpush.msra.mxu0 %v1646
  %2290 = vmatmul.f32.gmra.mxu0 %v2269
  %v2291 = vpop.f32.mrf.mxu0
  %v2292 = vadd.f32 %v2267, %v2291
  %2293 = vmatmul.f32.gmra.mxu0 %v2272
  %v2294 = vpop.f32.mrf.mxu0
  %v2295 = vadd.f32 %v2267, %v2294
  %2296 = vdwg.mxu0
  %v2297 = vadd.f32 %v1636, %v2292
  %v2298 = vadd.f32 %v1637, %v2295
  %v2299 = vsel %vm399, %v2297, 0.0
  %2300 = vadd.xlane.f32.xlu0 %v2299
  %v2301 = vpop.xlane.xlu0 %2300
  %v2302 = vsel %vm399, %v2298, 0.0
  %2303 = vadd.xlane.f32.xlu0 %v2302
  %v2304 = vpop.xlane.xlu0 %2303
  %v2305 = vmul.f32 %v2301, %v732
  %v2306 = vmul.f32 %v2304, %v732
  %v2307 = vsub.f32 %v2297, %v2305
  %v2308 = vsub.f32 %v2298, %v2306
  %v2309 = vmul.f32 %v2307, %v2307
  %v2310 = vmul.f32 %v2308, %v2308
  %v2311 = vsel %vm399, %v2309, 0.0
  %2312 = vadd.xlane.f32.xlu0 %v2311
  %v2313 = vpop.xlane.xlu0 %2312
  %v2314 = vsel %vm399, %v2310, 0.0
  %2315 = vadd.xlane.f32.xlu0 %v2314
  %v2316 = vpop.xlane.xlu0 %2315
  %v2317 = vmul.f32 %v2313, %v732
  %v2318 = vmul.f32 %v2316, %v732
  %v2319 = vadd.f32 %v2317, 1e-05
  %v2320 = vadd.f32 %v2318, 1e-05
  %v2321 = vrsqrt.pop %v2319
  %v2322 = vmul.f32 %v2321, %v2319
  %v2323 = vmul.f32 %v2322, %v2321
  %v2324 = vmul.f32 0.5, %v2323
  %v2325 = vsub.f32 1.5, %v2324
  %v2326 = vmul.f32 %v2321, %v2325
  %vm2327 = vweird.f32 %v2319
  %vm2328 = vweird.f32 %v2321
  %vm2329 = vmor %vm2327, %vm2328
  %v2330 = vsel %vm2329, %v2321, %v2326
  %v2331 = vrsqrt.pop %v2320
  %v2332 = vmul.f32 %v2331, %v2320
  %v2333 = vmul.f32 %v2332, %v2331
  %v2334 = vmul.f32 0.5, %v2333
  %v2335 = vsub.f32 1.5, %v2334
  %v2336 = vmul.f32 %v2331, %v2335
  %vm2337 = vweird.f32 %v2320
  %vm2338 = vweird.f32 %v2331
  %vm2339 = vmor %vm2337, %vm2338
  %v2340 = vsel %vm2339, %v2331, %v2336
  %v2341 = vmul.f32 %v2307, %v2330
  %v2342 = vmul.f32 %v2308, %v2340
  %v2343 = vperm.slane %v1976, 2
  %v2344 = vmul.f32 %v2341, %v2343
  %v2345 = vmul.f32 %v2342, %v2343
  %v2346 = vperm.slane %v1976, 3
  %v2347 = vadd.f32 %v2344, %v2346
  %v2348 = vadd.f32 %v2345, %v2346
  %v2351 = vperm.slane %v1716, 0
  %v2352 = vperm.slane %v1716, 1
  %v2353 = vperm.slane %v1716, 2
  %v2354 = vperm.slane %v1716, 3
  %v2355 = vperm.slane %v1716, 4
  %v2356 = vperm.slane %v1716, 5
  %v2357 = vperm.slane %v1716, 6
  %v2358 = vperm.slane %v1716, 7
  %v2359 = vperm.slane %v1717, 0
  %v2360 = vperm.slane %v1717, 1
  %v2361 = vperm.slane %v1717, 2
  %v2362 = vperm.slane %v1717, 3
  %v2363 = vperm.slane %v1717, 4
  %v2364 = vperm.slane %v1717, 5
  %v2365 = vperm.slane %v1717, 6
  %v2366 = vperm.slane %v1717, 7
  %v2384 = vsel %vm399, %v2347, 0
  %v2387 = vsel %vm399, %v2348, 0
  %2389 = vmatpush.msra.mxu0 0.0
  %2390 = vmatpush.msra.mxu0 0.0
  %2391 = vmatpush.msra.mxu0 0.0
  %2392 = vmatpush.msra.mxu0 0.0
  %2393 = vmatpush.msra.mxu0 0.0
  %2394 = vmatpush.msra.mxu0 0.0
  %2395 = vmatpush.msra.mxu0 0.0
  %2396 = vmatpush.msra.mxu0 0.0
  %2397 = vmatpush.msra.mxu0 0.0
  %2398 = vmatpush.msra.mxu0 0.0
  %2399 = vmatpush.msra.mxu0 0.0
  %2400 = vmatpush.msra.mxu0 0.0
  %2401 = vmatpush.msra.mxu0 %v1699
  %2402 = vmatpush.msra.mxu0 %v1683
  %2403 = vmatpush.msra.mxu0 %v1667
  %2404 = vmatpush.msra.mxu0 %v1651
  %2405 = vmatmul.f32.gmra.mxu0 %v2384
  %v2406 = vpop.f32.mrf.mxu0
  %v2407 = vadd.f32 %v2351, %v2406
  %2408 = vmatmul.f32.gmra.mxu0 %v2387
  %v2409 = vpop.f32.mrf.mxu0
  %v2410 = vadd.f32 %v2351, %v2409
  %2411 = vdwg.mxu0
  %2412 = vmatpush.msra.mxu0 0.0
  %2413 = vmatpush.msra.mxu0 0.0
  %2414 = vmatpush.msra.mxu0 0.0
  %2415 = vmatpush.msra.mxu0 0.0
  %2416 = vmatpush.msra.mxu0 0.0
  %2417 = vmatpush.msra.mxu0 0.0
  %2418 = vmatpush.msra.mxu0 0.0
  %2419 = vmatpush.msra.mxu0 0.0
  %2420 = vmatpush.msra.mxu0 0.0
  %2421 = vmatpush.msra.mxu0 0.0
  %2422 = vmatpush.msra.mxu0 0.0
  %2423 = vmatpush.msra.mxu0 0.0
  %2424 = vmatpush.msra.mxu0 %v1700
  %2425 = vmatpush.msra.mxu0 %v1684
  %2426 = vmatpush.msra.mxu0 %v1668
  %2427 = vmatpush.msra.mxu0 %v1652
  %2428 = vmatmul.f32.gmra.mxu0 %v2384
  %v2429 = vpop.f32.mrf.mxu0
  %v2430 = vadd.f32 %v2352, %v2429
  %2431 = vmatmul.f32.gmra.mxu0 %v2387
  %v2432 = vpop.f32.mrf.mxu0
  %v2433 = vadd.f32 %v2352, %v2432
  %2434 = vdwg.mxu0
  %2435 = vmatpush.msra.mxu0 0.0
  %2436 = vmatpush.msra.mxu0 0.0
  %2437 = vmatpush.msra.mxu0 0.0
  %2438 = vmatpush.msra.mxu0 0.0
  %2439 = vmatpush.msra.mxu0 0.0
  %2440 = vmatpush.msra.mxu0 0.0
  %2441 = vmatpush.msra.mxu0 0.0
  %2442 = vmatpush.msra.mxu0 0.0
  %2443 = vmatpush.msra.mxu0 0.0
  %2444 = vmatpush.msra.mxu0 0.0
  %2445 = vmatpush.msra.mxu0 0.0
  %2446 = vmatpush.msra.mxu0 0.0
  %2447 = vmatpush.msra.mxu0 %v1701
  %2448 = vmatpush.msra.mxu0 %v1685
  %2449 = vmatpush.msra.mxu0 %v1669
  %2450 = vmatpush.msra.mxu0 %v1653
  %2451 = vmatmul.f32.gmra.mxu0 %v2384
  %v2452 = vpop.f32.mrf.mxu0
  %v2453 = vadd.f32 %v2353, %v2452
  %2454 = vmatmul.f32.gmra.mxu0 %v2387
  %v2455 = vpop.f32.mrf.mxu0
  %v2456 = vadd.f32 %v2353, %v2455
  %2457 = vdwg.mxu0
  %2458 = vmatpush.msra.mxu0 0.0
  %2459 = vmatpush.msra.mxu0 0.0
  %2460 = vmatpush.msra.mxu0 0.0
  %2461 = vmatpush.msra.mxu0 0.0
  %2462 = vmatpush.msra.mxu0 0.0
  %2463 = vmatpush.msra.mxu0 0.0
  %2464 = vmatpush.msra.mxu0 0.0
  %2465 = vmatpush.msra.mxu0 0.0
  %2466 = vmatpush.msra.mxu0 0.0
  %2467 = vmatpush.msra.mxu0 0.0
  %2468 = vmatpush.msra.mxu0 0.0
  %2469 = vmatpush.msra.mxu0 0.0
  %2470 = vmatpush.msra.mxu0 %v1702
  %2471 = vmatpush.msra.mxu0 %v1686
  %2472 = vmatpush.msra.mxu0 %v1670
  %2473 = vmatpush.msra.mxu0 %v1654
  %2474 = vmatmul.f32.gmra.mxu0 %v2384
  %v2475 = vpop.f32.mrf.mxu0
  %v2476 = vadd.f32 %v2354, %v2475
  %2477 = vmatmul.f32.gmra.mxu0 %v2387
  %v2478 = vpop.f32.mrf.mxu0
  %v2479 = vadd.f32 %v2354, %v2478
  %2480 = vdwg.mxu0
  %2481 = vmatpush.msra.mxu0 0.0
  %2482 = vmatpush.msra.mxu0 0.0
  %2483 = vmatpush.msra.mxu0 0.0
  %2484 = vmatpush.msra.mxu0 0.0
  %2485 = vmatpush.msra.mxu0 0.0
  %2486 = vmatpush.msra.mxu0 0.0
  %2487 = vmatpush.msra.mxu0 0.0
  %2488 = vmatpush.msra.mxu0 0.0
  %2489 = vmatpush.msra.mxu0 0.0
  %2490 = vmatpush.msra.mxu0 0.0
  %2491 = vmatpush.msra.mxu0 0.0
  %2492 = vmatpush.msra.mxu0 0.0
  %2493 = vmatpush.msra.mxu0 %v1703
  %2494 = vmatpush.msra.mxu0 %v1687
  %2495 = vmatpush.msra.mxu0 %v1671
  %2496 = vmatpush.msra.mxu0 %v1655
  %2497 = vmatmul.f32.gmra.mxu0 %v2384
  %v2498 = vpop.f32.mrf.mxu0
  %v2499 = vadd.f32 %v2355, %v2498
  %2500 = vmatmul.f32.gmra.mxu0 %v2387
  %v2501 = vpop.f32.mrf.mxu0
  %v2502 = vadd.f32 %v2355, %v2501
  %2503 = vdwg.mxu0
  %2504 = vmatpush.msra.mxu0 0.0
  %2505 = vmatpush.msra.mxu0 0.0
  %2506 = vmatpush.msra.mxu0 0.0
  %2507 = vmatpush.msra.mxu0 0.0
  %2508 = vmatpush.msra.mxu0 0.0
  %2509 = vmatpush.msra.mxu0 0.0
  %2510 = vmatpush.msra.mxu0 0.0
  %2511 = vmatpush.msra.mxu0 0.0
  %2512 = vmatpush.msra.mxu0 0.0
  %2513 = vmatpush.msra.mxu0 0.0
  %2514 = vmatpush.msra.mxu0 0.0
  %2515 = vmatpush.msra.mxu0 0.0
  %2516 = vmatpush.msra.mxu0 %v1704
  %2517 = vmatpush.msra.mxu0 %v1688
  %2518 = vmatpush.msra.mxu0 %v1672
  %2519 = vmatpush.msra.mxu0 %v1656
  %2520 = vmatmul.f32.gmra.mxu0 %v2384
  %v2521 = vpop.f32.mrf.mxu0
  %v2522 = vadd.f32 %v2356, %v2521
  %2523 = vmatmul.f32.gmra.mxu0 %v2387
  %v2524 = vpop.f32.mrf.mxu0
  %v2525 = vadd.f32 %v2356, %v2524
  %2526 = vdwg.mxu0
  %2527 = vmatpush.msra.mxu0 0.0
  %2528 = vmatpush.msra.mxu0 0.0
  %2529 = vmatpush.msra.mxu0 0.0
  %2530 = vmatpush.msra.mxu0 0.0
  %2531 = vmatpush.msra.mxu0 0.0
  %2532 = vmatpush.msra.mxu0 0.0
  %2533 = vmatpush.msra.mxu0 0.0
  %2534 = vmatpush.msra.mxu0 0.0
  %2535 = vmatpush.msra.mxu0 0.0
  %2536 = vmatpush.msra.mxu0 0.0
  %2537 = vmatpush.msra.mxu0 0.0
  %2538 = vmatpush.msra.mxu0 0.0
  %2539 = vmatpush.msra.mxu0 %v1705
  %2540 = vmatpush.msra.mxu0 %v1689
  %2541 = vmatpush.msra.mxu0 %v1673
  %2542 = vmatpush.msra.mxu0 %v1657
  %2543 = vmatmul.f32.gmra.mxu0 %v2384
  %v2544 = vpop.f32.mrf.mxu0
  %v2545 = vadd.f32 %v2357, %v2544
  %2546 = vmatmul.f32.gmra.mxu0 %v2387
  %v2547 = vpop.f32.mrf.mxu0
  %v2548 = vadd.f32 %v2357, %v2547
  %2549 = vdwg.mxu0
  %2550 = vmatpush.msra.mxu0 0.0
  %2551 = vmatpush.msra.mxu0 0.0
  %2552 = vmatpush.msra.mxu0 0.0
  %2553 = vmatpush.msra.mxu0 0.0
  %2554 = vmatpush.msra.mxu0 0.0
  %2555 = vmatpush.msra.mxu0 0.0
  %2556 = vmatpush.msra.mxu0 0.0
  %2557 = vmatpush.msra.mxu0 0.0
  %2558 = vmatpush.msra.mxu0 0.0
  %2559 = vmatpush.msra.mxu0 0.0
  %2560 = vmatpush.msra.mxu0 0.0
  %2561 = vmatpush.msra.mxu0 0.0
  %2562 = vmatpush.msra.mxu0 %v1706
  %2563 = vmatpush.msra.mxu0 %v1690
  %2564 = vmatpush.msra.mxu0 %v1674
  %2565 = vmatpush.msra.mxu0 %v1658
  %2566 = vmatmul.f32.gmra.mxu0 %v2384
  %v2567 = vpop.f32.mrf.mxu0
  %v2568 = vadd.f32 %v2358, %v2567
  %2569 = vmatmul.f32.gmra.mxu0 %v2387
  %v2570 = vpop.f32.mrf.mxu0
  %v2571 = vadd.f32 %v2358, %v2570
  %2572 = vdwg.mxu0
  %2573 = vmatpush.msra.mxu0 0.0
  %2574 = vmatpush.msra.mxu0 0.0
  %2575 = vmatpush.msra.mxu0 0.0
  %2576 = vmatpush.msra.mxu0 0.0
  %2577 = vmatpush.msra.mxu0 0.0
  %2578 = vmatpush.msra.mxu0 0.0
  %2579 = vmatpush.msra.mxu0 0.0
  %2580 = vmatpush.msra.mxu0 0.0
  %2581 = vmatpush.msra.mxu0 0.0
  %2582 = vmatpush.msra.mxu0 0.0
  %2583 = vmatpush.msra.mxu0 0.0
  %2584 = vmatpush.msra.mxu0 0.0
  %2585 = vmatpush.msra.mxu0 %v1707
  %2586 = vmatpush.msra.mxu0 %v1691
  %2587 = vmatpush.msra.mxu0 %v1675
  %2588 = vmatpush.msra.mxu0 %v1659
  %2589 = vmatmul.f32.gmra.mxu0 %v2384
  %v2590 = vpop.f32.mrf.mxu0
  %v2591 = vadd.f32 %v2359, %v2590
  %2592 = vmatmul.f32.gmra.mxu0 %v2387
  %v2593 = vpop.f32.mrf.mxu0
  %v2594 = vadd.f32 %v2359, %v2593
  %2595 = vdwg.mxu0
  %2596 = vmatpush.msra.mxu0 0.0
  %2597 = vmatpush.msra.mxu0 0.0
  %2598 = vmatpush.msra.mxu0 0.0
  %2599 = vmatpush.msra.mxu0 0.0
  %2600 = vmatpush.msra.mxu0 0.0
  %2601 = vmatpush.msra.mxu0 0.0
  %2602 = vmatpush.msra.mxu0 0.0
  %2603 = vmatpush.msra.mxu0 0.0
  %2604 = vmatpush.msra.mxu0 0.0
  %2605 = vmatpush.msra.mxu0 0.0
  %2606 = vmatpush.msra.mxu0 0.0
  %2607 = vmatpush.msra.mxu0 0.0
  %2608 = vmatpush.msra.mxu0 %v1708
  %2609 = vmatpush.msra.mxu0 %v1692
  %2610 = vmatpush.msra.mxu0 %v1676
  %2611 = vmatpush.msra.mxu0 %v1660
  %2612 = vmatmul.f32.gmra.mxu0 %v2384
  %v2613 = vpop.f32.mrf.mxu0
  %v2614 = vadd.f32 %v2360, %v2613
  %2615 = vmatmul.f32.gmra.mxu0 %v2387
  %v2616 = vpop.f32.mrf.mxu0
  %v2617 = vadd.f32 %v2360, %v2616
  %2618 = vdwg.mxu0
  %2619 = vmatpush.msra.mxu0 0.0
  %2620 = vmatpush.msra.mxu0 0.0
  %2621 = vmatpush.msra.mxu0 0.0
  %2622 = vmatpush.msra.mxu0 0.0
  %2623 = vmatpush.msra.mxu0 0.0
  %2624 = vmatpush.msra.mxu0 0.0
  %2625 = vmatpush.msra.mxu0 0.0
  %2626 = vmatpush.msra.mxu0 0.0
  %2627 = vmatpush.msra.mxu0 0.0
  %2628 = vmatpush.msra.mxu0 0.0
  %2629 = vmatpush.msra.mxu0 0.0
  %2630 = vmatpush.msra.mxu0 0.0
  %2631 = vmatpush.msra.mxu0 %v1709
  %2632 = vmatpush.msra.mxu0 %v1693
  %2633 = vmatpush.msra.mxu0 %v1677
  %2634 = vmatpush.msra.mxu0 %v1661
  %2635 = vmatmul.f32.gmra.mxu0 %v2384
  %v2636 = vpop.f32.mrf.mxu0
  %v2637 = vadd.f32 %v2361, %v2636
  %2638 = vmatmul.f32.gmra.mxu0 %v2387
  %v2639 = vpop.f32.mrf.mxu0
  %v2640 = vadd.f32 %v2361, %v2639
  %2641 = vdwg.mxu0
  %2642 = vmatpush.msra.mxu0 0.0
  %2643 = vmatpush.msra.mxu0 0.0
  %2644 = vmatpush.msra.mxu0 0.0
  %2645 = vmatpush.msra.mxu0 0.0
  %2646 = vmatpush.msra.mxu0 0.0
  %2647 = vmatpush.msra.mxu0 0.0
  %2648 = vmatpush.msra.mxu0 0.0
  %2649 = vmatpush.msra.mxu0 0.0
  %2650 = vmatpush.msra.mxu0 0.0
  %2651 = vmatpush.msra.mxu0 0.0
  %2652 = vmatpush.msra.mxu0 0.0
  %2653 = vmatpush.msra.mxu0 0.0
  %2654 = vmatpush.msra.mxu0 %v1710
  %2655 = vmatpush.msra.mxu0 %v1694
  %2656 = vmatpush.msra.mxu0 %v1678
  %2657 = vmatpush.msra.mxu0 %v1662
  %2658 = vmatmul.f32.gmra.mxu0 %v2384
  %v2659 = vpop.f32.mrf.mxu0
  %v2660 = vadd.f32 %v2362, %v2659
  %2661 = vmatmul.f32.gmra.mxu0 %v2387
  %v2662 = vpop.f32.mrf.mxu0
  %v2663 = vadd.f32 %v2362, %v2662
  %2664 = vdwg.mxu0
  %2665 = vmatpush.msra.mxu0 0.0
  %2666 = vmatpush.msra.mxu0 0.0
  %2667 = vmatpush.msra.mxu0 0.0
  %2668 = vmatpush.msra.mxu0 0.0
  %2669 = vmatpush.msra.mxu0 0.0
  %2670 = vmatpush.msra.mxu0 0.0
  %2671 = vmatpush.msra.mxu0 0.0
  %2672 = vmatpush.msra.mxu0 0.0
  %2673 = vmatpush.msra.mxu0 0.0
  %2674 = vmatpush.msra.mxu0 0.0
  %2675 = vmatpush.msra.mxu0 0.0
  %2676 = vmatpush.msra.mxu0 0.0
  %2677 = vmatpush.msra.mxu0 %v1711
  %2678 = vmatpush.msra.mxu0 %v1695
  %2679 = vmatpush.msra.mxu0 %v1679
  %2680 = vmatpush.msra.mxu0 %v1663
  %2681 = vmatmul.f32.gmra.mxu0 %v2384
  %v2682 = vpop.f32.mrf.mxu0
  %v2683 = vadd.f32 %v2363, %v2682
  %2684 = vmatmul.f32.gmra.mxu0 %v2387
  %v2685 = vpop.f32.mrf.mxu0
  %v2686 = vadd.f32 %v2363, %v2685
  %2687 = vdwg.mxu0
  %2688 = vmatpush.msra.mxu0 0.0
  %2689 = vmatpush.msra.mxu0 0.0
  %2690 = vmatpush.msra.mxu0 0.0
  %2691 = vmatpush.msra.mxu0 0.0
  %2692 = vmatpush.msra.mxu0 0.0
  %2693 = vmatpush.msra.mxu0 0.0
  %2694 = vmatpush.msra.mxu0 0.0
  %2695 = vmatpush.msra.mxu0 0.0
  %2696 = vmatpush.msra.mxu0 0.0
  %2697 = vmatpush.msra.mxu0 0.0
  %2698 = vmatpush.msra.mxu0 0.0
  %2699 = vmatpush.msra.mxu0 0.0
  %2700 = vmatpush.msra.mxu0 %v1712
  %2701 = vmatpush.msra.mxu0 %v1696
  %2702 = vmatpush.msra.mxu0 %v1680
  %2703 = vmatpush.msra.mxu0 %v1664
  %2704 = vmatmul.f32.gmra.mxu0 %v2384
  %v2705 = vpop.f32.mrf.mxu0
  %v2706 = vadd.f32 %v2364, %v2705
  %2707 = vmatmul.f32.gmra.mxu0 %v2387
  %v2708 = vpop.f32.mrf.mxu0
  %v2709 = vadd.f32 %v2364, %v2708
  %2710 = vdwg.mxu0
  %2711 = vmatpush.msra.mxu0 0.0
  %2712 = vmatpush.msra.mxu0 0.0
  %2713 = vmatpush.msra.mxu0 0.0
  %2714 = vmatpush.msra.mxu0 0.0
  %2715 = vmatpush.msra.mxu0 0.0
  %2716 = vmatpush.msra.mxu0 0.0
  %2717 = vmatpush.msra.mxu0 0.0
  %2718 = vmatpush.msra.mxu0 0.0
  %2719 = vmatpush.msra.mxu0 0.0
  %2720 = vmatpush.msra.mxu0 0.0
  %2721 = vmatpush.msra.mxu0 0.0
  %2722 = vmatpush.msra.mxu0 0.0
  %2723 = vmatpush.msra.mxu0 %v1713
  %2724 = vmatpush.msra.mxu0 %v1697
  %2725 = vmatpush.msra.mxu0 %v1681
  %2726 = vmatpush.msra.mxu0 %v1665
  %2727 = vmatmul.f32.gmra.mxu0 %v2384
  %v2728 = vpop.f32.mrf.mxu0
  %v2729 = vadd.f32 %v2365, %v2728
  %2730 = vmatmul.f32.gmra.mxu0 %v2387
  %v2731 = vpop.f32.mrf.mxu0
  %v2732 = vadd.f32 %v2365, %v2731
  %2733 = vdwg.mxu0
  %2734 = vmatpush.msra.mxu0 0.0
  %2735 = vmatpush.msra.mxu0 0.0
  %2736 = vmatpush.msra.mxu0 0.0
  %2737 = vmatpush.msra.mxu0 0.0
  %2738 = vmatpush.msra.mxu0 0.0
  %2739 = vmatpush.msra.mxu0 0.0
  %2740 = vmatpush.msra.mxu0 0.0
  %2741 = vmatpush.msra.mxu0 0.0
  %2742 = vmatpush.msra.mxu0 0.0
  %2743 = vmatpush.msra.mxu0 0.0
  %2744 = vmatpush.msra.mxu0 0.0
  %2745 = vmatpush.msra.mxu0 0.0
  %2746 = vmatpush.msra.mxu0 %v1714
  %2747 = vmatpush.msra.mxu0 %v1698
  %2748 = vmatpush.msra.mxu0 %v1682
  %2749 = vmatpush.msra.mxu0 %v1666
  %2750 = vmatmul.f32.gmra.mxu0 %v2384
  %v2751 = vpop.f32.mrf.mxu0
  %v2752 = vadd.f32 %v2366, %v2751
  %2753 = vmatmul.f32.gmra.mxu0 %v2387
  %v2754 = vpop.f32.mrf.mxu0
  %v2755 = vadd.f32 %v2366, %v2754
  %2756 = vdwg.mxu0
  %v2757 = vmax.f32 %v2407, 0.0
  %v2758 = vmax.f32 %v2430, 0.0
  %v2759 = vmax.f32 %v2453, 0.0
  %v2760 = vmax.f32 %v2476, 0.0
  %v2761 = vmax.f32 %v2499, 0.0
  %v2762 = vmax.f32 %v2522, 0.0
  %v2763 = vmax.f32 %v2545, 0.0
  %v2764 = vmax.f32 %v2568, 0.0
  %v2765 = vmax.f32 %v2591, 0.0
  %v2766 = vmax.f32 %v2614, 0.0
  %v2767 = vmax.f32 %v2637, 0.0
  %v2768 = vmax.f32 %v2660, 0.0
  %v2769 = vmax.f32 %v2683, 0.0
  %v2770 = vmax.f32 %v2706, 0.0
  %v2771 = vmax.f32 %v2729, 0.0
  %v2772 = vmax.f32 %v2752, 0.0
  %v2773 = vmax.f32 %v2410, 0.0
  %v2774 = vmax.f32 %v2433, 0.0
  %v2775 = vmax.f32 %v2456, 0.0
  %v2776 = vmax.f32 %v2479, 0.0
  %v2777 = vmax.f32 %v2502, 0.0
  %v2778 = vmax.f32 %v2525, 0.0
  %v2779 = vmax.f32 %v2548, 0.0
  %v2780 = vmax.f32 %v2571, 0.0
  %v2781 = vmax.f32 %v2594, 0.0
  %v2782 = vmax.f32 %v2617, 0.0
  %v2783 = vmax.f32 %v2640, 0.0
  %v2784 = vmax.f32 %v2663, 0.0
  %v2785 = vmax.f32 %v2686, 0.0
  %v2786 = vmax.f32 %v2709, 0.0
  %v2787 = vmax.f32 %v2732, 0.0
  %v2788 = vmax.f32 %v2755, 0.0
  %v2789 = vperm.slane %v1976, 1
  %2790 = vmatpush.msra.mxu0 %v1734
  %2791 = vmatpush.msra.mxu0 %v1733
  %2792 = vmatpush.msra.mxu0 %v1732
  %2793 = vmatpush.msra.mxu0 %v1731
  %2794 = vmatpush.msra.mxu0 %v1730
  %2795 = vmatpush.msra.mxu0 %v1729
  %2796 = vmatpush.msra.mxu0 %v1728
  %2797 = vmatpush.msra.mxu0 %v1727
  %2798 = vmatpush.msra.mxu0 %v1726
  %2799 = vmatpush.msra.mxu0 %v1725
  %2800 = vmatpush.msra.mxu0 %v1724
  %2801 = vmatpush.msra.mxu0 %v1723
  %2802 = vmatpush.msra.mxu0 %v1722
  %2803 = vmatpush.msra.mxu0 %v1721
  %2804 = vmatpush.msra.mxu0 %v1720
  %2805 = vmatpush.msra.mxu0 %v1719
  %2806 = vmatmul.f32.gmra.mxu0 %v2757
  %v2807 = vpop.f32.mrf.mxu0
  %v2808 = vadd.f32 %v2789, %v2807
  %2809 = vmatmul.f32.gmra.mxu0 %v2773
  %v2810 = vpop.f32.mrf.mxu0
  %v2811 = vadd.f32 %v2789, %v2810
  %2812 = vdwg.mxu0
  %2813 = vmatpush.msra.mxu0 %v1750
  %2814 = vmatpush.msra.mxu0 %v1749
  %2815 = vmatpush.msra.mxu0 %v1748
  %2816 = vmatpush.msra.mxu0 %v1747
  %2817 = vmatpush.msra.mxu0 %v1746
  %2818 = vmatpush.msra.mxu0 %v1745
  %2819 = vmatpush.msra.mxu0 %v1744
  %2820 = vmatpush.msra.mxu0 %v1743
  %2821 = vmatpush.msra.mxu0 %v1742
  %2822 = vmatpush.msra.mxu0 %v1741
  %2823 = vmatpush.msra.mxu0 %v1740
  %2824 = vmatpush.msra.mxu0 %v1739
  %2825 = vmatpush.msra.mxu0 %v1738
  %2826 = vmatpush.msra.mxu0 %v1737
  %2827 = vmatpush.msra.mxu0 %v1736
  %2828 = vmatpush.msra.mxu0 %v1735
  %2829 = vmatmul.f32.gmra.mxu0 %v2758
  %v2830 = vpop.f32.mrf.mxu0
  %v2831 = vadd.f32 %v2808, %v2830
  %2832 = vmatmul.f32.gmra.mxu0 %v2774
  %v2833 = vpop.f32.mrf.mxu0
  %v2834 = vadd.f32 %v2811, %v2833
  %2835 = vdwg.mxu0
  %2836 = vmatpush.msra.mxu0 %v1766
  %2837 = vmatpush.msra.mxu0 %v1765
  %2838 = vmatpush.msra.mxu0 %v1764
  %2839 = vmatpush.msra.mxu0 %v1763
  %2840 = vmatpush.msra.mxu0 %v1762
  %2841 = vmatpush.msra.mxu0 %v1761
  %2842 = vmatpush.msra.mxu0 %v1760
  %2843 = vmatpush.msra.mxu0 %v1759
  %2844 = vmatpush.msra.mxu0 %v1758
  %2845 = vmatpush.msra.mxu0 %v1757
  %2846 = vmatpush.msra.mxu0 %v1756
  %2847 = vmatpush.msra.mxu0 %v1755
  %2848 = vmatpush.msra.mxu0 %v1754
  %2849 = vmatpush.msra.mxu0 %v1753
  %2850 = vmatpush.msra.mxu0 %v1752
  %2851 = vmatpush.msra.mxu0 %v1751
  %2852 = vmatmul.f32.gmra.mxu0 %v2759
  %v2853 = vpop.f32.mrf.mxu0
  %v2854 = vadd.f32 %v2831, %v2853
  %2855 = vmatmul.f32.gmra.mxu0 %v2775
  %v2856 = vpop.f32.mrf.mxu0
  %v2857 = vadd.f32 %v2834, %v2856
  %2858 = vdwg.mxu0
  %2859 = vmatpush.msra.mxu0 %v1782
  %2860 = vmatpush.msra.mxu0 %v1781
  %2861 = vmatpush.msra.mxu0 %v1780
  %2862 = vmatpush.msra.mxu0 %v1779
  %2863 = vmatpush.msra.mxu0 %v1778
  %2864 = vmatpush.msra.mxu0 %v1777
  %2865 = vmatpush.msra.mxu0 %v1776
  %2866 = vmatpush.msra.mxu0 %v1775
  %2867 = vmatpush.msra.mxu0 %v1774
  %2868 = vmatpush.msra.mxu0 %v1773
  %2869 = vmatpush.msra.mxu0 %v1772
  %2870 = vmatpush.msra.mxu0 %v1771
  %2871 = vmatpush.msra.mxu0 %v1770
  %2872 = vmatpush.msra.mxu0 %v1769
  %2873 = vmatpush.msra.mxu0 %v1768
  %2874 = vmatpush.msra.mxu0 %v1767
  %2875 = vmatmul.f32.gmra.mxu0 %v2760
  %v2876 = vpop.f32.mrf.mxu0
  %v2877 = vadd.f32 %v2854, %v2876
  %2878 = vmatmul.f32.gmra.mxu0 %v2776
  %v2879 = vpop.f32.mrf.mxu0
  %v2880 = vadd.f32 %v2857, %v2879
  %2881 = vdwg.mxu0
  %2882 = vmatpush.msra.mxu0 %v1798
  %2883 = vmatpush.msra.mxu0 %v1797
  %2884 = vmatpush.msra.mxu0 %v1796
  %2885 = vmatpush.msra.mxu0 %v1795
  %2886 = vmatpush.msra.mxu0 %v1794
  %2887 = vmatpush.msra.mxu0 %v1793
  %2888 = vmatpush.msra.mxu0 %v1792
  %2889 = vmatpush.msra.mxu0 %v1791
  %2890 = vmatpush.msra.mxu0 %v1790
  %2891 = vmatpush.msra.mxu0 %v1789
  %2892 = vmatpush.msra.mxu0 %v1788
  %2893 = vmatpush.msra.mxu0 %v1787
  %2894 = vmatpush.msra.mxu0 %v1786
  %2895 = vmatpush.msra.mxu0 %v1785
  %2896 = vmatpush.msra.mxu0 %v1784
  %2897 = vmatpush.msra.mxu0 %v1783
  %2898 = vmatmul.f32.gmra.mxu0 %v2761
  %v2899 = vpop.f32.mrf.mxu0
  %v2900 = vadd.f32 %v2877, %v2899
  %2901 = vmatmul.f32.gmra.mxu0 %v2777
  %v2902 = vpop.f32.mrf.mxu0
  %v2903 = vadd.f32 %v2880, %v2902
  %2904 = vdwg.mxu0
  %2905 = vmatpush.msra.mxu0 %v1814
  %2906 = vmatpush.msra.mxu0 %v1813
  %2907 = vmatpush.msra.mxu0 %v1812
  %2908 = vmatpush.msra.mxu0 %v1811
  %2909 = vmatpush.msra.mxu0 %v1810
  %2910 = vmatpush.msra.mxu0 %v1809
  %2911 = vmatpush.msra.mxu0 %v1808
  %2912 = vmatpush.msra.mxu0 %v1807
  %2913 = vmatpush.msra.mxu0 %v1806
  %2914 = vmatpush.msra.mxu0 %v1805
  %2915 = vmatpush.msra.mxu0 %v1804
  %2916 = vmatpush.msra.mxu0 %v1803
  %2917 = vmatpush.msra.mxu0 %v1802
  %2918 = vmatpush.msra.mxu0 %v1801
  %2919 = vmatpush.msra.mxu0 %v1800
  %2920 = vmatpush.msra.mxu0 %v1799
  %2921 = vmatmul.f32.gmra.mxu0 %v2762
  %v2922 = vpop.f32.mrf.mxu0
  %v2923 = vadd.f32 %v2900, %v2922
  %2924 = vmatmul.f32.gmra.mxu0 %v2778
  %v2925 = vpop.f32.mrf.mxu0
  %v2926 = vadd.f32 %v2903, %v2925
  %2927 = vdwg.mxu0
  %2928 = vmatpush.msra.mxu0 %v1830
  %2929 = vmatpush.msra.mxu0 %v1829
  %2930 = vmatpush.msra.mxu0 %v1828
  %2931 = vmatpush.msra.mxu0 %v1827
  %2932 = vmatpush.msra.mxu0 %v1826
  %2933 = vmatpush.msra.mxu0 %v1825
  %2934 = vmatpush.msra.mxu0 %v1824
  %2935 = vmatpush.msra.mxu0 %v1823
  %2936 = vmatpush.msra.mxu0 %v1822
  %2937 = vmatpush.msra.mxu0 %v1821
  %2938 = vmatpush.msra.mxu0 %v1820
  %2939 = vmatpush.msra.mxu0 %v1819
  %2940 = vmatpush.msra.mxu0 %v1818
  %2941 = vmatpush.msra.mxu0 %v1817
  %2942 = vmatpush.msra.mxu0 %v1816
  %2943 = vmatpush.msra.mxu0 %v1815
  %2944 = vmatmul.f32.gmra.mxu0 %v2763
  %v2945 = vpop.f32.mrf.mxu0
  %v2946 = vadd.f32 %v2923, %v2945
  %2947 = vmatmul.f32.gmra.mxu0 %v2779
  %v2948 = vpop.f32.mrf.mxu0
  %v2949 = vadd.f32 %v2926, %v2948
  %2950 = vdwg.mxu0
  %2951 = vmatpush.msra.mxu0 %v1846
  %2952 = vmatpush.msra.mxu0 %v1845
  %2953 = vmatpush.msra.mxu0 %v1844
  %2954 = vmatpush.msra.mxu0 %v1843
  %2955 = vmatpush.msra.mxu0 %v1842
  %2956 = vmatpush.msra.mxu0 %v1841
  %2957 = vmatpush.msra.mxu0 %v1840
  %2958 = vmatpush.msra.mxu0 %v1839
  %2959 = vmatpush.msra.mxu0 %v1838
  %2960 = vmatpush.msra.mxu0 %v1837
  %2961 = vmatpush.msra.mxu0 %v1836
  %2962 = vmatpush.msra.mxu0 %v1835
  %2963 = vmatpush.msra.mxu0 %v1834
  %2964 = vmatpush.msra.mxu0 %v1833
  %2965 = vmatpush.msra.mxu0 %v1832
  %2966 = vmatpush.msra.mxu0 %v1831
  %2967 = vmatmul.f32.gmra.mxu0 %v2764
  %v2968 = vpop.f32.mrf.mxu0
  %v2969 = vadd.f32 %v2946, %v2968
  %2970 = vmatmul.f32.gmra.mxu0 %v2780
  %v2971 = vpop.f32.mrf.mxu0
  %v2972 = vadd.f32 %v2949, %v2971
  %2973 = vdwg.mxu0
  %2974 = vmatpush.msra.mxu0 %v1862
  %2975 = vmatpush.msra.mxu0 %v1861
  %2976 = vmatpush.msra.mxu0 %v1860
  %2977 = vmatpush.msra.mxu0 %v1859
  %2978 = vmatpush.msra.mxu0 %v1858
  %2979 = vmatpush.msra.mxu0 %v1857
  %2980 = vmatpush.msra.mxu0 %v1856
  %2981 = vmatpush.msra.mxu0 %v1855
  %2982 = vmatpush.msra.mxu0 %v1854
  %2983 = vmatpush.msra.mxu0 %v1853
  %2984 = vmatpush.msra.mxu0 %v1852
  %2985 = vmatpush.msra.mxu0 %v1851
  %2986 = vmatpush.msra.mxu0 %v1850
  %2987 = vmatpush.msra.mxu0 %v1849
  %2988 = vmatpush.msra.mxu0 %v1848
  %2989 = vmatpush.msra.mxu0 %v1847
  %2990 = vmatmul.f32.gmra.mxu0 %v2765
  %v2991 = vpop.f32.mrf.mxu0
  %v2992 = vadd.f32 %v2969, %v2991
  %2993 = vmatmul.f32.gmra.mxu0 %v2781
  %v2994 = vpop.f32.mrf.mxu0
  %v2995 = vadd.f32 %v2972, %v2994
  %2996 = vdwg.mxu0
  %2997 = vmatpush.msra.mxu0 %v1878
  %2998 = vmatpush.msra.mxu0 %v1877
  %2999 = vmatpush.msra.mxu0 %v1876
  %3000 = vmatpush.msra.mxu0 %v1875
  %3001 = vmatpush.msra.mxu0 %v1874
  %3002 = vmatpush.msra.mxu0 %v1873
  %3003 = vmatpush.msra.mxu0 %v1872
  %3004 = vmatpush.msra.mxu0 %v1871
  %3005 = vmatpush.msra.mxu0 %v1870
  %3006 = vmatpush.msra.mxu0 %v1869
  %3007 = vmatpush.msra.mxu0 %v1868
  %3008 = vmatpush.msra.mxu0 %v1867
  %3009 = vmatpush.msra.mxu0 %v1866
  %3010 = vmatpush.msra.mxu0 %v1865
  %3011 = vmatpush.msra.mxu0 %v1864
  %3012 = vmatpush.msra.mxu0 %v1863
  %3013 = vmatmul.f32.gmra.mxu0 %v2766
  %v3014 = vpop.f32.mrf.mxu0
  %v3015 = vadd.f32 %v2992, %v3014
  %3016 = vmatmul.f32.gmra.mxu0 %v2782
  %v3017 = vpop.f32.mrf.mxu0
  %v3018 = vadd.f32 %v2995, %v3017
  %3019 = vdwg.mxu0
  %3020 = vmatpush.msra.mxu0 %v1894
  %3021 = vmatpush.msra.mxu0 %v1893
  %3022 = vmatpush.msra.mxu0 %v1892
  %3023 = vmatpush.msra.mxu0 %v1891
  %3024 = vmatpush.msra.mxu0 %v1890
  %3025 = vmatpush.msra.mxu0 %v1889
  %3026 = vmatpush.msra.mxu0 %v1888
  %3027 = vmatpush.msra.mxu0 %v1887
  %3028 = vmatpush.msra.mxu0 %v1886
  %3029 = vmatpush.msra.mxu0 %v1885
  %3030 = vmatpush.msra.mxu0 %v1884
  %3031 = vmatpush.msra.mxu0 %v1883
  %3032 = vmatpush.msra.mxu0 %v1882
  %3033 = vmatpush.msra.mxu0 %v1881
  %3034 = vmatpush.msra.mxu0 %v1880
  %3035 = vmatpush.msra.mxu0 %v1879
  %3036 = vmatmul.f32.gmra.mxu0 %v2767
  %v3037 = vpop.f32.mrf.mxu0
  %v3038 = vadd.f32 %v3015, %v3037
  %3039 = vmatmul.f32.gmra.mxu0 %v2783
  %v3040 = vpop.f32.mrf.mxu0
  %v3041 = vadd.f32 %v3018, %v3040
  %3042 = vdwg.mxu0
  %3043 = vmatpush.msra.mxu0 %v1910
  %3044 = vmatpush.msra.mxu0 %v1909
  %3045 = vmatpush.msra.mxu0 %v1908
  %3046 = vmatpush.msra.mxu0 %v1907
  %3047 = vmatpush.msra.mxu0 %v1906
  %3048 = vmatpush.msra.mxu0 %v1905
  %3049 = vmatpush.msra.mxu0 %v1904
  %3050 = vmatpush.msra.mxu0 %v1903
  %3051 = vmatpush.msra.mxu0 %v1902
  %3052 = vmatpush.msra.mxu0 %v1901
  %3053 = vmatpush.msra.mxu0 %v1900
  %3054 = vmatpush.msra.mxu0 %v1899
  %3055 = vmatpush.msra.mxu0 %v1898
  %3056 = vmatpush.msra.mxu0 %v1897
  %3057 = vmatpush.msra.mxu0 %v1896
  %3058 = vmatpush.msra.mxu0 %v1895
  %3059 = vmatmul.f32.gmra.mxu0 %v2768
  %v3060 = vpop.f32.mrf.mxu0
  %v3061 = vadd.f32 %v3038, %v3060
  %3062 = vmatmul.f32.gmra.mxu0 %v2784
  %v3063 = vpop.f32.mrf.mxu0
  %v3064 = vadd.f32 %v3041, %v3063
  %3065 = vdwg.mxu0
  %3066 = vmatpush.msra.mxu0 %v1926
  %3067 = vmatpush.msra.mxu0 %v1925
  %3068 = vmatpush.msra.mxu0 %v1924
  %3069 = vmatpush.msra.mxu0 %v1923
  %3070 = vmatpush.msra.mxu0 %v1922
  %3071 = vmatpush.msra.mxu0 %v1921
  %3072 = vmatpush.msra.mxu0 %v1920
  %3073 = vmatpush.msra.mxu0 %v1919
  %3074 = vmatpush.msra.mxu0 %v1918
  %3075 = vmatpush.msra.mxu0 %v1917
  %3076 = vmatpush.msra.mxu0 %v1916
  %3077 = vmatpush.msra.mxu0 %v1915
  %3078 = vmatpush.msra.mxu0 %v1914
  %3079 = vmatpush.msra.mxu0 %v1913
  %3080 = vmatpush.msra.mxu0 %v1912
  %3081 = vmatpush.msra.mxu0 %v1911
  %3082 = vmatmul.f32.gmra.mxu0 %v2769
  %v3083 = vpop.f32.mrf.mxu0
  %v3084 = vadd.f32 %v3061, %v3083
  %3085 = vmatmul.f32.gmra.mxu0 %v2785
  %v3086 = vpop.f32.mrf.mxu0
  %v3087 = vadd.f32 %v3064, %v3086
  %3088 = vdwg.mxu0
  %3089 = vmatpush.msra.mxu0 %v1942
  %3090 = vmatpush.msra.mxu0 %v1941
  %3091 = vmatpush.msra.mxu0 %v1940
  %3092 = vmatpush.msra.mxu0 %v1939
  %3093 = vmatpush.msra.mxu0 %v1938
  %3094 = vmatpush.msra.mxu0 %v1937
  %3095 = vmatpush.msra.mxu0 %v1936
  %3096 = vmatpush.msra.mxu0 %v1935
  %3097 = vmatpush.msra.mxu0 %v1934
  %3098 = vmatpush.msra.mxu0 %v1933
  %3099 = vmatpush.msra.mxu0 %v1932
  %3100 = vmatpush.msra.mxu0 %v1931
  %3101 = vmatpush.msra.mxu0 %v1930
  %3102 = vmatpush.msra.mxu0 %v1929
  %3103 = vmatpush.msra.mxu0 %v1928
  %3104 = vmatpush.msra.mxu0 %v1927
  %3105 = vmatmul.f32.gmra.mxu0 %v2770
  %v3106 = vpop.f32.mrf.mxu0
  %v3107 = vadd.f32 %v3084, %v3106
  %3108 = vmatmul.f32.gmra.mxu0 %v2786
  %v3109 = vpop.f32.mrf.mxu0
  %v3110 = vadd.f32 %v3087, %v3109
  %3111 = vdwg.mxu0
  %3112 = vmatpush.msra.mxu0 %v1958
  %3113 = vmatpush.msra.mxu0 %v1957
  %3114 = vmatpush.msra.mxu0 %v1956
  %3115 = vmatpush.msra.mxu0 %v1955
  %3116 = vmatpush.msra.mxu0 %v1954
  %3117 = vmatpush.msra.mxu0 %v1953
  %3118 = vmatpush.msra.mxu0 %v1952
  %3119 = vmatpush.msra.mxu0 %v1951
  %3120 = vmatpush.msra.mxu0 %v1950
  %3121 = vmatpush.msra.mxu0 %v1949
  %3122 = vmatpush.msra.mxu0 %v1948
  %3123 = vmatpush.msra.mxu0 %v1947
  %3124 = vmatpush.msra.mxu0 %v1946
  %3125 = vmatpush.msra.mxu0 %v1945
  %3126 = vmatpush.msra.mxu0 %v1944
  %3127 = vmatpush.msra.mxu0 %v1943
  %3128 = vmatmul.f32.gmra.mxu0 %v2771
  %v3129 = vpop.f32.mrf.mxu0
  %v3130 = vadd.f32 %v3107, %v3129
  %3131 = vmatmul.f32.gmra.mxu0 %v2787
  %v3132 = vpop.f32.mrf.mxu0
  %v3133 = vadd.f32 %v3110, %v3132
  %3134 = vdwg.mxu0
  %3135 = vmatpush.msra.mxu0 %v1974
  %3136 = vmatpush.msra.mxu0 %v1973
  %3137 = vmatpush.msra.mxu0 %v1972
  %3138 = vmatpush.msra.mxu0 %v1971
  %3139 = vmatpush.msra.mxu0 %v1970
  %3140 = vmatpush.msra.mxu0 %v1969
  %3141 = vmatpush.msra.mxu0 %v1968
  %3142 = vmatpush.msra.mxu0 %v1967
  %3143 = vmatpush.msra.mxu0 %v1966
  %3144 = vmatpush.msra.mxu0 %v1965
  %3145 = vmatpush.msra.mxu0 %v1964
  %3146 = vmatpush.msra.mxu0 %v1963
  %3147 = vmatpush.msra.mxu0 %v1962
  %3148 = vmatpush.msra.mxu0 %v1961
  %3149 = vmatpush.msra.mxu0 %v1960
  %3150 = vmatpush.msra.mxu0 %v1959
  %3151 = vmatmul.f32.gmra.mxu0 %v2772
  %v3152 = vpop.f32.mrf.mxu0
  %v3153 = vadd.f32 %v3130, %v3152
  %3154 = vmatmul.f32.gmra.mxu0 %v2788
  %v3155 = vpop.f32.mrf.mxu0
  %v3156 = vadd.f32 %v3133, %v3155
  %3157 = vdwg.mxu0
  %v3158 = vadd.f32 %v2347, %v3153
  %v3159 = vadd.f32 %v2348, %v3156
  %v3160 = vsel %vm399, %v3158, 0.0
  %3161 = vadd.xlane.f32.xlu0 %v3160
  %v3162 = vpop.xlane.xlu0 %3161
  %v3163 = vsel %vm399, %v3159, 0.0
  %3164 = vadd.xlane.f32.xlu0 %v3163
  %v3165 = vpop.xlane.xlu0 %3164
  %v3166 = vmul.f32 %v3162, %v732
  %v3167 = vmul.f32 %v3165, %v732
  %v3168 = vsub.f32 %v3158, %v3166
  %v3169 = vsub.f32 %v3159, %v3167
  %v3170 = vmul.f32 %v3168, %v3168
  %v3171 = vmul.f32 %v3169, %v3169
  %v3172 = vsel %vm399, %v3170, 0.0
  %3173 = vadd.xlane.f32.xlu0 %v3172
  %v3174 = vpop.xlane.xlu0 %3173
  %v3175 = vsel %vm399, %v3171, 0.0
  %3176 = vadd.xlane.f32.xlu0 %v3175
  %v3177 = vpop.xlane.xlu0 %3176
  %v3178 = vmul.f32 %v3174, %v732
  %v3179 = vmul.f32 %v3177, %v732
  %v3180 = vadd.f32 %v3178, 1e-05
  %v3181 = vadd.f32 %v3179, 1e-05
  %v3182 = vrsqrt.pop %v3180
  %v3183 = vmul.f32 %v3182, %v3180
  %v3184 = vmul.f32 %v3183, %v3182
  %v3185 = vmul.f32 0.5, %v3184
  %v3186 = vsub.f32 1.5, %v3185
  %v3187 = vmul.f32 %v3182, %v3186
  %vm3188 = vweird.f32 %v3180
  %vm3189 = vweird.f32 %v3182
  %vm3190 = vmor %vm3188, %vm3189
  %v3191 = vsel %vm3190, %v3182, %v3187
  %v3192 = vrsqrt.pop %v3181
  %v3193 = vmul.f32 %v3192, %v3181
  %v3194 = vmul.f32 %v3193, %v3192
  %v3195 = vmul.f32 0.5, %v3194
  %v3196 = vsub.f32 1.5, %v3195
  %v3197 = vmul.f32 %v3192, %v3196
  %vm3198 = vweird.f32 %v3181
  %vm3199 = vweird.f32 %v3192
  %vm3200 = vmor %vm3198, %vm3199
  %v3201 = vsel %vm3200, %v3192, %v3197
  %v3202 = vmul.f32 %v3168, %v3191
  %v3203 = vmul.f32 %v3169, %v3201
  %v3204 = vperm.slane %v1976, 4
  %v3205 = vmul.f32 %v3202, %v3204
  %v3206 = vmul.f32 %v3203, %v3204
  %v3207 = vperm.slane %v1976, 5
  %v3208 = vadd.f32 %v3205, %v3207
  %v3209 = vadd.f32 %v3206, %v3207
  %3210 = vst.msk [vmem:[%s9] sm:$0xff] %vm399, %v3208
  %3211 = vst.msk [vmem:[%s9 + $0x8] sm:$0xff] %vm399, %v3209
  // Predicated region
  $region38: #{transformer_block_forward.1} parent=0 // pred_check
    _
  $region39: #{transformer_block_forward.1} parent=0 // pred_check_branch
    %3213 = sbr.rel (0) target = $region41
  $region40: #{transformer_block_forward.1} parent=0 // pred_region
    _
  $region41: #{transformer_block_forward.1} parent=0 // pred_fallthru
    _
  // Predicated region
  $region42: #{transformer_block_forward.1} parent=0 // pred_check
    _
  $region43: #{transformer_block_forward.1} parent=0 // pred_check_branch
    %3215 = sbr.rel (0) target = $region45
  $region44: #{transformer_block_forward.1} parent=0 // pred_region
    _
  $region45: #{transformer_block_forward.1} parent=0 // pred_fallthru
    _

</llo_original>
